<compile_context>
chip_gen: v6e
topology: v6e:2x2x1
jax: 0.10.0
libtpu: 0.0.40
codegen_flags: <defaults>
</compile_context>

<pallas_src>
import functools

import numpy as np

import jax
import jax.numpy as jnp
from jax import lax
from jax.experimental import pallas as pl
from jax.experimental.pallas import tpu as pltpu

COMPUTE_DTYPE = jnp.bfloat16   # MXU input dtype (accumulation is always f32)


def _round_up(x, m):
    return (x + m - 1) // m * m


# ---------------------------------------------------------------------------
# Pure-JAX reference layers (PyTorch semantics).  Used (a) to linearize each
# layer at parameter-preparation time and (b) as the numerical reference.
# ---------------------------------------------------------------------------
def conv2d_ref(x, w, b, stride, padding):
    out = lax.conv_general_dilated(
        x, w, window_strides=(stride, stride),
        padding=[(padding, padding), (padding, padding)],
        dimension_numbers=("NCHW", "OIHW", "NCHW"))
    return out + b[None, :, None, None]


def conv_transpose2d_ref(x, w, b, stride):
    """PyTorch ConvTranspose2d (padding=0, output_padding=0, dilation=1)."""
    KH, KW = w.shape[2], w.shape[3]
    w_eff = jnp.flip(w, (2, 3)).transpose(1, 0, 2, 3)      # (OC, IC, KH, KW)
    out = lax.conv_general_dilated(
        x, w_eff, window_strides=(1, 1),
        padding=[(KH - 1, KH - 1), (KW - 1, KW - 1)],
        lhs_dilation=(stride, stride),
        dimension_numbers=("NCHW", "OIHW", "NCHW"))
    return out + b[None, :, None, None]


def maxpool2d_ref(x, k, stride):
    return lax.reduce_window(x, -jnp.inf, lax.max,
                             (1, 1, k, k), (1, 1, stride, stride), "VALID")


def autoencoder_ref(params, x):
    h = jax.nn.relu(conv2d_ref(x, params["enc1_w"], params["enc1_b"], 3, 1))
    h = maxpool2d_ref(h, 2, 2)
    h = jax.nn.relu(conv2d_ref(h, params["enc2_w"], params["enc2_b"], 2, 1))
    h = maxpool2d_ref(h, 2, 1)
    h = jax.nn.relu(conv_transpose2d_ref(h, params["dec1_w"], params["dec1_b"], 2))
    h = jax.nn.relu(conv_transpose2d_ref(h, params["dec2_w"], params["dec2_b"], 3))
    h = jnp.tanh(conv_transpose2d_ref(h, params["dec3_w"], params["dec3_b"], 2))
    return h


# ---------------------------------------------------------------------------
# One-time parameter preparation (outside the forward pass).
# ---------------------------------------------------------------------------
def _linearize(fn, in_cohw):
    """Dense matrix (F_in, F_out) of the linear map `fn` on a (C,H,W) sample."""
    f_in = int(np.prod(in_cohw))
    eye = jnp.eye(f_in, dtype=jnp.float32).reshape((f_in,) + tuple(in_cohw))
    out = fn(eye)                                  # (F_in, C_out, OH, OW)
    out_cohw = tuple(int(d) for d in out.shape[1:])
    return np.asarray(out).reshape(f_in, -1), out_cohw


def _enc_block_mats(w, b, conv_stride, conv_pad, pool_k, pool_s, in_cohw):
    """Conv2d + ReLU + MaxPool fused: one dense matrix per pool tap.

    Valid fusion: maxpool(relu(conv + b)) == relu(max_taps(conv) + b) because
    the bias is per-channel constant over the pool window and relu is monotone.
    """
    oc = int(w.shape[0])
    zb = jnp.zeros((oc,), jnp.float32)
    wc, (_, ohc, owc) = _linearize(
        lambda xb: conv2d_ref(xb, w, zb, conv_stride, conv_pad), in_cohw)
    ohp = (ohc - pool_k) // pool_s + 1
    owp = (owc - pool_k) // pool_s + 1
    c = np.arange(oc)[:, None, None]
    ph = np.arange(ohp)[None, :, None]
    pw = np.arange(owp)[None, None, :]
    taps = []
    for dh in range(pool_k):
        for dw in range(pool_k):
            cols = (c * ohc + (ph * pool_s + dh)) * owc + (pw * pool_s + dw)
            taps.append(wc[:, cols.reshape(-1)])           # (F_in, oc*ohp*owp)
    b_vec = np.repeat(np.asarray(b, np.float32), ohp * owp)
    return taps, b_vec, (oc, ohp, owp)


def _dec_mats(w, b, stride, in_cohw):
    oc = int(w.shape[1])
    zb = jnp.zeros((oc,), jnp.float32)
    wd, (_, oh, ow) = _linearize(
        lambda xb: conv_transpose2d_ref(xb, w, zb, stride), in_cohw)
    b_vec = np.repeat(np.asarray(b, np.float32), oh * ow)
    return wd, b_vec, (oc, oh, ow)


def prepare_params(params, input_hw=(16, 16), compute_dtype=COMPUTE_DTYPE):
    """Build lane-padded layer matrices / bias rows / sub-pixel tables (once)."""
    in0 = (3,) + tuple(input_hw)
    f0 = int(np.prod(in0))

    # encoder: Conv(3,16,3,s3,p1)+ReLU+Pool(2,2);  Conv(16,8,3,s2,p1)+ReLU+Pool(2,1)
    w1_taps, b1_vec, s1 = _enc_block_mats(params["enc1_w"], params["enc1_b"], 3, 1, 2, 2, in0)
    w2_taps, b2_vec, s2 = _enc_block_mats(params["enc2_w"], params["enc2_b"], 2, 1, 2, 1, s1)
    # decoder stages 1/2 dense;  stage 3 kept factored (sub-pixel).
    w3_m, b3_vec, s3 = _dec_mats(params["dec1_w"], params["dec1_b"], 2, s2)
    w4_m, b4_vec, s4 = _dec_mats(params["dec2_w"], params["dec2_b"], 3, s3)

    f1, f2, f3 = int(np.prod(s1)), int(np.prod(s2)), int(np.prod(s3))
    f0p = _round_up(f0, 128)          # 768
    f1p = _round_up(f1, 128)          # 256
    f2p = _round_up(f2, 128)          # 128
    f3p = _round_up(f3, 128)          # 256

    c4, oh4, ow4 = s4                 # (8, 12, 12)
    sp4 = oh4 * ow4                   # 144
    sp4p = _round_up(sp4, 128)        # 256  (aligned per-channel planes)

    def cat_taps(taps, rows, cols_per_tap):
        mats = []
        for t in taps:
            m = np.zeros((rows, cols_per_tap), np.float32)
            m[:t.shape[0], :t.shape[1]] = t
            mats.append(m)
        return np.concatenate(mats, axis=1)

    def pad_row(v, width):
        out = np.zeros((1, width), np.float32)
        out[0, :v.shape[0]] = v
        return out

    w1 = cat_taps(w1_taps, f0p, f1p)                  # (768, 4*256)
    w2 = cat_taps(w2_taps, f1p, f2p)                  # (256, 4*128)
    w3 = np.zeros((f2p, f3p), np.float32)             # (128, 256)
    w3[:w3_m.shape[0], :w3_m.shape[1]] = w3_m

    # dec2: each output channel in its own 128-aligned spatial plane.
    w4 = np.zeros((f3p, c4 * sp4p), np.float32)       # (256, 2048)
    b4 = np.zeros((1, c4 * sp4p), np.float32)
    for c in range(c4):
        w4[:w4_m.shape[0], c * sp4p:c * sp4p + sp4] = w4_m[:, c * sp4:(c + 1) * sp4]
        b4[0, c * sp4p:c * sp4p + sp4] = b4_vec[c * sp4:(c + 1) * sp4]

    # dec3 (ConvT 8->3, k2, s2): kernel == stride -> pure sub-pixel layer;
    # keep the raw (IC, OC*KH*KW) table + per-plane bias as f32 SMEM scalars.
    dec3_w = np.asarray(params["dec3_w"], np.float32)  # (8, 3, 2, 2)
    dec3_b = np.asarray(params["dec3_b"], np.float32)  # (3,)
    ic5, oc5, kh5, kw5 = dec3_w.shape
    w5 = dec3_w.reshape(ic5, oc5 * kh5 * kw5)          # (8, 12)
    b5 = np.repeat(dec3_b, kh5 * kw5)[None, :]         # (1, 12)

    dense = {
        "w1": jnp.asarray(w1, compute_dtype), "b1": jnp.asarray(pad_row(b1_vec, f1p)),
        "w2": jnp.asarray(w2, compute_dtype), "b2": jnp.asarray(pad_row(b2_vec, f2p)),
        "w3": jnp.asarray(w3, compute_dtype), "b3": jnp.asarray(pad_row(b3_vec, f3p)),
        "w4": jnp.asarray(w4, compute_dtype), "b4": jnp.asarray(b4, jnp.float32),
        "w5": jnp.asarray(w5, jnp.float32),   "b5": jnp.asarray(b5, jnp.float32),
    }
    meta = {
        "f_in": f0, "f_in_pad": f0p,
        "dec3": {"oc": oc5, "kh": kh5, "kw": kw5,
                 "ih": oh4, "iw": ow4, "sp": sp4, "sp_pad": sp4p},
    }
    return dense, meta


# ---------------------------------------------------------------------------
# The single fused Pallas kernel: whole network, activations stay in VMEM.
# ---------------------------------------------------------------------------
def _autoencoder_kernel(x_ref, w1_ref, b1_ref, w2_ref, b2_ref, w3_ref, b3_ref,
                        w4_ref, b4_ref, w5_ref, b5_ref, o_ref):
    f32 = jnp.float32
    cdt = w1_ref.dtype          # bf16 MXU inputs, f32 accumulation

    def dot32(a, w_ref_):
        return jnp.dot(a, w_ref_[...], preferred_element_type=f32)

    def pool_taps(y, width):
        """Max over the pool-tap lane slices (128-aligned -> free VPU work)."""
        n_taps = y.shape[1] // width
        m = y[:, :width]
        for t in range(1, n_taps):
            m = jnp.maximum(m, y[:, t * width:(t + 1) * width])
        return m

    # --- encoder block 1: Conv2d(3,16,3,s3,p1) + ReLU + MaxPool2d(2,2)
    h = pool_taps(dot32(x_ref[...], w1_ref), b1_ref.shape[1])
    h = jnp.maximum(h + b1_ref[...], 0.0)
    # --- encoder block 2: Conv2d(16,8,3,s2,p1) + ReLU + MaxPool2d(2,1)
    g = pool_taps(dot32(h.astype(cdt), w2_ref), b2_ref.shape[1])
    g = jnp.maximum(g + b2_ref[...], 0.0)
    # --- decoder 1: ConvTranspose2d(8,16,3,s2) + ReLU
    d1 = jnp.maximum(dot32(g.astype(cdt), w3_ref) + b3_ref[...], 0.0)
    # --- decoder 2: ConvTranspose2d(16,8,6,s3) + ReLU
    #     (output = 8 channel planes, each 128-aligned / sp_pad lanes wide)
    d2 = jnp.maximum(dot32(d1.astype(cdt), w4_ref) + b4_ref[...], 0.0)
    # --- decoder 3: ConvTranspose2d(8,3,2,s2) + Tanh, sub-pixel formulation:
    #     out[(oc,kh,kw)][n, s] = tanh(sum_ic W5[ic, oc*4+kh*2+kw] * d2[n, ic, s] + b[oc])
    #     96 scalar*plane FMAs in f32 on the VPU (weights/bias read from SMEM).
    n_ic = w5_ref.shape[0]                 # 8
    n_planes = w5_ref.shape[1]             # 12 = oc*kh*kw
    sp_pad = o_ref.shape[2]                # 256
    planes = [d2[:, c * sp_pad:(c + 1) * sp_pad] for c in range(n_ic)]
    for o in range(n_planes):
        acc = planes[0] * w5_ref[0, o]
        for c in range(1, n_ic):
            acc = acc + planes[c] * w5_ref[c, o]
        o_ref[o, :, :] = jnp.tanh(acc + b5_ref[0, o])


def autoencoder_forward(dense, x, *, meta):
    n = x.shape[0]
    tb = 8 if n <= 8 else _round_up(min(n, 128), 16)   # batch tile (sublanes)
    n_pad = _round_up(n, tb)

    f0, f0p = meta["f_in"], meta["f_in_pad"]
    d3 = meta["dec3"]
    sp, sp_pad = d3["sp"], d3["sp_pad"]
    n_planes = d3["oc"] * d3["kh"] * d3["kw"]

    cdt = dense["w1"].dtype
    # Flatten NCHW -> (batch, features), pad batch, cast to the MXU dtype here.
    x2d = jnp.zeros((n_pad, f0p), cdt).at[:n, :f0].set(
        x.reshape(n, f0).astype(cdt))

    weight_ops = [dense["w1"], dense["b1"], dense["w2"], dense["b2"],
                  dense["w3"], dense["b3"], dense["w4"], dense["b4"]]

    def const_spec(a):
        nd = a.ndim
        return pl.BlockSpec(a.shape, lambda i, _nd=nd: (0,) * _nd)

    in_specs = ([pl.BlockSpec((tb, f0p), lambda i: (i, 0))]
                + [const_spec(a) for a in weight_ops]
                + [pl.BlockSpec(memory_space=pltpu.MemorySpace.SMEM),
                   pl.BlockSpec(memory_space=pltpu.MemorySpace.SMEM)])

    out = pl.pallas_call(
        _autoencoder_kernel,
        grid=(n_pad // tb,),
        in_specs=in_specs,
        out_specs=pl.BlockSpec((n_planes, tb, sp_pad), lambda i: (0, i, 0)),
        out_shape=jax.ShapeDtypeStruct((n_planes, n_pad, sp_pad), jnp.float32),
        compiler_params=pltpu.CompilerParams(
            dimension_semantics=("parallel",),
            vmem_limit_bytes=32 * 1024 * 1024),
    )(x2d, *weight_ops, dense["w5"], dense["b5"])

    # (oc*kh*kw, n, ih*iw) sub-pixel planes -> NCHW (n, oc, ih*kh, iw*kw).
    oc, kh, kw = d3["oc"], d3["kh"], d3["kw"]
    ih, iw = d3["ih"], d3["iw"]
    y = out[:, :n, :sp].reshape(oc, kh, kw, n, ih, iw)
    y = y.transpose(3, 0, 4, 1, 5, 2).reshape(n, oc, ih * kh, iw * kw)
    return y


# ---------------------------------------------------------------------------
# Model params (PyTorch-style layout & init)
# ---------------------------------------------------------------------------
def init_params(key):
    ks = jax.random.split(key, 10)

    def u(k, shape, fan_in):
        bound = 1.0 / (fan_in ** 0.5)
        return jax.random.uniform(k, shape, jnp.float32, -bound, bound)

    return {
        # encoder: Conv2d(3,16,3,s=3,p=1), Conv2d(16,8,3,s=2,p=1)
        "enc1_w": u(ks[0], (16, 3, 3, 3), 3 * 9),
        "enc1_b": u(ks[1], (16,), 3 * 9),
        "enc2_w": u(ks[2], (8, 16, 3, 3), 16 * 9),
        "enc2_b": u(ks[3], (8,), 16 * 9),
        # decoder: ConvT(8,16,3,s=2), ConvT(16,8,6,s=3), ConvT(8,3,2,s=2)
        "dec1_w": u(ks[4], (8, 16, 3, 3), 16 * 9),
        "dec1_b": u(ks[5], (16,), 16 * 9),
        "dec2_w": u(ks[6], (16, 8, 6, 6), 8 * 36),
        "dec2_b": u(ks[7], (8,), 8 * 36),
        "dec3_w": u(ks[8], (8, 3, 2, 2), 3 * 4),
        "dec3_b": u(ks[9], (3,), 3 * 4),
    }


if __name__ == "__main__":
    x = jax.random.normal(jax.random.PRNGKey(0), (2, 3, 16, 16), jnp.float32)
    params = init_params(jax.random.PRNGKey(42))

    # One-time prep: linearize / pack / pad / cast all layer weights.
    dense, meta = prepare_params(params, input_hw=(16, 16))

    fwd = jax.jit(functools.partial(autoencoder_forward, meta=meta))
    y = fwd(dense, x)
    jax.block_until_ready(y)

    # shape trace for 16x16 input:
    # enc: (2,16,6,6) -> pool (2,16,3,3) -> (2,8,2,2) -> pool (2,8,1,1)
    # dec: (2,16,3,3) -> (2,8,12,12) -> (2,3,24,24)
    assert y.shape == (2, 3, 24, 24), y.shape
    assert y.dtype == jnp.float32

    # Correctness vs. a pure-JAX f32 reference (tolerance covers bf16 MXU inputs).
    y_ref = jax.jit(autoencoder_ref)(params, x)
    err = float(jnp.max(jnp.abs(y - y_ref)))
    assert err < 5e-2, f"max abs error vs reference: {err}"

    print("KERNEL_OK")
</pallas_src>

<mosaic_0001>
module attributes {stable_mosaic.version = 11 : i64} {
  func.func @_autoencoder_kernel(%arg0: i32, %arg1: memref<8x768xbf16, #tpu.memory_space<vmem>>, %arg2: memref<768x1024xbf16, #tpu.memory_space<vmem>>, %arg3: memref<1x256xf32, #tpu.memory_space<vmem>>, %arg4: memref<256x512xbf16, #tpu.memory_space<vmem>>, %arg5: memref<1x128xf32, #tpu.memory_space<vmem>>, %arg6: memref<128x256xbf16, #tpu.memory_space<vmem>>, %arg7: memref<1x256xf32, #tpu.memory_space<vmem>>, %arg8: memref<256x2048xbf16, #tpu.memory_space<vmem>>, %arg9: memref<1x2048xf32, #tpu.memory_space<vmem>>, %arg10: memref<8x12xf32, #tpu.memory_space<smem>>, %arg11: memref<1x12xf32, #tpu.memory_space<smem>>, %arg12: memref<12x8x256xf32, #tpu.memory_space<vmem>>) attributes {dimension_semantics = [#tpu.dimension_semantics<parallel>], iteration_bounds = array<i64: 1>, scalar_prefetch = 0 : i64, scratch_operands = 0 : i64, tpu.core_type = #tpu.core_type<tc>, window_params = [{transform_indices = @transform_0, window_bounds = array<i64: 8, 768>}, {pipeline_mode = #tpu.pipeline_mode<synchronous>, transform_indices = @transform_1, window_bounds = array<i64: 768, 1024>}, {pipeline_mode = #tpu.pipeline_mode<synchronous>, transform_indices = @transform_2, window_bounds = array<i64: 1, 256>}, {pipeline_mode = #tpu.pipeline_mode<synchronous>, transform_indices = @transform_3, window_bounds = array<i64: 256, 512>}, {pipeline_mode = #tpu.pipeline_mode<synchronous>, transform_indices = @transform_4, window_bounds = array<i64: 1, 128>}, {pipeline_mode = #tpu.pipeline_mode<synchronous>, transform_indices = @transform_5, window_bounds = array<i64: 128, 256>}, {pipeline_mode = #tpu.pipeline_mode<synchronous>, transform_indices = @transform_6, window_bounds = array<i64: 1, 256>}, {pipeline_mode = #tpu.pipeline_mode<synchronous>, transform_indices = @transform_7, window_bounds = array<i64: 256, 2048>}, {pipeline_mode = #tpu.pipeline_mode<synchronous>, transform_indices = @transform_8, window_bounds = array<i64: 1, 2048>}, {transform_indices = @transform_9, window_bounds = array<i64: 8, 12>}, {transform_indices = @transform_10, window_bounds = array<i64: 1, 12>}, {transform_indices = @transform_11, window_bounds = array<i64: 12, 8, 256>}]} {
    %c0 = arith.constant 0 : index
    %c0_0 = arith.constant 0 : index
    %0 = vector.load %arg1[%c0, %c0_0] : memref<8x768xbf16, #tpu.memory_space<vmem>>, vector<8x768xbf16>
    %c0_1 = arith.constant 0 : index
    %c0_2 = arith.constant 0 : index
    %1 = vector.load %arg2[%c0_1, %c0_2] : memref<768x1024xbf16, #tpu.memory_space<vmem>>, vector<768x1024xbf16>
    %cst = arith.constant dense<0.000000e+00> : vector<8x1024xf32>
    %2 = tpu.matmul %0, %1, %cst {dimension_numbers = #tpu.dot_dimension_numbers<[1], [0], [0], [1], [0, 0, 1, 1], [], []>} : vector<8x768xbf16>, vector<768x1024xbf16>, vector<8x1024xf32> -> vector<8x1024xf32>
    %3 = vector.extract_strided_slice %2 {offsets = [0, 0], sizes = [8, 256], strides = [1, 1]} : vector<8x1024xf32> to vector<8x256xf32>
    %4 = vector.extract_strided_slice %2 {offsets = [0, 256], sizes = [8, 256], strides = [1, 1]} : vector<8x1024xf32> to vector<8x256xf32>
    %5 = arith.maximumf %3, %4 : vector<8x256xf32>
    %6 = vector.extract_strided_slice %2 {offsets = [0, 512], sizes = [8, 256], strides = [1, 1]} : vector<8x1024xf32> to vector<8x256xf32>
    %7 = arith.maximumf %5, %6 : vector<8x256xf32>
    %8 = vector.extract_strided_slice %2 {offsets = [0, 768], sizes = [8, 256], strides = [1, 1]} : vector<8x1024xf32> to vector<8x256xf32>
    %9 = arith.maximumf %7, %8 : vector<8x256xf32>
    %c0_3 = arith.constant 0 : index
    %c0_4 = arith.constant 0 : index
    %10 = vector.load %arg3[%c0_3, %c0_4] : memref<1x256xf32, #tpu.memory_space<vmem>>, vector<1x256xf32>
    %11 = vector.broadcast %10 : vector<1x256xf32> to vector<8x256xf32>
    %12 = arith.addf %9, %11 : vector<8x256xf32>
    %cst_5 = arith.constant 0.000000e+00 : f32
    %13 = vector.broadcast %cst_5 : f32 to vector<8x256xf32>
    %14 = arith.maximumf %12, %13 : vector<8x256xf32>
    %15 = arith.truncf %14 : vector<8x256xf32> to vector<8x256xbf16>
    %c0_6 = arith.constant 0 : index
    %c0_7 = arith.constant 0 : index
    %16 = vector.load %arg4[%c0_6, %c0_7] : memref<256x512xbf16, #tpu.memory_space<vmem>>, vector<256x512xbf16>
    %cst_8 = arith.constant dense<0.000000e+00> : vector<8x512xf32>
    %17 = tpu.matmul %15, %16, %cst_8 {dimension_numbers = #tpu.dot_dimension_numbers<[1], [0], [0], [1], [0, 0, 1, 1], [], []>} : vector<8x256xbf16>, vector<256x512xbf16>, vector<8x512xf32> -> vector<8x512xf32>
    %18 = vector.extract_strided_slice %17 {offsets = [0, 0], sizes = [8, 128], strides = [1, 1]} : vector<8x512xf32> to vector<8x128xf32>
    %19 = vector.extract_strided_slice %17 {offsets = [0, 128], sizes = [8, 128], strides = [1, 1]} : vector<8x512xf32> to vector<8x128xf32>
    %20 = arith.maximumf %18, %19 : vector<8x128xf32>
    %21 = vector.extract_strided_slice %17 {offsets = [0, 256], sizes = [8, 128], strides = [1, 1]} : vector<8x512xf32> to vector<8x128xf32>
    %22 = arith.maximumf %20, %21 : vector<8x128xf32>
    %23 = vector.extract_strided_slice %17 {offsets = [0, 384], sizes = [8, 128], strides = [1, 1]} : vector<8x512xf32> to vector<8x128xf32>
    %24 = arith.maximumf %22, %23 : vector<8x128xf32>
    %c0_9 = arith.constant 0 : index
    %c0_10 = arith.constant 0 : index
    %25 = vector.load %arg5[%c0_9, %c0_10] : memref<1x128xf32, #tpu.memory_space<vmem>>, vector<1x128xf32>
    %26 = vector.broadcast %25 : vector<1x128xf32> to vector<8x128xf32>
    %27 = arith.addf %24, %26 : vector<8x128xf32>
    %cst_11 = arith.constant 0.000000e+00 : f32
    %28 = vector.broadcast %cst_11 : f32 to vector<8x128xf32>
    %29 = arith.maximumf %27, %28 : vector<8x128xf32>
    %30 = arith.truncf %29 : vector<8x128xf32> to vector<8x128xbf16>
    %c0_12 = arith.constant 0 : index
    %c0_13 = arith.constant 0 : index
    %31 = vector.load %arg6[%c0_12, %c0_13] : memref<128x256xbf16, #tpu.memory_space<vmem>>, vector<128x256xbf16>
    %cst_14 = arith.constant dense<0.000000e+00> : vector<8x256xf32>
    %32 = tpu.matmul %30, %31, %cst_14 {dimension_numbers = #tpu.dot_dimension_numbers<[1], [0], [0], [1], [0, 0, 1, 1], [], []>} : vector<8x128xbf16>, vector<128x256xbf16>, vector<8x256xf32> -> vector<8x256xf32>
    %c0_15 = arith.constant 0 : index
    %c0_16 = arith.constant 0 : index
    %33 = vector.load %arg7[%c0_15, %c0_16] : memref<1x256xf32, #tpu.memory_space<vmem>>, vector<1x256xf32>
    %34 = vector.broadcast %33 : vector<1x256xf32> to vector<8x256xf32>
    %35 = arith.addf %32, %34 : vector<8x256xf32>
    %cst_17 = arith.constant 0.000000e+00 : f32
    %36 = vector.broadcast %cst_17 : f32 to vector<8x256xf32>
    %37 = arith.maximumf %35, %36 : vector<8x256xf32>
    %38 = arith.truncf %37 : vector<8x256xf32> to vector<8x256xbf16>
    %c0_18 = arith.constant 0 : index
    %c0_19 = arith.constant 0 : index
    %39 = vector.load %arg8[%c0_18, %c0_19] : memref<256x2048xbf16, #tpu.memory_space<vmem>>, vector<256x2048xbf16>
    %cst_20 = arith.constant dense<0.000000e+00> : vector<8x2048xf32>
    %40 = tpu.matmul %38, %39, %cst_20 {dimension_numbers = #tpu.dot_dimension_numbers<[1], [0], [0], [1], [0, 0, 1, 1], [], []>} : vector<8x256xbf16>, vector<256x2048xbf16>, vector<8x2048xf32> -> vector<8x2048xf32>
    %c0_21 = arith.constant 0 : index
    %c0_22 = arith.constant 0 : index
    %41 = vector.load %arg9[%c0_21, %c0_22] : memref<1x2048xf32, #tpu.memory_space<vmem>>, vector<1x2048xf32>
    %42 = vector.broadcast %41 : vector<1x2048xf32> to vector<8x2048xf32>
    %43 = arith.addf %40, %42 : vector<8x2048xf32>
    %cst_23 = arith.constant 0.000000e+00 : f32
    %44 = vector.broadcast %cst_23 : f32 to vector<8x2048xf32>
    %45 = arith.maximumf %43, %44 : vector<8x2048xf32>
    %46 = vector.extract_strided_slice %45 {offsets = [0, 0], sizes = [8, 256], strides = [1, 1]} : vector<8x2048xf32> to vector<8x256xf32>
    %47 = vector.extract_strided_slice %45 {offsets = [0, 256], sizes = [8, 256], strides = [1, 1]} : vector<8x2048xf32> to vector<8x256xf32>
    %48 = vector.extract_strided_slice %45 {offsets = [0, 512], sizes = [8, 256], strides = [1, 1]} : vector<8x2048xf32> to vector<8x256xf32>
    %49 = vector.extract_strided_slice %45 {offsets = [0, 768], sizes = [8, 256], strides = [1, 1]} : vector<8x2048xf32> to vector<8x256xf32>
    %50 = vector.extract_strided_slice %45 {offsets = [0, 1024], sizes = [8, 256], strides = [1, 1]} : vector<8x2048xf32> to vector<8x256xf32>
    %51 = vector.extract_strided_slice %45 {offsets = [0, 1280], sizes = [8, 256], strides = [1, 1]} : vector<8x2048xf32> to vector<8x256xf32>
    %52 = vector.extract_strided_slice %45 {offsets = [0, 1536], sizes = [8, 256], strides = [1, 1]} : vector<8x2048xf32> to vector<8x256xf32>
    %53 = vector.extract_strided_slice %45 {offsets = [0, 1792], sizes = [8, 256], strides = [1, 1]} : vector<8x2048xf32> to vector<8x256xf32>
    %c0_24 = arith.constant 0 : index
    %c0_25 = arith.constant 0 : index
    %54 = memref.load %arg10[%c0_24, %c0_25] : memref<8x12xf32, #tpu.memory_space<smem>>
    %55 = vector.broadcast %54 : f32 to vector<8x256xf32>
    %56 = arith.mulf %46, %55 : vector<8x256xf32>
    %c1 = arith.constant 1 : index
    %c0_26 = arith.constant 0 : index
    %57 = memref.load %arg10[%c1, %c0_26] : memref<8x12xf32, #tpu.memory_space<smem>>
    %58 = vector.broadcast %57 : f32 to vector<8x256xf32>
    %59 = arith.mulf %47, %58 : vector<8x256xf32>
    %60 = arith.addf %56, %59 : vector<8x256xf32>
    %c2 = arith.constant 2 : index
    %c0_27 = arith.constant 0 : index
    %61 = memref.load %arg10[%c2, %c0_27] : memref<8x12xf32, #tpu.memory_space<smem>>
    %62 = vector.broadcast %61 : f32 to vector<8x256xf32>
    %63 = arith.mulf %48, %62 : vector<8x256xf32>
    %64 = arith.addf %60, %63 : vector<8x256xf32>
    %c3 = arith.constant 3 : index
    %c0_28 = arith.constant 0 : index
    %65 = memref.load %arg10[%c3, %c0_28] : memref<8x12xf32, #tpu.memory_space<smem>>
    %66 = vector.broadcast %65 : f32 to vector<8x256xf32>
    %67 = arith.mulf %49, %66 : vector<8x256xf32>
    %68 = arith.addf %64, %67 : vector<8x256xf32>
    %c4 = arith.constant 4 : index
    %c0_29 = arith.constant 0 : index
    %69 = memref.load %arg10[%c4, %c0_29] : memref<8x12xf32, #tpu.memory_space<smem>>
    %70 = vector.broadcast %69 : f32 to vector<8x256xf32>
    %71 = arith.mulf %50, %70 : vector<8x256xf32>
    %72 = arith.addf %68, %71 : vector<8x256xf32>
    %c5 = arith.constant 5 : index
    %c0_30 = arith.constant 0 : index
    %73 = memref.load %arg10[%c5, %c0_30] : memref<8x12xf32, #tpu.memory_space<smem>>
    %74 = vector.broadcast %73 : f32 to vector<8x256xf32>
    %75 = arith.mulf %51, %74 : vector<8x256xf32>
    %76 = arith.addf %72, %75 : vector<8x256xf32>
    %c6 = arith.constant 6 : index
    %c0_31 = arith.constant 0 : index
    %77 = memref.load %arg10[%c6, %c0_31] : memref<8x12xf32, #tpu.memory_space<smem>>
    %78 = vector.broadcast %77 : f32 to vector<8x256xf32>
    %79 = arith.mulf %52, %78 : vector<8x256xf32>
    %80 = arith.addf %76, %79 : vector<8x256xf32>
    %c7 = arith.constant 7 : index
    %c0_32 = arith.constant 0 : index
    %81 = memref.load %arg10[%c7, %c0_32] : memref<8x12xf32, #tpu.memory_space<smem>>
    %82 = vector.broadcast %81 : f32 to vector<8x256xf32>
    %83 = arith.mulf %53, %82 : vector<8x256xf32>
    %84 = arith.addf %80, %83 : vector<8x256xf32>
    %c0_33 = arith.constant 0 : index
    %c0_34 = arith.constant 0 : index
    %85 = memref.load %arg11[%c0_33, %c0_34] : memref<1x12xf32, #tpu.memory_space<smem>>
    %86 = vector.broadcast %85 : f32 to vector<8x256xf32>
    %87 = arith.addf %84, %86 : vector<8x256xf32>
    %88 = math.tanh %87 : vector<8x256xf32>
    %c0_35 = arith.constant 0 : index
    %c0_36 = arith.constant 0 : index
    %c0_37 = arith.constant 0 : index
    %89 = vector.load %arg12[%c0_35, %c0_36, %c0_37] : memref<12x8x256xf32, #tpu.memory_space<vmem>>, vector<1x8x256xf32>
    %90 = vector.shape_cast %89 : vector<1x8x256xf32> to vector<8x256xf32>
    %91 = vector.shape_cast %88 : vector<8x256xf32> to vector<1x8x256xf32>
    tpu.vector_store %arg12[%c0_35, %c0_36, %c0_37], %91 {strides = array<i32>} : memref<12x8x256xf32, #tpu.memory_space<vmem>>, vector<1x8x256xf32>,
    %c0_38 = arith.constant 0 : index
    %c1_39 = arith.constant 1 : index
    %92 = memref.load %arg10[%c0_38, %c1_39] : memref<8x12xf32, #tpu.memory_space<smem>>
    %93 = vector.broadcast %92 : f32 to vector<8x256xf32>
    %94 = arith.mulf %46, %93 : vector<8x256xf32>
    %c1_40 = arith.constant 1 : index
    %c1_41 = arith.constant 1 : index
    %95 = memref.load %arg10[%c1_40, %c1_41] : memref<8x12xf32, #tpu.memory_space<smem>>
    %96 = vector.broadcast %95 : f32 to vector<8x256xf32>
    %97 = arith.mulf %47, %96 : vector<8x256xf32>
    %98 = arith.addf %94, %97 : vector<8x256xf32>
    %c2_42 = arith.constant 2 : index
    %c1_43 = arith.constant 1 : index
    %99 = memref.load %arg10[%c2_42, %c1_43] : memref<8x12xf32, #tpu.memory_space<smem>>
    %100 = vector.broadcast %99 : f32 to vector<8x256xf32>
    %101 = arith.mulf %48, %100 : vector<8x256xf32>
    %102 = arith.addf %98, %101 : vector<8x256xf32>
    %c3_44 = arith.constant 3 : index
    %c1_45 = arith.constant 1 : index
    %103 = memref.load %arg10[%c3_44, %c1_45] : memref<8x12xf32, #tpu.memory_space<smem>>
    %104 = vector.broadcast %103 : f32 to vector<8x256xf32>
    %105 = arith.mulf %49, %104 : vector<8x256xf32>
    %106 = arith.addf %102, %105 : vector<8x256xf32>
    %c4_46 = arith.constant 4 : index
    %c1_47 = arith.constant 1 : index
    %107 = memref.load %arg10[%c4_46, %c1_47] : memref<8x12xf32, #tpu.memory_space<smem>>
    %108 = vector.broadcast %107 : f32 to vector<8x256xf32>
    %109 = arith.mulf %50, %108 : vector<8x256xf32>
    %110 = arith.addf %106, %109 : vector<8x256xf32>
    %c5_48 = arith.constant 5 : index
    %c1_49 = arith.constant 1 : index
    %111 = memref.load %arg10[%c5_48, %c1_49] : memref<8x12xf32, #tpu.memory_space<smem>>
    %112 = vector.broadcast %111 : f32 to vector<8x256xf32>
    %113 = arith.mulf %51, %112 : vector<8x256xf32>
    %114 = arith.addf %110, %113 : vector<8x256xf32>
    %c6_50 = arith.constant 6 : index
    %c1_51 = arith.constant 1 : index
    %115 = memref.load %arg10[%c6_50, %c1_51] : memref<8x12xf32, #tpu.memory_space<smem>>
    %116 = vector.broadcast %115 : f32 to vector<8x256xf32>
    %117 = arith.mulf %52, %116 : vector<8x256xf32>
    %118 = arith.addf %114, %117 : vector<8x256xf32>
    %c7_52 = arith.constant 7 : index
    %c1_53 = arith.constant 1 : index
    %119 = memref.load %arg10[%c7_52, %c1_53] : memref<8x12xf32, #tpu.memory_space<smem>>
    %120 = vector.broadcast %119 : f32 to vector<8x256xf32>
    %121 = arith.mulf %53, %120 : vector<8x256xf32>
    %122 = arith.addf %118, %121 : vector<8x256xf32>
    %c0_54 = arith.constant 0 : index
    %c1_55 = arith.constant 1 : index
    %123 = memref.load %arg11[%c0_54, %c1_55] : memref<1x12xf32, #tpu.memory_space<smem>>
    %124 = vector.broadcast %123 : f32 to vector<8x256xf32>
    %125 = arith.addf %122, %124 : vector<8x256xf32>
    %126 = math.tanh %125 : vector<8x256xf32>
    %c1_56 = arith.constant 1 : index
    %c0_57 = arith.constant 0 : index
    %c0_58 = arith.constant 0 : index
    %127 = vector.load %arg12[%c1_56, %c0_57, %c0_58] : memref<12x8x256xf32, #tpu.memory_space<vmem>>, vector<1x8x256xf32>
    %128 = vector.shape_cast %127 : vector<1x8x256xf32> to vector<8x256xf32>
    %129 = vector.shape_cast %126 : vector<8x256xf32> to vector<1x8x256xf32>
    tpu.vector_store %arg12[%c1_56, %c0_57, %c0_58], %129 {strides = array<i32>} : memref<12x8x256xf32, #tpu.memory_space<vmem>>, vector<1x8x256xf32>,
    %c0_59 = arith.constant 0 : index
    %c2_60 = arith.constant 2 : index
    %130 = memref.load %arg10[%c0_59, %c2_60] : memref<8x12xf32, #tpu.memory_space<smem>>
    %131 = vector.broadcast %130 : f32 to vector<8x256xf32>
    %132 = arith.mulf %46, %131 : vector<8x256xf32>
    %c1_61 = arith.constant 1 : index
    %c2_62 = arith.constant 2 : index
    %133 = memref.load %arg10[%c1_61, %c2_62] : memref<8x12xf32, #tpu.memory_space<smem>>
    %134 = vector.broadcast %133 : f32 to vector<8x256xf32>
    %135 = arith.mulf %47, %134 : vector<8x256xf32>
    %136 = arith.addf %132, %135 : vector<8x256xf32>
    %c2_63 = arith.constant 2 : index
    %c2_64 = arith.constant 2 : index
    %137 = memref.load %arg10[%c2_63, %c2_64] : memref<8x12xf32, #tpu.memory_space<smem>>
    %138 = vector.broadcast %137 : f32 to vector<8x256xf32>
    %139 = arith.mulf %48, %138 : vector<8x256xf32>
    %140 = arith.addf %136, %139 : vector<8x256xf32>
    %c3_65 = arith.constant 3 : index
    %c2_66 = arith.constant 2 : index
    %141 = memref.load %arg10[%c3_65, %c2_66] : memref<8x12xf32, #tpu.memory_space<smem>>
    %142 = vector.broadcast %141 : f32 to vector<8x256xf32>
    %143 = arith.mulf %49, %142 : vector<8x256xf32>
    %144 = arith.addf %140, %143 : vector<8x256xf32>
    %c4_67 = arith.constant 4 : index
    %c2_68 = arith.constant 2 : index
    %145 = memref.load %arg10[%c4_67, %c2_68] : memref<8x12xf32, #tpu.memory_space<smem>>
    %146 = vector.broadcast %145 : f32 to vector<8x256xf32>
    %147 = arith.mulf %50, %146 : vector<8x256xf32>
    %148 = arith.addf %144, %147 : vector<8x256xf32>
    %c5_69 = arith.constant 5 : index
    %c2_70 = arith.constant 2 : index
    %149 = memref.load %arg10[%c5_69, %c2_70] : memref<8x12xf32, #tpu.memory_space<smem>>
    %150 = vector.broadcast %149 : f32 to vector<8x256xf32>
    %151 = arith.mulf %51, %150 : vector<8x256xf32>
    %152 = arith.addf %148, %151 : vector<8x256xf32>
    %c6_71 = arith.constant 6 : index
    %c2_72 = arith.constant 2 : index
    %153 = memref.load %arg10[%c6_71, %c2_72] : memref<8x12xf32, #tpu.memory_space<smem>>
    %154 = vector.broadcast %153 : f32 to vector<8x256xf32>
    %155 = arith.mulf %52, %154 : vector<8x256xf32>
    %156 = arith.addf %152, %155 : vector<8x256xf32>
    %c7_73 = arith.constant 7 : index
    %c2_74 = arith.constant 2 : index
    %157 = memref.load %arg10[%c7_73, %c2_74] : memref<8x12xf32, #tpu.memory_space<smem>>
    %158 = vector.broadcast %157 : f32 to vector<8x256xf32>
    %159 = arith.mulf %53, %158 : vector<8x256xf32>
    %160 = arith.addf %156, %159 : vector<8x256xf32>
    %c0_75 = arith.constant 0 : index
    %c2_76 = arith.constant 2 : index
    %161 = memref.load %arg11[%c0_75, %c2_76] : memref<1x12xf32, #tpu.memory_space<smem>>
    %162 = vector.broadcast %161 : f32 to vector<8x256xf32>
    %163 = arith.addf %160, %162 : vector<8x256xf32>
    %164 = math.tanh %163 : vector<8x256xf32>
    %c2_77 = arith.constant 2 : index
    %c0_78 = arith.constant 0 : index
    %c0_79 = arith.constant 0 : index
    %165 = vector.load %arg12[%c2_77, %c0_78, %c0_79] : memref<12x8x256xf32, #tpu.memory_space<vmem>>, vector<1x8x256xf32>
    %166 = vector.shape_cast %165 : vector<1x8x256xf32> to vector<8x256xf32>
    %167 = vector.shape_cast %164 : vector<8x256xf32> to vector<1x8x256xf32>
    tpu.vector_store %arg12[%c2_77, %c0_78, %c0_79], %167 {strides = array<i32>} : memref<12x8x256xf32, #tpu.memory_space<vmem>>, vector<1x8x256xf32>,
    %c0_80 = arith.constant 0 : index
    %c3_81 = arith.constant 3 : index
    %168 = memref.load %arg10[%c0_80, %c3_81] : memref<8x12xf32, #tpu.memory_space<smem>>
    %169 = vector.broadcast %168 : f32 to vector<8x256xf32>
    %170 = arith.mulf %46, %169 : vector<8x256xf32>
    %c1_82 = arith.constant 1 : index
    %c3_83 = arith.constant 3 : index
    %171 = memref.load %arg10[%c1_82, %c3_83] : memref<8x12xf32, #tpu.memory_space<smem>>
    %172 = vector.broadcast %171 : f32 to vector<8x256xf32>
    %173 = arith.mulf %47, %172 : vector<8x256xf32>
    %174 = arith.addf %170, %173 : vector<8x256xf32>
    %c2_84 = arith.constant 2 : index
    %c3_85 = arith.constant 3 : index
    %175 = memref.load %arg10[%c2_84, %c3_85] : memref<8x12xf32, #tpu.memory_space<smem>>
    %176 = vector.broadcast %175 : f32 to vector<8x256xf32>
    %177 = arith.mulf %48, %176 : vector<8x256xf32>
    %178 = arith.addf %174, %177 : vector<8x256xf32>
    %c3_86 = arith.constant 3 : index
    %c3_87 = arith.constant 3 : index
    %179 = memref.load %arg10[%c3_86, %c3_87] : memref<8x12xf32, #tpu.memory_space<smem>>
    %180 = vector.broadcast %179 : f32 to vector<8x256xf32>
    %181 = arith.mulf %49, %180 : vector<8x256xf32>
    %182 = arith.addf %178, %181 : vector<8x256xf32>
    %c4_88 = arith.constant 4 : index
    %c3_89 = arith.constant 3 : index
    %183 = memref.load %arg10[%c4_88, %c3_89] : memref<8x12xf32, #tpu.memory_space<smem>>
    %184 = vector.broadcast %183 : f32 to vector<8x256xf32>
    %185 = arith.mulf %50, %184 : vector<8x256xf32>
    %186 = arith.addf %182, %185 : vector<8x256xf32>
    %c5_90 = arith.constant 5 : index
    %c3_91 = arith.constant 3 : index
    %187 = memref.load %arg10[%c5_90, %c3_91] : memref<8x12xf32, #tpu.memory_space<smem>>
    %188 = vector.broadcast %187 : f32 to vector<8x256xf32>
    %189 = arith.mulf %51, %188 : vector<8x256xf32>
    %190 = arith.addf %186, %189 : vector<8x256xf32>
    %c6_92 = arith.constant 6 : index
    %c3_93 = arith.constant 3 : index
    %191 = memref.load %arg10[%c6_92, %c3_93] : memref<8x12xf32, #tpu.memory_space<smem>>
    %192 = vector.broadcast %191 : f32 to vector<8x256xf32>
    %193 = arith.mulf %52, %192 : vector<8x256xf32>
    %194 = arith.addf %190, %193 : vector<8x256xf32>
    %c7_94 = arith.constant 7 : index
    %c3_95 = arith.constant 3 : index
    %195 = memref.load %arg10[%c7_94, %c3_95] : memref<8x12xf32, #tpu.memory_space<smem>>
    %196 = vector.broadcast %195 : f32 to vector<8x256xf32>
    %197 = arith.mulf %53, %196 : vector<8x256xf32>
    %198 = arith.addf %194, %197 : vector<8x256xf32>
    %c0_96 = arith.constant 0 : index
    %c3_97 = arith.constant 3 : index
    %199 = memref.load %arg11[%c0_96, %c3_97] : memref<1x12xf32, #tpu.memory_space<smem>>
    %200 = vector.broadcast %199 : f32 to vector<8x256xf32>
    %201 = arith.addf %198, %200 : vector<8x256xf32>
    %202 = math.tanh %201 : vector<8x256xf32>
    %c3_98 = arith.constant 3 : index
    %c0_99 = arith.constant 0 : index
    %c0_100 = arith.constant 0 : index
    %203 = vector.load %arg12[%c3_98, %c0_99, %c0_100] : memref<12x8x256xf32, #tpu.memory_space<vmem>>, vector<1x8x256xf32>
    %204 = vector.shape_cast %203 : vector<1x8x256xf32> to vector<8x256xf32>
    %205 = vector.shape_cast %202 : vector<8x256xf32> to vector<1x8x256xf32>
    tpu.vector_store %arg12[%c3_98, %c0_99, %c0_100], %205 {strides = array<i32>} : memref<12x8x256xf32, #tpu.memory_space<vmem>>, vector<1x8x256xf32>,
    %c0_101 = arith.constant 0 : index
    %c4_102 = arith.constant 4 : index
    %206 = memref.load %arg10[%c0_101, %c4_102] : memref<8x12xf32, #tpu.memory_space<smem>>
    %207 = vector.broadcast %206 : f32 to vector<8x256xf32>
    %208 = arith.mulf %46, %207 : vector<8x256xf32>
    %c1_103 = arith.constant 1 : index
    %c4_104 = arith.constant 4 : index
    %209 = memref.load %arg10[%c1_103, %c4_104] : memref<8x12xf32, #tpu.memory_space<smem>>
    %210 = vector.broadcast %209 : f32 to vector<8x256xf32>
    %211 = arith.mulf %47, %210 : vector<8x256xf32>
    %212 = arith.addf %208, %211 : vector<8x256xf32>
    %c2_105 = arith.constant 2 : index
    %c4_106 = arith.constant 4 : index
    %213 = memref.load %arg10[%c2_105, %c4_106] : memref<8x12xf32, #tpu.memory_space<smem>>
    %214 = vector.broadcast %213 : f32 to vector<8x256xf32>
    %215 = arith.mulf %48, %214 : vector<8x256xf32>
    %216 = arith.addf %212, %215 : vector<8x256xf32>
    %c3_107 = arith.constant 3 : index
    %c4_108 = arith.constant 4 : index
    %217 = memref.load %arg10[%c3_107, %c4_108] : memref<8x12xf32, #tpu.memory_space<smem>>
    %218 = vector.broadcast %217 : f32 to vector<8x256xf32>
    %219 = arith.mulf %49, %218 : vector<8x256xf32>
    %220 = arith.addf %216, %219 : vector<8x256xf32>
    %c4_109 = arith.constant 4 : index
    %c4_110 = arith.constant 4 : index
    %221 = memref.load %arg10[%c4_109, %c4_110] : memref<8x12xf32, #tpu.memory_space<smem>>
    %222 = vector.broadcast %221 : f32 to vector<8x256xf32>
    %223 = arith.mulf %50, %222 : vector<8x256xf32>
    %224 = arith.addf %220, %223 : vector<8x256xf32>
    %c5_111 = arith.constant 5 : index
    %c4_112 = arith.constant 4 : index
    %225 = memref.load %arg10[%c5_111, %c4_112] : memref<8x12xf32, #tpu.memory_space<smem>>
    %226 = vector.broadcast %225 : f32 to vector<8x256xf32>
    %227 = arith.mulf %51, %226 : vector<8x256xf32>
    %228 = arith.addf %224, %227 : vector<8x256xf32>
    %c6_113 = arith.constant 6 : index
    %c4_114 = arith.constant 4 : index
    %229 = memref.load %arg10[%c6_113, %c4_114] : memref<8x12xf32, #tpu.memory_space<smem>>
    %230 = vector.broadcast %229 : f32 to vector<8x256xf32>
    %231 = arith.mulf %52, %230 : vector<8x256xf32>
    %232 = arith.addf %228, %231 : vector<8x256xf32>
    %c7_115 = arith.constant 7 : index
    %c4_116 = arith.constant 4 : index
    %233 = memref.load %arg10[%c7_115, %c4_116] : memref<8x12xf32, #tpu.memory_space<smem>>
    %234 = vector.broadcast %233 : f32 to vector<8x256xf32>
    %235 = arith.mulf %53, %234 : vector<8x256xf32>
    %236 = arith.addf %232, %235 : vector<8x256xf32>
    %c0_117 = arith.constant 0 : index
    %c4_118 = arith.constant 4 : index
    %237 = memref.load %arg11[%c0_117, %c4_118] : memref<1x12xf32, #tpu.memory_space<smem>>
    %238 = vector.broadcast %237 : f32 to vector<8x256xf32>
    %239 = arith.addf %236, %238 : vector<8x256xf32>
    %240 = math.tanh %239 : vector<8x256xf32>
    %c4_119 = arith.constant 4 : index
    %c0_120 = arith.constant 0 : index
    %c0_121 = arith.constant 0 : index
    %241 = vector.load %arg12[%c4_119, %c0_120, %c0_121] : memref<12x8x256xf32, #tpu.memory_space<vmem>>, vector<1x8x256xf32>
    %242 = vector.shape_cast %241 : vector<1x8x256xf32> to vector<8x256xf32>
    %243 = vector.shape_cast %240 : vector<8x256xf32> to vector<1x8x256xf32>
    tpu.vector_store %arg12[%c4_119, %c0_120, %c0_121], %243 {strides = array<i32>} : memref<12x8x256xf32, #tpu.memory_space<vmem>>, vector<1x8x256xf32>,
    %c0_122 = arith.constant 0 : index
    %c5_123 = arith.constant 5 : index
    %244 = memref.load %arg10[%c0_122, %c5_123] : memref<8x12xf32, #tpu.memory_space<smem>>
    %245 = vector.broadcast %244 : f32 to vector<8x256xf32>
    %246 = arith.mulf %46, %245 : vector<8x256xf32>
    %c1_124 = arith.constant 1 : index
    %c5_125 = arith.constant 5 : index
    %247 = memref.load %arg10[%c1_124, %c5_125] : memref<8x12xf32, #tpu.memory_space<smem>>
    %248 = vector.broadcast %247 : f32 to vector<8x256xf32>
    %249 = arith.mulf %47, %248 : vector<8x256xf32>
    %250 = arith.addf %246, %249 : vector<8x256xf32>
    %c2_126 = arith.constant 2 : index
    %c5_127 = arith.constant 5 : index
    %251 = memref.load %arg10[%c2_126, %c5_127] : memref<8x12xf32, #tpu.memory_space<smem>>
    %252 = vector.broadcast %251 : f32 to vector<8x256xf32>
    %253 = arith.mulf %48, %252 : vector<8x256xf32>
    %254 = arith.addf %250, %253 : vector<8x256xf32>
    %c3_128 = arith.constant 3 : index
    %c5_129 = arith.constant 5 : index
    %255 = memref.load %arg10[%c3_128, %c5_129] : memref<8x12xf32, #tpu.memory_space<smem>>
    %256 = vector.broadcast %255 : f32 to vector<8x256xf32>
    %257 = arith.mulf %49, %256 : vector<8x256xf32>
    %258 = arith.addf %254, %257 : vector<8x256xf32>
    %c4_130 = arith.constant 4 : index
    %c5_131 = arith.constant 5 : index
    %259 = memref.load %arg10[%c4_130, %c5_131] : memref<8x12xf32, #tpu.memory_space<smem>>
    %260 = vector.broadcast %259 : f32 to vector<8x256xf32>
    %261 = arith.mulf %50, %260 : vector<8x256xf32>
    %262 = arith.addf %258, %261 : vector<8x256xf32>
    %c5_132 = arith.constant 5 : index
    %c5_133 = arith.constant 5 : index
    %263 = memref.load %arg10[%c5_132, %c5_133] : memref<8x12xf32, #tpu.memory_space<smem>>
    %264 = vector.broadcast %263 : f32 to vector<8x256xf32>
    %265 = arith.mulf %51, %264 : vector<8x256xf32>
    %266 = arith.addf %262, %265 : vector<8x256xf32>
    %c6_134 = arith.constant 6 : index
    %c5_135 = arith.constant 5 : index
    %267 = memref.load %arg10[%c6_134, %c5_135] : memref<8x12xf32, #tpu.memory_space<smem>>
    %268 = vector.broadcast %267 : f32 to vector<8x256xf32>
    %269 = arith.mulf %52, %268 : vector<8x256xf32>
    %270 = arith.addf %266, %269 : vector<8x256xf32>
    %c7_136 = arith.constant 7 : index
    %c5_137 = arith.constant 5 : index
    %271 = memref.load %arg10[%c7_136, %c5_137] : memref<8x12xf32, #tpu.memory_space<smem>>
    %272 = vector.broadcast %271 : f32 to vector<8x256xf32>
    %273 = arith.mulf %53, %272 : vector<8x256xf32>
    %274 = arith.addf %270, %273 : vector<8x256xf32>
    %c0_138 = arith.constant 0 : index
    %c5_139 = arith.constant 5 : index
    %275 = memref.load %arg11[%c0_138, %c5_139] : memref<1x12xf32, #tpu.memory_space<smem>>
    %276 = vector.broadcast %275 : f32 to vector<8x256xf32>
    %277 = arith.addf %274, %276 : vector<8x256xf32>
    %278 = math.tanh %277 : vector<8x256xf32>
    %c5_140 = arith.constant 5 : index
    %c0_141 = arith.constant 0 : index
    %c0_142 = arith.constant 0 : index
    %279 = vector.load %arg12[%c5_140, %c0_141, %c0_142] : memref<12x8x256xf32, #tpu.memory_space<vmem>>, vector<1x8x256xf32>
    %280 = vector.shape_cast %279 : vector<1x8x256xf32> to vector<8x256xf32>
    %281 = vector.shape_cast %278 : vector<8x256xf32> to vector<1x8x256xf32>
    tpu.vector_store %arg12[%c5_140, %c0_141, %c0_142], %281 {strides = array<i32>} : memref<12x8x256xf32, #tpu.memory_space<vmem>>, vector<1x8x256xf32>,
    %c0_143 = arith.constant 0 : index
    %c6_144 = arith.constant 6 : index
    %282 = memref.load %arg10[%c0_143, %c6_144] : memref<8x12xf32, #tpu.memory_space<smem>>
    %283 = vector.broadcast %282 : f32 to vector<8x256xf32>
    %284 = arith.mulf %46, %283 : vector<8x256xf32>
    %c1_145 = arith.constant 1 : index
    %c6_146 = arith.constant 6 : index
    %285 = memref.load %arg10[%c1_145, %c6_146] : memref<8x12xf32, #tpu.memory_space<smem>>
    %286 = vector.broadcast %285 : f32 to vector<8x256xf32>
    %287 = arith.mulf %47, %286 : vector<8x256xf32>
    %288 = arith.addf %284, %287 : vector<8x256xf32>
    %c2_147 = arith.constant 2 : index
    %c6_148 = arith.constant 6 : index
    %289 = memref.load %arg10[%c2_147, %c6_148] : memref<8x12xf32, #tpu.memory_space<smem>>
    %290 = vector.broadcast %289 : f32 to vector<8x256xf32>
    %291 = arith.mulf %48, %290 : vector<8x256xf32>
    %292 = arith.addf %288, %291 : vector<8x256xf32>
    %c3_149 = arith.constant 3 : index
    %c6_150 = arith.constant 6 : index
    %293 = memref.load %arg10[%c3_149, %c6_150] : memref<8x12xf32, #tpu.memory_space<smem>>
    %294 = vector.broadcast %293 : f32 to vector<8x256xf32>
    %295 = arith.mulf %49, %294 : vector<8x256xf32>
    %296 = arith.addf %292, %295 : vector<8x256xf32>
    %c4_151 = arith.constant 4 : index
    %c6_152 = arith.constant 6 : index
    %297 = memref.load %arg10[%c4_151, %c6_152] : memref<8x12xf32, #tpu.memory_space<smem>>
    %298 = vector.broadcast %297 : f32 to vector<8x256xf32>
    %299 = arith.mulf %50, %298 : vector<8x256xf32>
    %300 = arith.addf %296, %299 : vector<8x256xf32>
    %c5_153 = arith.constant 5 : index
    %c6_154 = arith.constant 6 : index
    %301 = memref.load %arg10[%c5_153, %c6_154] : memref<8x12xf32, #tpu.memory_space<smem>>
    %302 = vector.broadcast %301 : f32 to vector<8x256xf32>
    %303 = arith.mulf %51, %302 : vector<8x256xf32>
    %304 = arith.addf %300, %303 : vector<8x256xf32>
    %c6_155 = arith.constant 6 : index
    %c6_156 = arith.constant 6 : index
    %305 = memref.load %arg10[%c6_155, %c6_156] : memref<8x12xf32, #tpu.memory_space<smem>>
    %306 = vector.broadcast %305 : f32 to vector<8x256xf32>
    %307 = arith.mulf %52, %306 : vector<8x256xf32>
    %308 = arith.addf %304, %307 : vector<8x256xf32>
    %c7_157 = arith.constant 7 : index
    %c6_158 = arith.constant 6 : index
    %309 = memref.load %arg10[%c7_157, %c6_158] : memref<8x12xf32, #tpu.memory_space<smem>>
    %310 = vector.broadcast %309 : f32 to vector<8x256xf32>
    %311 = arith.mulf %53, %310 : vector<8x256xf32>
    %312 = arith.addf %308, %311 : vector<8x256xf32>
    %c0_159 = arith.constant 0 : index
    %c6_160 = arith.constant 6 : index
    %313 = memref.load %arg11[%c0_159, %c6_160] : memref<1x12xf32, #tpu.memory_space<smem>>
    %314 = vector.broadcast %313 : f32 to vector<8x256xf32>
    %315 = arith.addf %312, %314 : vector<8x256xf32>
    %316 = math.tanh %315 : vector<8x256xf32>
    %c6_161 = arith.constant 6 : index
    %c0_162 = arith.constant 0 : index
    %c0_163 = arith.constant 0 : index
    %317 = vector.load %arg12[%c6_161, %c0_162, %c0_163] : memref<12x8x256xf32, #tpu.memory_space<vmem>>, vector<1x8x256xf32>
    %318 = vector.shape_cast %317 : vector<1x8x256xf32> to vector<8x256xf32>
    %319 = vector.shape_cast %316 : vector<8x256xf32> to vector<1x8x256xf32>
    tpu.vector_store %arg12[%c6_161, %c0_162, %c0_163], %319 {strides = array<i32>} : memref<12x8x256xf32, #tpu.memory_space<vmem>>, vector<1x8x256xf32>,
    %c0_164 = arith.constant 0 : index
    %c7_165 = arith.constant 7 : index
    %320 = memref.load %arg10[%c0_164, %c7_165] : memref<8x12xf32, #tpu.memory_space<smem>>
    %321 = vector.broadcast %320 : f32 to vector<8x256xf32>
    %322 = arith.mulf %46, %321 : vector<8x256xf32>
    %c1_166 = arith.constant 1 : index
    %c7_167 = arith.constant 7 : index
    %323 = memref.load %arg10[%c1_166, %c7_167] : memref<8x12xf32, #tpu.memory_space<smem>>
    %324 = vector.broadcast %323 : f32 to vector<8x256xf32>
    %325 = arith.mulf %47, %324 : vector<8x256xf32>
    %326 = arith.addf %322, %325 : vector<8x256xf32>
    %c2_168 = arith.constant 2 : index
    %c7_169 = arith.constant 7 : index
    %327 = memref.load %arg10[%c2_168, %c7_169] : memref<8x12xf32, #tpu.memory_space<smem>>
    %328 = vector.broadcast %327 : f32 to vector<8x256xf32>
    %329 = arith.mulf %48, %328 : vector<8x256xf32>
    %330 = arith.addf %326, %329 : vector<8x256xf32>
    %c3_170 = arith.constant 3 : index
    %c7_171 = arith.constant 7 : index
    %331 = memref.load %arg10[%c3_170, %c7_171] : memref<8x12xf32, #tpu.memory_space<smem>>
    %332 = vector.broadcast %331 : f32 to vector<8x256xf32>
    %333 = arith.mulf %49, %332 : vector<8x256xf32>
    %334 = arith.addf %330, %333 : vector<8x256xf32>
    %c4_172 = arith.constant 4 : index
    %c7_173 = arith.constant 7 : index
    %335 = memref.load %arg10[%c4_172, %c7_173] : memref<8x12xf32, #tpu.memory_space<smem>>
    %336 = vector.broadcast %335 : f32 to vector<8x256xf32>
    %337 = arith.mulf %50, %336 : vector<8x256xf32>
    %338 = arith.addf %334, %337 : vector<8x256xf32>
    %c5_174 = arith.constant 5 : index
    %c7_175 = arith.constant 7 : index
    %339 = memref.load %arg10[%c5_174, %c7_175] : memref<8x12xf32, #tpu.memory_space<smem>>
    %340 = vector.broadcast %339 : f32 to vector<8x256xf32>
    %341 = arith.mulf %51, %340 : vector<8x256xf32>
    %342 = arith.addf %338, %341 : vector<8x256xf32>
    %c6_176 = arith.constant 6 : index
    %c7_177 = arith.constant 7 : index
    %343 = memref.load %arg10[%c6_176, %c7_177] : memref<8x12xf32, #tpu.memory_space<smem>>
    %344 = vector.broadcast %343 : f32 to vector<8x256xf32>
    %345 = arith.mulf %52, %344 : vector<8x256xf32>
    %346 = arith.addf %342, %345 : vector<8x256xf32>
    %c7_178 = arith.constant 7 : index
    %c7_179 = arith.constant 7 : index
    %347 = memref.load %arg10[%c7_178, %c7_179] : memref<8x12xf32, #tpu.memory_space<smem>>
    %348 = vector.broadcast %347 : f32 to vector<8x256xf32>
    %349 = arith.mulf %53, %348 : vector<8x256xf32>
    %350 = arith.addf %346, %349 : vector<8x256xf32>
    %c0_180 = arith.constant 0 : index
    %c7_181 = arith.constant 7 : index
    %351 = memref.load %arg11[%c0_180, %c7_181] : memref<1x12xf32, #tpu.memory_space<smem>>
    %352 = vector.broadcast %351 : f32 to vector<8x256xf32>
    %353 = arith.addf %350, %352 : vector<8x256xf32>
    %354 = math.tanh %353 : vector<8x256xf32>
    %c7_182 = arith.constant 7 : index
    %c0_183 = arith.constant 0 : index
    %c0_184 = arith.constant 0 : index
    %355 = vector.load %arg12[%c7_182, %c0_183, %c0_184] : memref<12x8x256xf32, #tpu.memory_space<vmem>>, vector<1x8x256xf32>
    %356 = vector.shape_cast %355 : vector<1x8x256xf32> to vector<8x256xf32>
    %357 = vector.shape_cast %354 : vector<8x256xf32> to vector<1x8x256xf32>
    tpu.vector_store %arg12[%c7_182, %c0_183, %c0_184], %357 {strides = array<i32>} : memref<12x8x256xf32, #tpu.memory_space<vmem>>, vector<1x8x256xf32>,
    %c0_185 = arith.constant 0 : index
    %c8 = arith.constant 8 : index
    %358 = memref.load %arg10[%c0_185, %c8] : memref<8x12xf32, #tpu.memory_space<smem>>
    %359 = vector.broadcast %358 : f32 to vector<8x256xf32>
    %360 = arith.mulf %46, %359 : vector<8x256xf32>
    %c1_186 = arith.constant 1 : index
    %c8_187 = arith.constant 8 : index
    %361 = memref.load %arg10[%c1_186, %c8_187] : memref<8x12xf32, #tpu.memory_space<smem>>
    %362 = vector.broadcast %361 : f32 to vector<8x256xf32>
    %363 = arith.mulf %47, %362 : vector<8x256xf32>
    %364 = arith.addf %360, %363 : vector<8x256xf32>
    %c2_188 = arith.constant 2 : index
    %c8_189 = arith.constant 8 : index
    %365 = memref.load %arg10[%c2_188, %c8_189] : memref<8x12xf32, #tpu.memory_space<smem>>
    %366 = vector.broadcast %365 : f32 to vector<8x256xf32>
    %367 = arith.mulf %48, %366 : vector<8x256xf32>
    %368 = arith.addf %364, %367 : vector<8x256xf32>
    %c3_190 = arith.constant 3 : index
    %c8_191 = arith.constant 8 : index
    %369 = memref.load %arg10[%c3_190, %c8_191] : memref<8x12xf32, #tpu.memory_space<smem>>
    %370 = vector.broadcast %369 : f32 to vector<8x256xf32>
    %371 = arith.mulf %49, %370 : vector<8x256xf32>
    %372 = arith.addf %368, %371 : vector<8x256xf32>
    %c4_192 = arith.constant 4 : index
    %c8_193 = arith.constant 8 : index
    %373 = memref.load %arg10[%c4_192, %c8_193] : memref<8x12xf32, #tpu.memory_space<smem>>
    %374 = vector.broadcast %373 : f32 to vector<8x256xf32>
    %375 = arith.mulf %50, %374 : vector<8x256xf32>
    %376 = arith.addf %372, %375 : vector<8x256xf32>
    %c5_194 = arith.constant 5 : index
    %c8_195 = arith.constant 8 : index
    %377 = memref.load %arg10[%c5_194, %c8_195] : memref<8x12xf32, #tpu.memory_space<smem>>
    %378 = vector.broadcast %377 : f32 to vector<8x256xf32>
    %379 = arith.mulf %51, %378 : vector<8x256xf32>
    %380 = arith.addf %376, %379 : vector<8x256xf32>
    %c6_196 = arith.constant 6 : index
    %c8_197 = arith.constant 8 : index
    %381 = memref.load %arg10[%c6_196, %c8_197] : memref<8x12xf32, #tpu.memory_space<smem>>
    %382 = vector.broadcast %381 : f32 to vector<8x256xf32>
    %383 = arith.mulf %52, %382 : vector<8x256xf32>
    %384 = arith.addf %380, %383 : vector<8x256xf32>
    %c7_198 = arith.constant 7 : index
    %c8_199 = arith.constant 8 : index
    %385 = memref.load %arg10[%c7_198, %c8_199] : memref<8x12xf32, #tpu.memory_space<smem>>
    %386 = vector.broadcast %385 : f32 to vector<8x256xf32>
    %387 = arith.mulf %53, %386 : vector<8x256xf32>
    %388 = arith.addf %384, %387 : vector<8x256xf32>
    %c0_200 = arith.constant 0 : index
    %c8_201 = arith.constant 8 : index
    %389 = memref.load %arg11[%c0_200, %c8_201] : memref<1x12xf32, #tpu.memory_space<smem>>
    %390 = vector.broadcast %389 : f32 to vector<8x256xf32>
    %391 = arith.addf %388, %390 : vector<8x256xf32>
    %392 = math.tanh %391 : vector<8x256xf32>
    %c8_202 = arith.constant 8 : index
    %c0_203 = arith.constant 0 : index
    %c0_204 = arith.constant 0 : index
    %393 = vector.load %arg12[%c8_202, %c0_203, %c0_204] : memref<12x8x256xf32, #tpu.memory_space<vmem>>, vector<1x8x256xf32>
    %394 = vector.shape_cast %393 : vector<1x8x256xf32> to vector<8x256xf32>
    %395 = vector.shape_cast %392 : vector<8x256xf32> to vector<1x8x256xf32>
    tpu.vector_store %arg12[%c8_202, %c0_203, %c0_204], %395 {strides = array<i32>} : memref<12x8x256xf32, #tpu.memory_space<vmem>>, vector<1x8x256xf32>,
    %c0_205 = arith.constant 0 : index
    %c9 = arith.constant 9 : index
    %396 = memref.load %arg10[%c0_205, %c9] : memref<8x12xf32, #tpu.memory_space<smem>>
    %397 = vector.broadcast %396 : f32 to vector<8x256xf32>
    %398 = arith.mulf %46, %397 : vector<8x256xf32>
    %c1_206 = arith.constant 1 : index
    %c9_207 = arith.constant 9 : index
    %399 = memref.load %arg10[%c1_206, %c9_207] : memref<8x12xf32, #tpu.memory_space<smem>>
    %400 = vector.broadcast %399 : f32 to vector<8x256xf32>
    %401 = arith.mulf %47, %400 : vector<8x256xf32>
    %402 = arith.addf %398, %401 : vector<8x256xf32>
    %c2_208 = arith.constant 2 : index
    %c9_209 = arith.constant 9 : index
    %403 = memref.load %arg10[%c2_208, %c9_209] : memref<8x12xf32, #tpu.memory_space<smem>>
    %404 = vector.broadcast %403 : f32 to vector<8x256xf32>
    %405 = arith.mulf %48, %404 : vector<8x256xf32>
    %406 = arith.addf %402, %405 : vector<8x256xf32>
    %c3_210 = arith.constant 3 : index
    %c9_211 = arith.constant 9 : index
    %407 = memref.load %arg10[%c3_210, %c9_211] : memref<8x12xf32, #tpu.memory_space<smem>>
    %408 = vector.broadcast %407 : f32 to vector<8x256xf32>
    %409 = arith.mulf %49, %408 : vector<8x256xf32>
    %410 = arith.addf %406, %409 : vector<8x256xf32>
    %c4_212 = arith.constant 4 : index
    %c9_213 = arith.constant 9 : index
    %411 = memref.load %arg10[%c4_212, %c9_213] : memref<8x12xf32, #tpu.memory_space<smem>>
    %412 = vector.broadcast %411 : f32 to vector<8x256xf32>
    %413 = arith.mulf %50, %412 : vector<8x256xf32>
    %414 = arith.addf %410, %413 : vector<8x256xf32>
    %c5_214 = arith.constant 5 : index
    %c9_215 = arith.constant 9 : index
    %415 = memref.load %arg10[%c5_214, %c9_215] : memref<8x12xf32, #tpu.memory_space<smem>>
    %416 = vector.broadcast %415 : f32 to vector<8x256xf32>
    %417 = arith.mulf %51, %416 : vector<8x256xf32>
    %418 = arith.addf %414, %417 : vector<8x256xf32>
    %c6_216 = arith.constant 6 : index
    %c9_217 = arith.constant 9 : index
    %419 = memref.load %arg10[%c6_216, %c9_217] : memref<8x12xf32, #tpu.memory_space<smem>>
    %420 = vector.broadcast %419 : f32 to vector<8x256xf32>
    %421 = arith.mulf %52, %420 : vector<8x256xf32>
    %422 = arith.addf %418, %421 : vector<8x256xf32>
    %c7_218 = arith.constant 7 : index
    %c9_219 = arith.constant 9 : index
    %423 = memref.load %arg10[%c7_218, %c9_219] : memref<8x12xf32, #tpu.memory_space<smem>>
    %424 = vector.broadcast %423 : f32 to vector<8x256xf32>
    %425 = arith.mulf %53, %424 : vector<8x256xf32>
    %426 = arith.addf %422, %425 : vector<8x256xf32>
    %c0_220 = arith.constant 0 : index
    %c9_221 = arith.constant 9 : index
    %427 = memref.load %arg11[%c0_220, %c9_221] : memref<1x12xf32, #tpu.memory_space<smem>>
    %428 = vector.broadcast %427 : f32 to vector<8x256xf32>
    %429 = arith.addf %426, %428 : vector<8x256xf32>
    %430 = math.tanh %429 : vector<8x256xf32>
    %c9_222 = arith.constant 9 : index
    %c0_223 = arith.constant 0 : index
    %c0_224 = arith.constant 0 : index
    %431 = vector.load %arg12[%c9_222, %c0_223, %c0_224] : memref<12x8x256xf32, #tpu.memory_space<vmem>>, vector<1x8x256xf32>
    %432 = vector.shape_cast %431 : vector<1x8x256xf32> to vector<8x256xf32>
    %433 = vector.shape_cast %430 : vector<8x256xf32> to vector<1x8x256xf32>
    tpu.vector_store %arg12[%c9_222, %c0_223, %c0_224], %433 {strides = array<i32>} : memref<12x8x256xf32, #tpu.memory_space<vmem>>, vector<1x8x256xf32>,
    %c0_225 = arith.constant 0 : index
    %c10 = arith.constant 10 : index
    %434 = memref.load %arg10[%c0_225, %c10] : memref<8x12xf32, #tpu.memory_space<smem>>
    %435 = vector.broadcast %434 : f32 to vector<8x256xf32>
    %436 = arith.mulf %46, %435 : vector<8x256xf32>
    %c1_226 = arith.constant 1 : index
    %c10_227 = arith.constant 10 : index
    %437 = memref.load %arg10[%c1_226, %c10_227] : memref<8x12xf32, #tpu.memory_space<smem>>
    %438 = vector.broadcast %437 : f32 to vector<8x256xf32>
    %439 = arith.mulf %47, %438 : vector<8x256xf32>
    %440 = arith.addf %436, %439 : vector<8x256xf32>
    %c2_228 = arith.constant 2 : index
    %c10_229 = arith.constant 10 : index
    %441 = memref.load %arg10[%c2_228, %c10_229] : memref<8x12xf32, #tpu.memory_space<smem>>
    %442 = vector.broadcast %441 : f32 to vector<8x256xf32>
    %443 = arith.mulf %48, %442 : vector<8x256xf32>
    %444 = arith.addf %440, %443 : vector<8x256xf32>
    %c3_230 = arith.constant 3 : index
    %c10_231 = arith.constant 10 : index
    %445 = memref.load %arg10[%c3_230, %c10_231] : memref<8x12xf32, #tpu.memory_space<smem>>
    %446 = vector.broadcast %445 : f32 to vector<8x256xf32>
    %447 = arith.mulf %49, %446 : vector<8x256xf32>
    %448 = arith.addf %444, %447 : vector<8x256xf32>
    %c4_232 = arith.constant 4 : index
    %c10_233 = arith.constant 10 : index
    %449 = memref.load %arg10[%c4_232, %c10_233] : memref<8x12xf32, #tpu.memory_space<smem>>
    %450 = vector.broadcast %449 : f32 to vector<8x256xf32>
    %451 = arith.mulf %50, %450 : vector<8x256xf32>
    %452 = arith.addf %448, %451 : vector<8x256xf32>
    %c5_234 = arith.constant 5 : index
    %c10_235 = arith.constant 10 : index
    %453 = memref.load %arg10[%c5_234, %c10_235] : memref<8x12xf32, #tpu.memory_space<smem>>
    %454 = vector.broadcast %453 : f32 to vector<8x256xf32>
    %455 = arith.mulf %51, %454 : vector<8x256xf32>
    %456 = arith.addf %452, %455 : vector<8x256xf32>
    %c6_236 = arith.constant 6 : index
    %c10_237 = arith.constant 10 : index
    %457 = memref.load %arg10[%c6_236, %c10_237] : memref<8x12xf32, #tpu.memory_space<smem>>
    %458 = vector.broadcast %457 : f32 to vector<8x256xf32>
    %459 = arith.mulf %52, %458 : vector<8x256xf32>
    %460 = arith.addf %456, %459 : vector<8x256xf32>
    %c7_238 = arith.constant 7 : index
    %c10_239 = arith.constant 10 : index
    %461 = memref.load %arg10[%c7_238, %c10_239] : memref<8x12xf32, #tpu.memory_space<smem>>
    %462 = vector.broadcast %461 : f32 to vector<8x256xf32>
    %463 = arith.mulf %53, %462 : vector<8x256xf32>
    %464 = arith.addf %460, %463 : vector<8x256xf32>
    %c0_240 = arith.constant 0 : index
    %c10_241 = arith.constant 10 : index
    %465 = memref.load %arg11[%c0_240, %c10_241] : memref<1x12xf32, #tpu.memory_space<smem>>
    %466 = vector.broadcast %465 : f32 to vector<8x256xf32>
    %467 = arith.addf %464, %466 : vector<8x256xf32>
    %468 = math.tanh %467 : vector<8x256xf32>
    %c10_242 = arith.constant 10 : index
    %c0_243 = arith.constant 0 : index
    %c0_244 = arith.constant 0 : index
    %469 = vector.load %arg12[%c10_242, %c0_243, %c0_244] : memref<12x8x256xf32, #tpu.memory_space<vmem>>, vector<1x8x256xf32>
    %470 = vector.shape_cast %469 : vector<1x8x256xf32> to vector<8x256xf32>
    %471 = vector.shape_cast %468 : vector<8x256xf32> to vector<1x8x256xf32>
    tpu.vector_store %arg12[%c10_242, %c0_243, %c0_244], %471 {strides = array<i32>} : memref<12x8x256xf32, #tpu.memory_space<vmem>>, vector<1x8x256xf32>,
    %c0_245 = arith.constant 0 : index
    %c11 = arith.constant 11 : index
    %472 = memref.load %arg10[%c0_245, %c11] : memref<8x12xf32, #tpu.memory_space<smem>>
    %473 = vector.broadcast %472 : f32 to vector<8x256xf32>
    %474 = arith.mulf %46, %473 : vector<8x256xf32>
    %c1_246 = arith.constant 1 : index
    %c11_247 = arith.constant 11 : index
    %475 = memref.load %arg10[%c1_246, %c11_247] : memref<8x12xf32, #tpu.memory_space<smem>>
    %476 = vector.broadcast %475 : f32 to vector<8x256xf32>
    %477 = arith.mulf %47, %476 : vector<8x256xf32>
    %478 = arith.addf %474, %477 : vector<8x256xf32>
    %c2_248 = arith.constant 2 : index
    %c11_249 = arith.constant 11 : index
    %479 = memref.load %arg10[%c2_248, %c11_249] : memref<8x12xf32, #tpu.memory_space<smem>>
    %480 = vector.broadcast %479 : f32 to vector<8x256xf32>
    %481 = arith.mulf %48, %480 : vector<8x256xf32>
    %482 = arith.addf %478, %481 : vector<8x256xf32>
    %c3_250 = arith.constant 3 : index
    %c11_251 = arith.constant 11 : index
    %483 = memref.load %arg10[%c3_250, %c11_251] : memref<8x12xf32, #tpu.memory_space<smem>>
    %484 = vector.broadcast %483 : f32 to vector<8x256xf32>
    %485 = arith.mulf %49, %484 : vector<8x256xf32>
    %486 = arith.addf %482, %485 : vector<8x256xf32>
    %c4_252 = arith.constant 4 : index
    %c11_253 = arith.constant 11 : index
    %487 = memref.load %arg10[%c4_252, %c11_253] : memref<8x12xf32, #tpu.memory_space<smem>>
    %488 = vector.broadcast %487 : f32 to vector<8x256xf32>
    %489 = arith.mulf %50, %488 : vector<8x256xf32>
    %490 = arith.addf %486, %489 : vector<8x256xf32>
    %c5_254 = arith.constant 5 : index
    %c11_255 = arith.constant 11 : index
    %491 = memref.load %arg10[%c5_254, %c11_255] : memref<8x12xf32, #tpu.memory_space<smem>>
    %492 = vector.broadcast %491 : f32 to vector<8x256xf32>
    %493 = arith.mulf %51, %492 : vector<8x256xf32>
    %494 = arith.addf %490, %493 : vector<8x256xf32>
    %c6_256 = arith.constant 6 : index
    %c11_257 = arith.constant 11 : index
    %495 = memref.load %arg10[%c6_256, %c11_257] : memref<8x12xf32, #tpu.memory_space<smem>>
    %496 = vector.broadcast %495 : f32 to vector<8x256xf32>
    %497 = arith.mulf %52, %496 : vector<8x256xf32>
    %498 = arith.addf %494, %497 : vector<8x256xf32>
    %c7_258 = arith.constant 7 : index
    %c11_259 = arith.constant 11 : index
    %499 = memref.load %arg10[%c7_258, %c11_259] : memref<8x12xf32, #tpu.memory_space<smem>>
    %500 = vector.broadcast %499 : f32 to vector<8x256xf32>
    %501 = arith.mulf %53, %500 : vector<8x256xf32>
    %502 = arith.addf %498, %501 : vector<8x256xf32>
    %c0_260 = arith.constant 0 : index
    %c11_261 = arith.constant 11 : index
    %503 = memref.load %arg11[%c0_260, %c11_261] : memref<1x12xf32, #tpu.memory_space<smem>>
    %504 = vector.broadcast %503 : f32 to vector<8x256xf32>
    %505 = arith.addf %502, %504 : vector<8x256xf32>
    %506 = math.tanh %505 : vector<8x256xf32>
    %c11_262 = arith.constant 11 : index
    %c0_263 = arith.constant 0 : index
    %c0_264 = arith.constant 0 : index
    %507 = vector.load %arg12[%c11_262, %c0_263, %c0_264] : memref<12x8x256xf32, #tpu.memory_space<vmem>>, vector<1x8x256xf32>
    %508 = vector.shape_cast %507 : vector<1x8x256xf32> to vector<8x256xf32>
    %509 = vector.shape_cast %506 : vector<8x256xf32> to vector<1x8x256xf32>
    tpu.vector_store %arg12[%c11_262, %c0_263, %c0_264], %509 {strides = array<i32>} : memref<12x8x256xf32, #tpu.memory_space<vmem>>, vector<1x8x256xf32>,
    return
  }
  func.func @transform_0(%arg0: i32) -> (i32, i32) {
    %c0_i32 = arith.constant 0 : i32
    %c0_i32_0 = arith.constant 0 : i32
    return %arg0, %c0_i32 : i32, i32
  }
  func.func @transform_1(%arg0: i32) -> (i32, i32) {
    %c0_i32 = arith.constant 0 : i32
    %c0_i32_0 = arith.constant 0 : i32
    %c0_i32_1 = arith.constant 0 : i32
    return %c0_i32, %c0_i32_0 : i32, i32
  }
  func.func @transform_2(%arg0: i32) -> (i32, i32) {
    %c0_i32 = arith.constant 0 : i32
    %c0_i32_0 = arith.constant 0 : i32
    %c0_i32_1 = arith.constant 0 : i32
    return %c0_i32, %c0_i32_0 : i32, i32
  }
  func.func @transform_3(%arg0: i32) -> (i32, i32) {
    %c0_i32 = arith.constant 0 : i32
    %c0_i32_0 = arith.constant 0 : i32
    %c0_i32_1 = arith.constant 0 : i32
    return %c0_i32, %c0_i32_0 : i32, i32
  }
  func.func @transform_4(%arg0: i32) -> (i32, i32) {
    %c0_i32 = arith.constant 0 : i32
    %c0_i32_0 = arith.constant 0 : i32
    %c0_i32_1 = arith.constant 0 : i32
    return %c0_i32, %c0_i32_0 : i32, i32
  }
  func.func @transform_5(%arg0: i32) -> (i32, i32) {
    %c0_i32 = arith.constant 0 : i32
    %c0_i32_0 = arith.constant 0 : i32
    %c0_i32_1 = arith.constant 0 : i32
    return %c0_i32, %c0_i32_0 : i32, i32
  }
  func.func @transform_6(%arg0: i32) -> (i32, i32) {
    %c0_i32 = arith.constant 0 : i32
    %c0_i32_0 = arith.constant 0 : i32
    %c0_i32_1 = arith.constant 0 : i32
    return %c0_i32, %c0_i32_0 : i32, i32
  }
  func.func @transform_7(%arg0: i32) -> (i32, i32) {
    %c0_i32 = arith.constant 0 : i32
    %c0_i32_0 = arith.constant 0 : i32
    %c0_i32_1 = arith.constant 0 : i32
    return %c0_i32, %c0_i32_0 : i32, i32
  }
  func.func @transform_8(%arg0: i32) -> (i32, i32) {
    %c0_i32 = arith.constant 0 : i32
    %c0_i32_0 = arith.constant 0 : i32
    %c0_i32_1 = arith.constant 0 : i32
    return %c0_i32, %c0_i32_0 : i32, i32
  }
  func.func @transform_9(%arg0: i32) -> (i32, i32) {
    %c0_i32 = arith.constant 0 : i32
    %c0_i32_0 = arith.constant 0 : i32
    %c0_i32_1 = arith.constant 0 : i32
    return %c0_i32, %c0_i32_0 : i32, i32
  }
  func.func @transform_10(%arg0: i32) -> (i32, i32) {
    %c0_i32 = arith.constant 0 : i32
    %c0_i32_0 = arith.constant 0 : i32
    %c0_i32_1 = arith.constant 0 : i32
    return %c0_i32, %c0_i32_0 : i32, i32
  }
  func.func @transform_11(%arg0: i32) -> (i32, i32, i32) {
    %c0_i32 = arith.constant 0 : i32
    %c0_i32_0 = arith.constant 0 : i32
    %c0_i32_1 = arith.constant 0 : i32
    return %c0_i32, %arg0, %c0_i32_0 : i32, i32, i32
  }
}

</mosaic_0001>

<llo_original>
// kernel: autoencoder_forward.1
$region0: #{autoencoder_forward.1}
  #allocation0 [shape = 'u32[]', space=smem, size = 0x4, offset = 0x4, fixed_abs, tag = 'smem constant byte address 0x4 - core index']
  #allocation1 [shape = 'u32[144,128]{1,0:T(1,128)}', space=vmem, size = 0x12000, scoped, tag = 'internal scratch']
  %s0 = inlined_call_operand.vmem [shape: bf16[8,768], index: 0, kind: input, shape index: {}]
  %s1 = inlined_call_operand.hbm [shape: bf16[768,1024], index: 1, kind: input, shape index: {}]
  %s2 = inlined_call_operand.hbm [shape: f32[1,256], index: 2, kind: input, shape index: {}]
  %s3 = inlined_call_operand.hbm [shape: bf16[256,512], index: 3, kind: input, shape index: {}]
  %s4 = inlined_call_operand.hbm [shape: f32[1,128], index: 4, kind: input, shape index: {}]
  %s5 = inlined_call_operand.hbm [shape: bf16[128,256], index: 5, kind: input, shape index: {}]
  %s6 = inlined_call_operand.hbm [shape: f32[1,256], index: 6, kind: input, shape index: {}]
  %s7 = inlined_call_operand.hbm [shape: bf16[256,2048], index: 7, kind: input, shape index: {}]
  %s8 = inlined_call_operand.hbm [shape: f32[1,2048], index: 8, kind: input, shape index: {}]
  %s9 = inlined_call_operand.hbm [shape: f32[8,12], index: 9, kind: input, shape index: {}]
  %s10 = inlined_call_operand.hbm [shape: f32[1,12], index: 10, kind: input, shape index: {}]
  %s11 = inlined_call_operand.vmem [shape: f32[12,8,256], index: 11, kind: output, shape index: {}]
  %s12 = sld [smem:[#allocation0]]
  $region94: #{autoencoder_forward.1} parent=0
    _
  %s14 = ssub.s32 1, %s12
  %s15 = scalar_select 0, %s14, %s12
  $region1: #{autoencoder_forward.1} parent=0
    #allocation2 [shape = 'u8[1572864]{0}', space=vmem, size = 0x180000, scoped, tag = 'input window, operand 1, single buffered']
    #allocation3 [shape = 's32[1]{0}', space=sflag, size = 0x4, scoped, tag = 'scoped memory for autoencoder_forward.1']
    #allocation4 [shape = 's32[1]{0}', space=sflag, size = 0x4, scoped, tag = 'scoped memory for autoencoder_forward.1']
    #allocation5 [shape = 'u8[1024]{0}', space=vmem, size = 0x400, scoped, tag = 'input window, operand 2, single buffered']
    #allocation6 [shape = 's32[1]{0}', space=sflag, size = 0x4, scoped, tag = 'scoped memory for autoencoder_forward.1']
    #allocation7 [shape = 'u8[262144]{0}', space=vmem, size = 0x40000, scoped, tag = 'input window, operand 3, single buffered']
    #allocation8 [shape = 'u8[512]{0}', space=vmem, size = 0x400, scoped, tag = 'input window, operand 4, single buffered']
    #allocation9 [shape = 's32[1]{0}', space=sflag, size = 0x4, scoped, tag = 'scoped memory for autoencoder_forward.1']
    #allocation10 [shape = 'u8[65536]{0}', space=vmem, size = 0x10000, scoped, tag = 'input window, operand 5, single buffered']
    #allocation11 [shape = 'u8[1024]{0}', space=vmem, size = 0x400, scoped, tag = 'input window, operand 6, single buffered']
    #allocation12 [shape = 's32[1]{0}', space=sflag, size = 0x4, scoped, tag = 'scoped memory for autoencoder_forward.1']
    #allocation13 [shape = 'u8[1048576]{0}', space=vmem, size = 0x100000, scoped, tag = 'input window, operand 7, single buffered']
    #allocation14 [shape = 'u8[8192]{0}', space=vmem, size = 0x2000, scoped, tag = 'input window, operand 8, single buffered']
    #allocation15 [shape = 's32[1]{0}', space=sflag, size = 0x4, scoped, tag = 'scoped memory for autoencoder_forward.1']
    #allocation16 [shape = 'u8[4096]{0}', space=smem, size = 0x1000, scoped, tag = 'input window, operand 9, single buffered']
    #allocation17 [shape = 'u8[512]{0}', space=smem, size = 0x200, scoped, tag = 'input window, operand 10, single buffered']
    #allocation18 [shape = 's32[1]{0}', space=sflag, size = 0x4, scoped, tag = 'scoped memory for autoencoder_forward.1']
    %16 = vsyncpa [#allocation3], 0
    %17 = vsyncpa [#allocation6], 0
    %18 = vsyncpa [#allocation9], 0
    %19 = vsyncpa [#allocation12], 0
    %20 = vsyncpa [#allocation15], 0
    %21 = vsyncpa [#allocation4], 0
    %22 = vsyncpa [#allocation18], 0
    // Predicated region
    $region2: #{autoencoder_forward.1} parent=1 // pred_check
      _
    $region3: #{autoencoder_forward.1} parent=1 // pred_check_branch
      %24 = sbr.rel (0) target = $region5
    $region4: #{autoencoder_forward.1} parent=1 // pred_region
      _
    $region5: #{autoencoder_forward.1} parent=1 // pred_fallthru
      _
    // Predicated region
    $region6: #{autoencoder_forward.1} parent=1 // pred_check
      _
    $region7: #{autoencoder_forward.1} parent=1 // pred_check_branch
      %26 = sbr.rel (0) target = $region9
    $region8: #{autoencoder_forward.1} parent=1 // pred_region
      %s28 = ssub.s32 49152, 49152
      %29 = vsyncadd [#allocation3], %s28
      %s30 = sshll.u32 [#allocation2], 4
      %s31 = int_to_ptr.vmem [resolvable:$true] %s30
      %36 = dma.hbm_to_vmem [thread:$0]  %s1, 49152, %s31, [#allocation3], 512, 512, 32
    $region9: #{autoencoder_forward.1} parent=1 // pred_fallthru
      _
    // Predicated region
    $region10: #{autoencoder_forward.1} parent=1 // pred_check
      _
    $region11: #{autoencoder_forward.1} parent=1 // pred_check_branch
      %38 = sbr.rel (0) target = $region13
    $region12: #{autoencoder_forward.1} parent=1 // pred_region
      %s40 = ssub.s32 32, 32
      %41 = vsyncadd [#allocation6], %s40
      %s43 = sshll.u32 [#allocation5], 4
      %s44 = int_to_ptr.vmem [resolvable:$true] %s43
      %46 = dma.hbm_to_vmem [thread:$0]  %s2, 32, %s44, [#allocation6]
    $region13: #{autoencoder_forward.1} parent=1 // pred_fallthru
      _
    // Predicated region
    $region14: #{autoencoder_forward.1} parent=1 // pred_check
      _
    $region15: #{autoencoder_forward.1} parent=1 // pred_check_branch
      %48 = sbr.rel (0) target = $region17
    $region16: #{autoencoder_forward.1} parent=1 // pred_region
      %s50 = ssub.s32 8192, 8192
      %51 = vsyncadd [#allocation6], %s50
      %s52 = sshll.u32 [#allocation7], 4
      %s53 = int_to_ptr.vmem [resolvable:$true] %s52
      %58 = dma.hbm_to_vmem [thread:$0]  %s3, 8192, %s53, [#allocation6], 256, 256, 16
    $region17: #{autoencoder_forward.1} parent=1 // pred_fallthru
      _
    // Predicated region
    $region18: #{autoencoder_forward.1} parent=1 // pred_check
      _
    $region19: #{autoencoder_forward.1} parent=1 // pred_check_branch
      %60 = sbr.rel (0) target = $region21
    $region20: #{autoencoder_forward.1} parent=1 // pred_region
      %s62 = ssub.s32 16, 16
      %63 = vsyncadd [#allocation9], %s62
      %s65 = sshll.u32 [#allocation8], 4
      %s66 = int_to_ptr.vmem [resolvable:$true] %s65
      %68 = dma.hbm_to_vmem [thread:$0]  %s4, 16, %s66, [#allocation9]
    $region21: #{autoencoder_forward.1} parent=1 // pred_fallthru
      _
    // Predicated region
    $region22: #{autoencoder_forward.1} parent=1 // pred_check
      _
    $region23: #{autoencoder_forward.1} parent=1 // pred_check_branch
      %70 = sbr.rel (0) target = $region25
    $region24: #{autoencoder_forward.1} parent=1 // pred_region
      %s72 = ssub.s32 2048, 2048
      %73 = vsyncadd [#allocation9], %s72
      %s74 = sshll.u32 [#allocation10], 4
      %s75 = int_to_ptr.vmem [resolvable:$true] %s74
      %80 = dma.hbm_to_vmem [thread:$0]  %s5, 2048, %s75, [#allocation9], 128, 128, 8
    $region25: #{autoencoder_forward.1} parent=1 // pred_fallthru
      _
    // Predicated region
    $region26: #{autoencoder_forward.1} parent=1 // pred_check
      _
    $region27: #{autoencoder_forward.1} parent=1 // pred_check_branch
      %82 = sbr.rel (0) target = $region29
    $region28: #{autoencoder_forward.1} parent=1 // pred_region
      %s84 = ssub.s32 32, 32
      %85 = vsyncadd [#allocation12], %s84
      %s87 = sshll.u32 [#allocation11], 4
      %s88 = int_to_ptr.vmem [resolvable:$true] %s87
      %90 = dma.hbm_to_vmem [thread:$0]  %s6, 32, %s88, [#allocation12]
    $region29: #{autoencoder_forward.1} parent=1 // pred_fallthru
      _
    // Predicated region
    $region30: #{autoencoder_forward.1} parent=1 // pred_check
      _
    $region31: #{autoencoder_forward.1} parent=1 // pred_check_branch
      %92 = sbr.rel (0) target = $region33
    $region32: #{autoencoder_forward.1} parent=1 // pred_region
      %s94 = ssub.s32 32768, 32768
      %95 = vsyncadd [#allocation12], %s94
      %s96 = sshll.u32 [#allocation13], 4
      %s97 = int_to_ptr.vmem [resolvable:$true] %s96
      %102 = dma.hbm_to_vmem [thread:$0]  %s7, 32768, %s97, [#allocation12], 1024, 1024, 64
    $region33: #{autoencoder_forward.1} parent=1 // pred_fallthru
      _
    // Predicated region
    $region34: #{autoencoder_forward.1} parent=1 // pred_check
      _
    $region35: #{autoencoder_forward.1} parent=1 // pred_check_branch
      %104 = sbr.rel (0) target = $region37
    $region36: #{autoencoder_forward.1} parent=1 // pred_region
      %s106 = ssub.s32 256, 256
      %107 = vsyncadd [#allocation15], %s106
      %s109 = sshll.u32 [#allocation14], 4
      %s110 = int_to_ptr.vmem [resolvable:$true] %s109
      %112 = dma.hbm_to_vmem [thread:$0]  %s8, 256, %s110, [#allocation15]
    $region37: #{autoencoder_forward.1} parent=1 // pred_fallthru
      _
    // Predicated region
    $region38: #{autoencoder_forward.1} parent=1 // pred_check
      _
    $region39: #{autoencoder_forward.1} parent=1 // pred_check_branch
      %114 = sbr.rel (0) target = $region41
    $region40: #{autoencoder_forward.1} parent=1 // pred_region
      %s116 = ssub.s32 128, 128
      %117 = vsyncadd [#allocation4], %s116
      %120 = dma.hbm_to_smem %s9, 128, [#allocation16], [#allocation4]
    $region41: #{autoencoder_forward.1} parent=1 // pred_fallthru
      _
    // Predicated region
    $region42: #{autoencoder_forward.1} parent=1 // pred_check
      _
    $region43: #{autoencoder_forward.1} parent=1 // pred_check_branch
      %122 = sbr.rel (0) target = $region45
    $region44: #{autoencoder_forward.1} parent=1 // pred_region
      %s124 = ssub.s32 16, 16
      %125 = vsyncadd [#allocation18], %s124
      %128 = dma.hbm_to_smem %s10, 16, [#allocation17], [#allocation18]
    $region45: #{autoencoder_forward.1} parent=1 // pred_fallthru
      _
    // Predicated region
    $region46: #{autoencoder_forward.1} parent=1 // pred_check
      _
    $region47: #{autoencoder_forward.1} parent=1 // pred_check_branch
      %130 = sbr.rel (0) target = $region49
    $region48: #{autoencoder_forward.1} parent=1 // pred_region
      %131 = dma.done [#allocation3], 49152
    $region49: #{autoencoder_forward.1} parent=1 // pred_fallthru
      _
    // Predicated region
    $region50: #{autoencoder_forward.1} parent=1 // pred_check
      _
    $region51: #{autoencoder_forward.1} parent=1 // pred_check_branch
      %133 = sbr.rel (0) target = $region53
    $region52: #{autoencoder_forward.1} parent=1 // pred_region
      %134 = dma.done [#allocation6], 32
    $region53: #{autoencoder_forward.1} parent=1 // pred_fallthru
      _
    // Predicated region
    $region54: #{autoencoder_forward.1} parent=1 // pred_check
      _
    $region55: #{autoencoder_forward.1} parent=1 // pred_check_branch
      %136 = sbr.rel (0) target = $region57
    $region56: #{autoencoder_forward.1} parent=1 // pred_region
      %137 = dma.done [#allocation6], 8192
    $region57: #{autoencoder_forward.1} parent=1 // pred_fallthru
      _
    // Predicated region
    $region58: #{autoencoder_forward.1} parent=1 // pred_check
      _
    $region59: #{autoencoder_forward.1} parent=1 // pred_check_branch
      %139 = sbr.rel (0) target = $region61
    $region60: #{autoencoder_forward.1} parent=1 // pred_region
      %140 = dma.done [#allocation9], 16
    $region61: #{autoencoder_forward.1} parent=1 // pred_fallthru
      _
    // Predicated region
    $region62: #{autoencoder_forward.1} parent=1 // pred_check
      _
    $region63: #{autoencoder_forward.1} parent=1 // pred_check_branch
      %142 = sbr.rel (0) target = $region65
    $region64: #{autoencoder_forward.1} parent=1 // pred_region
      %143 = dma.done [#allocation9], 2048
    $region65: #{autoencoder_forward.1} parent=1 // pred_fallthru
      _
    // Predicated region
    $region66: #{autoencoder_forward.1} parent=1 // pred_check
      _
    $region67: #{autoencoder_forward.1} parent=1 // pred_check_branch
      %145 = sbr.rel (0) target = $region69
    $region68: #{autoencoder_forward.1} parent=1 // pred_region
      %146 = dma.done [#allocation12], 32
    $region69: #{autoencoder_forward.1} parent=1 // pred_fallthru
      _
    // Predicated region
    $region70: #{autoencoder_forward.1} parent=1 // pred_check
      _
    $region71: #{autoencoder_forward.1} parent=1 // pred_check_branch
      %148 = sbr.rel (0) target = $region73
    $region72: #{autoencoder_forward.1} parent=1 // pred_region
      %149 = dma.done [#allocation12], 32768
    $region73: #{autoencoder_forward.1} parent=1 // pred_fallthru
      _
    // Predicated region
    $region74: #{autoencoder_forward.1} parent=1 // pred_check
      _
    $region75: #{autoencoder_forward.1} parent=1 // pred_check_branch
      %151 = sbr.rel (0) target = $region77
    $region76: #{autoencoder_forward.1} parent=1 // pred_region
      %152 = dma.done [#allocation15], 256
    $region77: #{autoencoder_forward.1} parent=1 // pred_fallthru
      _
    // Predicated region
    $region78: #{autoencoder_forward.1} parent=1 // pred_check
      _
    $region79: #{autoencoder_forward.1} parent=1 // pred_check_branch
      %154 = sbr.rel (0) target = $region81
    $region80: #{autoencoder_forward.1} parent=1 // pred_region
      %155 = dma.done [#allocation4], 128
    $region81: #{autoencoder_forward.1} parent=1 // pred_fallthru
      _
    // Predicated region
    $region82: #{autoencoder_forward.1} parent=1 // pred_check
      _
    $region83: #{autoencoder_forward.1} parent=1 // pred_check_branch
      %157 = sbr.rel (0) target = $region85
    $region84: #{autoencoder_forward.1} parent=1 // pred_region
      %158 = dma.done [#allocation18], 16
    $region85: #{autoencoder_forward.1} parent=1 // pred_fallthru
      _
    %159 = sfence
    %v161 = vld [vmem:[%s0] sm:$0xff]
    %v162 = vld [vmem:[%s0 + $0x8] sm:$0xff]
    %v163 = vld [vmem:[%s0 + $0x10] sm:$0xff]
    %v164 = vld [vmem:[#allocation2] sm:$0xff]
    %v165 = vld [vmem:[#allocation2 + $0x8] sm:$0xff]
    %v166 = vld [vmem:[#allocation2 + $0x10] sm:$0xff]
    %v167 = vld [vmem:[#allocation2 + $0x18] sm:$0xff]
    %v168 = vld [vmem:[#allocation2 + $0x20] sm:$0xff]
    %v169 = vld [vmem:[#allocation2 + $0x28] sm:$0xff]
    %v170 = vld [vmem:[#allocation2 + $0x30] sm:$0xff]
    %v171 = vld [vmem:[#allocation2 + $0x38] sm:$0xff]
    %v172 = vld [vmem:[#allocation2 + $0x40] sm:$0xff]
    %v173 = vld [vmem:[#allocation2 + $0x48] sm:$0xff]
    %v174 = vld [vmem:[#allocation2 + $0x50] sm:$0xff]
    %v175 = vld [vmem:[#allocation2 + $0x58] sm:$0xff]
    %v176 = vld [vmem:[#allocation2 + $0x60] sm:$0xff]
    %v177 = vld [vmem:[#allocation2 + $0x68] sm:$0xff]
    %v178 = vld [vmem:[#allocation2 + $0x70] sm:$0xff]
    %v179 = vld [vmem:[#allocation2 + $0x78] sm:$0xff]
    %v180 = vld [vmem:[#allocation2 + $0x80] sm:$0xff]
    %v181 = vld [vmem:[#allocation2 + $0x88] sm:$0xff]
    %v182 = vld [vmem:[#allocation2 + $0x90] sm:$0xff]
    %v183 = vld [vmem:[#allocation2 + $0x98] sm:$0xff]
    %v184 = vld [vmem:[#allocation2 + $0xa0] sm:$0xff]
    %v185 = vld [vmem:[#allocation2 + $0xa8] sm:$0xff]
    %v186 = vld [vmem:[#allocation2 + $0xb0] sm:$0xff]
    %v187 = vld [vmem:[#allocation2 + $0xb8] sm:$0xff]
    %v188 = vld [vmem:[#allocation2 + $0xc0] sm:$0xff]
    %v189 = vld [vmem:[#allocation2 + $0xc8] sm:$0xff]
    %v190 = vld [vmem:[#allocation2 + $0xd0] sm:$0xff]
    %v191 = vld [vmem:[#allocation2 + $0xd8] sm:$0xff]
    %v192 = vld [vmem:[#allocation2 + $0xe0] sm:$0xff]
    %v193 = vld [vmem:[#allocation2 + $0xe8] sm:$0xff]
    %v194 = vld [vmem:[#allocation2 + $0xf0] sm:$0xff]
    %v195 = vld [vmem:[#allocation2 + $0xf8] sm:$0xff]
    %v196 = vld [vmem:[#allocation2 + $0x100] sm:$0xff]
    %v197 = vld [vmem:[#allocation2 + $0x108] sm:$0xff]
    %v198 = vld [vmem:[#allocation2 + $0x110] sm:$0xff]
    %v199 = vld [vmem:[#allocation2 + $0x118] sm:$0xff]
    %v200 = vld [vmem:[#allocation2 + $0x120] sm:$0xff]
    %v201 = vld [vmem:[#allocation2 + $0x128] sm:$0xff]
    %v202 = vld [vmem:[#allocation2 + $0x130] sm:$0xff]
    %v203 = vld [vmem:[#allocation2 + $0x138] sm:$0xff]
    %v204 = vld [vmem:[#allocation2 + $0x140] sm:$0xff]
    %v205 = vld [vmem:[#allocation2 + $0x148] sm:$0xff]
    %v206 = vld [vmem:[#allocation2 + $0x150] sm:$0xff]
    %v207 = vld [vmem:[#allocation2 + $0x158] sm:$0xff]
    %v208 = vld [vmem:[#allocation2 + $0x160] sm:$0xff]
    %v209 = vld [vmem:[#allocation2 + $0x168] sm:$0xff]
    %v210 = vld [vmem:[#allocation2 + $0x170] sm:$0xff]
    %v211 = vld [vmem:[#allocation2 + $0x178] sm:$0xff]
    %v212 = vld [vmem:[#allocation2 + $0x180] sm:$0xff]
    %v213 = vld [vmem:[#allocation2 + $0x188] sm:$0xff]
    %v214 = vld [vmem:[#allocation2 + $0x190] sm:$0xff]
    %v215 = vld [vmem:[#allocation2 + $0x198] sm:$0xff]
    %v216 = vld [vmem:[#allocation2 + $0x1a0] sm:$0xff]
    %v217 = vld [vmem:[#allocation2 + $0x1a8] sm:$0xff]
    %v218 = vld [vmem:[#allocation2 + $0x1b0] sm:$0xff]
    %v219 = vld [vmem:[#allocation2 + $0x1b8] sm:$0xff]
    %v220 = vld [vmem:[#allocation2 + $0x1c0] sm:$0xff]
    %v221 = vld [vmem:[#allocation2 + $0x1c8] sm:$0xff]
    %v222 = vld [vmem:[#allocation2 + $0x1d0] sm:$0xff]
    %v223 = vld [vmem:[#allocation2 + $0x1d8] sm:$0xff]
    %v224 = vld [vmem:[#allocation2 + $0x1e0] sm:$0xff]
    %v225 = vld [vmem:[#allocation2 + $0x1e8] sm:$0xff]
    %v226 = vld [vmem:[#allocation2 + $0x1f0] sm:$0xff]
    %v227 = vld [vmem:[#allocation2 + $0x1f8] sm:$0xff]
    %v228 = vld [vmem:[#allocation2 + $0x200] sm:$0xff]
    %v229 = vld [vmem:[#allocation2 + $0x208] sm:$0xff]
    %v230 = vld [vmem:[#allocation2 + $0x210] sm:$0xff]
    %v231 = vld [vmem:[#allocation2 + $0x218] sm:$0xff]
    %v232 = vld [vmem:[#allocation2 + $0x220] sm:$0xff]
    %v233 = vld [vmem:[#allocation2 + $0x228] sm:$0xff]
    %v234 = vld [vmem:[#allocation2 + $0x230] sm:$0xff]
    %v235 = vld [vmem:[#allocation2 + $0x238] sm:$0xff]
    %v236 = vld [vmem:[#allocation2 + $0x240] sm:$0xff]
    %v237 = vld [vmem:[#allocation2 + $0x248] sm:$0xff]
    %v238 = vld [vmem:[#allocation2 + $0x250] sm:$0xff]
    %v239 = vld [vmem:[#allocation2 + $0x258] sm:$0xff]
    %v240 = vld [vmem:[#allocation2 + $0x260] sm:$0xff]
    %v241 = vld [vmem:[#allocation2 + $0x268] sm:$0xff]
    %v242 = vld [vmem:[#allocation2 + $0x270] sm:$0xff]
    %v243 = vld [vmem:[#allocation2 + $0x278] sm:$0xff]
    %v244 = vld [vmem:[#allocation2 + $0x280] sm:$0xff]
    %v245 = vld [vmem:[#allocation2 + $0x288] sm:$0xff]
    %v246 = vld [vmem:[#allocation2 + $0x290] sm:$0xff]
    %v247 = vld [vmem:[#allocation2 + $0x298] sm:$0xff]
    %v248 = vld [vmem:[#allocation2 + $0x2a0] sm:$0xff]
    %v249 = vld [vmem:[#allocation2 + $0x2a8] sm:$0xff]
    %v250 = vld [vmem:[#allocation2 + $0x2b0] sm:$0xff]
    %v251 = vld [vmem:[#allocation2 + $0x2b8] sm:$0xff]
    %v252 = vld [vmem:[#allocation2 + $0x2c0] sm:$0xff]
    %v253 = vld [vmem:[#allocation2 + $0x2c8] sm:$0xff]
    %v254 = vld [vmem:[#allocation2 + $0x2d0] sm:$0xff]
    %v255 = vld [vmem:[#allocation2 + $0x2d8] sm:$0xff]
    %v256 = vld [vmem:[#allocation2 + $0x2e0] sm:$0xff]
    %v257 = vld [vmem:[#allocation2 + $0x2e8] sm:$0xff]
    %v258 = vld [vmem:[#allocation2 + $0x2f0] sm:$0xff]
    %v259 = vld [vmem:[#allocation2 + $0x2f8] sm:$0xff]
    %v260 = vld [vmem:[#allocation2 + $0x300] sm:$0xff]
    %v261 = vld [vmem:[#allocation2 + $0x308] sm:$0xff]
    %v262 = vld [vmem:[#allocation2 + $0x310] sm:$0xff]
    %v263 = vld [vmem:[#allocation2 + $0x318] sm:$0xff]
    %v264 = vld [vmem:[#allocation2 + $0x320] sm:$0xff]
    %v265 = vld [vmem:[#allocation2 + $0x328] sm:$0xff]
    %v266 = vld [vmem:[#allocation2 + $0x330] sm:$0xff]
    %v267 = vld [vmem:[#allocation2 + $0x338] sm:$0xff]
    %v268 = vld [vmem:[#allocation2 + $0x340] sm:$0xff]
    %v269 = vld [vmem:[#allocation2 + $0x348] sm:$0xff]
    %v270 = vld [vmem:[#allocation2 + $0x350] sm:$0xff]
    %v271 = vld [vmem:[#allocation2 + $0x358] sm:$0xff]
    %v272 = vld [vmem:[#allocation2 + $0x360] sm:$0xff]
    %v273 = vld [vmem:[#allocation2 + $0x368] sm:$0xff]
    %v274 = vld [vmem:[#allocation2 + $0x370] sm:$0xff]
    %v275 = vld [vmem:[#allocation2 + $0x378] sm:$0xff]
    %v276 = vld [vmem:[#allocation2 + $0x380] sm:$0xff]
    %v277 = vld [vmem:[#allocation2 + $0x388] sm:$0xff]
    %v278 = vld [vmem:[#allocation2 + $0x390] sm:$0xff]
    %v279 = vld [vmem:[#allocation2 + $0x398] sm:$0xff]
    %v280 = vld [vmem:[#allocation2 + $0x3a0] sm:$0xff]
    %v281 = vld [vmem:[#allocation2 + $0x3a8] sm:$0xff]
    %v282 = vld [vmem:[#allocation2 + $0x3b0] sm:$0xff]
    %v283 = vld [vmem:[#allocation2 + $0x3b8] sm:$0xff]
    %v284 = vld [vmem:[#allocation2 + $0x3c0] sm:$0xff]
    %v285 = vld [vmem:[#allocation2 + $0x3c8] sm:$0xff]
    %v286 = vld [vmem:[#allocation2 + $0x3d0] sm:$0xff]
    %v287 = vld [vmem:[#allocation2 + $0x3d8] sm:$0xff]
    %v288 = vld [vmem:[#allocation2 + $0x3e0] sm:$0xff]
    %v289 = vld [vmem:[#allocation2 + $0x3e8] sm:$0xff]
    %v290 = vld [vmem:[#allocation2 + $0x3f0] sm:$0xff]
    %v291 = vld [vmem:[#allocation2 + $0x3f8] sm:$0xff]
    %v292 = vld [vmem:[#allocation2 + $0x400] sm:$0xff]
    %v293 = vld [vmem:[#allocation2 + $0x408] sm:$0xff]
    %v294 = vld [vmem:[#allocation2 + $0x410] sm:$0xff]
    %v295 = vld [vmem:[#allocation2 + $0x418] sm:$0xff]
    %v296 = vld [vmem:[#allocation2 + $0x420] sm:$0xff]
    %v297 = vld [vmem:[#allocation2 + $0x428] sm:$0xff]
    %v298 = vld [vmem:[#allocation2 + $0x430] sm:$0xff]
    %v299 = vld [vmem:[#allocation2 + $0x438] sm:$0xff]
    %v300 = vld [vmem:[#allocation2 + $0x440] sm:$0xff]
    %v301 = vld [vmem:[#allocation2 + $0x448] sm:$0xff]
    %v302 = vld [vmem:[#allocation2 + $0x450] sm:$0xff]
    %v303 = vld [vmem:[#allocation2 + $0x458] sm:$0xff]
    %v304 = vld [vmem:[#allocation2 + $0x460] sm:$0xff]
    %v305 = vld [vmem:[#allocation2 + $0x468] sm:$0xff]
    %v306 = vld [vmem:[#allocation2 + $0x470] sm:$0xff]
    %v307 = vld [vmem:[#allocation2 + $0x478] sm:$0xff]
    %v308 = vld [vmem:[#allocation2 + $0x480] sm:$0xff]
    %v309 = vld [vmem:[#allocation2 + $0x488] sm:$0xff]
    %v310 = vld [vmem:[#allocation2 + $0x490] sm:$0xff]
    %v311 = vld [vmem:[#allocation2 + $0x498] sm:$0xff]
    %v312 = vld [vmem:[#allocation2 + $0x4a0] sm:$0xff]
    %v313 = vld [vmem:[#allocation2 + $0x4a8] sm:$0xff]
    %v314 = vld [vmem:[#allocation2 + $0x4b0] sm:$0xff]
    %v315 = vld [vmem:[#allocation2 + $0x4b8] sm:$0xff]
    %v316 = vld [vmem:[#allocation2 + $0x4c0] sm:$0xff]
    %v317 = vld [vmem:[#allocation2 + $0x4c8] sm:$0xff]
    %v318 = vld [vmem:[#allocation2 + $0x4d0] sm:$0xff]
    %v319 = vld [vmem:[#allocation2 + $0x4d8] sm:$0xff]
    %v320 = vld [vmem:[#allocation2 + $0x4e0] sm:$0xff]
    %v321 = vld [vmem:[#allocation2 + $0x4e8] sm:$0xff]
    %v322 = vld [vmem:[#allocation2 + $0x4f0] sm:$0xff]
    %v323 = vld [vmem:[#allocation2 + $0x4f8] sm:$0xff]
    %v324 = vld [vmem:[#allocation2 + $0x500] sm:$0xff]
    %v325 = vld [vmem:[#allocation2 + $0x508] sm:$0xff]
    %v326 = vld [vmem:[#allocation2 + $0x510] sm:$0xff]
    %v327 = vld [vmem:[#allocation2 + $0x518] sm:$0xff]
    %v328 = vld [vmem:[#allocation2 + $0x520] sm:$0xff]
    %v329 = vld [vmem:[#allocation2 + $0x528] sm:$0xff]
    %v330 = vld [vmem:[#allocation2 + $0x530] sm:$0xff]
    %v331 = vld [vmem:[#allocation2 + $0x538] sm:$0xff]
    %v332 = vld [vmem:[#allocation2 + $0x540] sm:$0xff]
    %v333 = vld [vmem:[#allocation2 + $0x548] sm:$0xff]
    %v334 = vld [vmem:[#allocation2 + $0x550] sm:$0xff]
    %v335 = vld [vmem:[#allocation2 + $0x558] sm:$0xff]
    %v336 = vld [vmem:[#allocation2 + $0x560] sm:$0xff]
    %v337 = vld [vmem:[#allocation2 + $0x568] sm:$0xff]
    %v338 = vld [vmem:[#allocation2 + $0x570] sm:$0xff]
    %v339 = vld [vmem:[#allocation2 + $0x578] sm:$0xff]
    %v340 = vld [vmem:[#allocation2 + $0x580] sm:$0xff]
    %v341 = vld [vmem:[#allocation2 + $0x588] sm:$0xff]
    %v342 = vld [vmem:[#allocation2 + $0x590] sm:$0xff]
    %v343 = vld [vmem:[#allocation2 + $0x598] sm:$0xff]
    %v344 = vld [vmem:[#allocation2 + $0x5a0] sm:$0xff]
    %v345 = vld [vmem:[#allocation2 + $0x5a8] sm:$0xff]
    %v346 = vld [vmem:[#allocation2 + $0x5b0] sm:$0xff]
    %v347 = vld [vmem:[#allocation2 + $0x5b8] sm:$0xff]
    %v348 = vld [vmem:[#allocation2 + $0x5c0] sm:$0xff]
    %v349 = vld [vmem:[#allocation2 + $0x5c8] sm:$0xff]
    %v350 = vld [vmem:[#allocation2 + $0x5d0] sm:$0xff]
    %v351 = vld [vmem:[#allocation2 + $0x5d8] sm:$0xff]
    %v352 = vld [vmem:[#allocation2 + $0x5e0] sm:$0xff]
    %v353 = vld [vmem:[#allocation2 + $0x5e8] sm:$0xff]
    %v354 = vld [vmem:[#allocation2 + $0x5f0] sm:$0xff]
    %v355 = vld [vmem:[#allocation2 + $0x5f8] sm:$0xff]
    %v356 = vld [vmem:[#allocation2 + $0x600] sm:$0xff]
    %v357 = vld [vmem:[#allocation2 + $0x608] sm:$0xff]
    %v358 = vld [vmem:[#allocation2 + $0x610] sm:$0xff]
    %v359 = vld [vmem:[#allocation2 + $0x618] sm:$0xff]
    %v360 = vld [vmem:[#allocation2 + $0x620] sm:$0xff]
    %v361 = vld [vmem:[#allocation2 + $0x628] sm:$0xff]
    %v362 = vld [vmem:[#allocation2 + $0x630] sm:$0xff]
    %v363 = vld [vmem:[#allocation2 + $0x638] sm:$0xff]
    %v364 = vld [vmem:[#allocation2 + $0x640] sm:$0xff]
    %v365 = vld [vmem:[#allocation2 + $0x648] sm:$0xff]
    %v366 = vld [vmem:[#allocation2 + $0x650] sm:$0xff]
    %v367 = vld [vmem:[#allocation2 + $0x658] sm:$0xff]
    %v368 = vld [vmem:[#allocation2 + $0x660] sm:$0xff]
    %v369 = vld [vmem:[#allocation2 + $0x668] sm:$0xff]
    %v370 = vld [vmem:[#allocation2 + $0x670] sm:$0xff]
    %v371 = vld [vmem:[#allocation2 + $0x678] sm:$0xff]
    %v372 = vld [vmem:[#allocation2 + $0x680] sm:$0xff]
    %v373 = vld [vmem:[#allocation2 + $0x688] sm:$0xff]
    %v374 = vld [vmem:[#allocation2 + $0x690] sm:$0xff]
    %v375 = vld [vmem:[#allocation2 + $0x698] sm:$0xff]
    %v376 = vld [vmem:[#allocation2 + $0x6a0] sm:$0xff]
    %v377 = vld [vmem:[#allocation2 + $0x6a8] sm:$0xff]
    %v378 = vld [vmem:[#allocation2 + $0x6b0] sm:$0xff]
    %v379 = vld [vmem:[#allocation2 + $0x6b8] sm:$0xff]
    %v380 = vld [vmem:[#allocation2 + $0x6c0] sm:$0xff]
    %v381 = vld [vmem:[#allocation2 + $0x6c8] sm:$0xff]
    %v382 = vld [vmem:[#allocation2 + $0x6d0] sm:$0xff]
    %v383 = vld [vmem:[#allocation2 + $0x6d8] sm:$0xff]
    %v384 = vld [vmem:[#allocation2 + $0x6e0] sm:$0xff]
    %v385 = vld [vmem:[#allocation2 + $0x6e8] sm:$0xff]
    %v386 = vld [vmem:[#allocation2 + $0x6f0] sm:$0xff]
    %v387 = vld [vmem:[#allocation2 + $0x6f8] sm:$0xff]
    %v388 = vld [vmem:[#allocation2 + $0x700] sm:$0xff]
    %v389 = vld [vmem:[#allocation2 + $0x708] sm:$0xff]
    %v390 = vld [vmem:[#allocation2 + $0x710] sm:$0xff]
    %v391 = vld [vmem:[#allocation2 + $0x718] sm:$0xff]
    %v392 = vld [vmem:[#allocation2 + $0x720] sm:$0xff]
    %v393 = vld [vmem:[#allocation2 + $0x728] sm:$0xff]
    %v394 = vld [vmem:[#allocation2 + $0x730] sm:$0xff]
    %v395 = vld [vmem:[#allocation2 + $0x738] sm:$0xff]
    %v396 = vld [vmem:[#allocation2 + $0x740] sm:$0xff]
    %v397 = vld [vmem:[#allocation2 + $0x748] sm:$0xff]
    %v398 = vld [vmem:[#allocation2 + $0x750] sm:$0xff]
    %v399 = vld [vmem:[#allocation2 + $0x758] sm:$0xff]
    %v400 = vld [vmem:[#allocation2 + $0x760] sm:$0xff]
    %v401 = vld [vmem:[#allocation2 + $0x768] sm:$0xff]
    %v402 = vld [vmem:[#allocation2 + $0x770] sm:$0xff]
    %v403 = vld [vmem:[#allocation2 + $0x778] sm:$0xff]
    %v404 = vld [vmem:[#allocation2 + $0x780] sm:$0xff]
    %v405 = vld [vmem:[#allocation2 + $0x788] sm:$0xff]
    %v406 = vld [vmem:[#allocation2 + $0x790] sm:$0xff]
    %v407 = vld [vmem:[#allocation2 + $0x798] sm:$0xff]
    %v408 = vld [vmem:[#allocation2 + $0x7a0] sm:$0xff]
    %v409 = vld [vmem:[#allocation2 + $0x7a8] sm:$0xff]
    %v410 = vld [vmem:[#allocation2 + $0x7b0] sm:$0xff]
    %v411 = vld [vmem:[#allocation2 + $0x7b8] sm:$0xff]
    %v412 = vld [vmem:[#allocation2 + $0x7c0] sm:$0xff]
    %v413 = vld [vmem:[#allocation2 + $0x7c8] sm:$0xff]
    %v414 = vld [vmem:[#allocation2 + $0x7d0] sm:$0xff]
    %v415 = vld [vmem:[#allocation2 + $0x7d8] sm:$0xff]
    %v416 = vld [vmem:[#allocation2 + $0x7e0] sm:$0xff]
    %v417 = vld [vmem:[#allocation2 + $0x7e8] sm:$0xff]
    %v418 = vld [vmem:[#allocation2 + $0x7f0] sm:$0xff]
    %v419 = vld [vmem:[#allocation2 + $0x7f8] sm:$0xff]
    %v420 = vld [vmem:[#allocation2 + $0x800] sm:$0xff]
    %v421 = vld [vmem:[#allocation2 + $0x808] sm:$0xff]
    %v422 = vld [vmem:[#allocation2 + $0x810] sm:$0xff]
    %v423 = vld [vmem:[#allocation2 + $0x818] sm:$0xff]
    %v424 = vld [vmem:[#allocation2 + $0x820] sm:$0xff]
    %v425 = vld [vmem:[#allocation2 + $0x828] sm:$0xff]
    %v426 = vld [vmem:[#allocation2 + $0x830] sm:$0xff]
    %v427 = vld [vmem:[#allocation2 + $0x838] sm:$0xff]
    %v428 = vld [vmem:[#allocation2 + $0x840] sm:$0xff]
    %v429 = vld [vmem:[#allocation2 + $0x848] sm:$0xff]
    %v430 = vld [vmem:[#allocation2 + $0x850] sm:$0xff]
    %v431 = vld [vmem:[#allocation2 + $0x858] sm:$0xff]
    %v432 = vld [vmem:[#allocation2 + $0x860] sm:$0xff]
    %v433 = vld [vmem:[#allocation2 + $0x868] sm:$0xff]
    %v434 = vld [vmem:[#allocation2 + $0x870] sm:$0xff]
    %v435 = vld [vmem:[#allocation2 + $0x878] sm:$0xff]
    %v436 = vld [vmem:[#allocation2 + $0x880] sm:$0xff]
    %v437 = vld [vmem:[#allocation2 + $0x888] sm:$0xff]
    %v438 = vld [vmem:[#allocation2 + $0x890] sm:$0xff]
    %v439 = vld [vmem:[#allocation2 + $0x898] sm:$0xff]
    %v440 = vld [vmem:[#allocation2 + $0x8a0] sm:$0xff]
    %v441 = vld [vmem:[#allocation2 + $0x8a8] sm:$0xff]
    %v442 = vld [vmem:[#allocation2 + $0x8b0] sm:$0xff]
    %v443 = vld [vmem:[#allocation2 + $0x8b8] sm:$0xff]
    %v444 = vld [vmem:[#allocation2 + $0x8c0] sm:$0xff]
    %v445 = vld [vmem:[#allocation2 + $0x8c8] sm:$0xff]
    %v446 = vld [vmem:[#allocation2 + $0x8d0] sm:$0xff]
    %v447 = vld [vmem:[#allocation2 + $0x8d8] sm:$0xff]
    %v448 = vld [vmem:[#allocation2 + $0x8e0] sm:$0xff]
    %v449 = vld [vmem:[#allocation2 + $0x8e8] sm:$0xff]
    %v450 = vld [vmem:[#allocation2 + $0x8f0] sm:$0xff]
    %v451 = vld [vmem:[#allocation2 + $0x8f8] sm:$0xff]
    %v452 = vld [vmem:[#allocation2 + $0x900] sm:$0xff]
    %v453 = vld [vmem:[#allocation2 + $0x908] sm:$0xff]
    %v454 = vld [vmem:[#allocation2 + $0x910] sm:$0xff]
    %v455 = vld [vmem:[#allocation2 + $0x918] sm:$0xff]
    %v456 = vld [vmem:[#allocation2 + $0x920] sm:$0xff]
    %v457 = vld [vmem:[#allocation2 + $0x928] sm:$0xff]
    %v458 = vld [vmem:[#allocation2 + $0x930] sm:$0xff]
    %v459 = vld [vmem:[#allocation2 + $0x938] sm:$0xff]
    %v460 = vld [vmem:[#allocation2 + $0x940] sm:$0xff]
    %v461 = vld [vmem:[#allocation2 + $0x948] sm:$0xff]
    %v462 = vld [vmem:[#allocation2 + $0x950] sm:$0xff]
    %v463 = vld [vmem:[#allocation2 + $0x958] sm:$0xff]
    %v464 = vld [vmem:[#allocation2 + $0x960] sm:$0xff]
    %v465 = vld [vmem:[#allocation2 + $0x968] sm:$0xff]
    %v466 = vld [vmem:[#allocation2 + $0x970] sm:$0xff]
    %v467 = vld [vmem:[#allocation2 + $0x978] sm:$0xff]
    %v468 = vld [vmem:[#allocation2 + $0x980] sm:$0xff]
    %v469 = vld [vmem:[#allocation2 + $0x988] sm:$0xff]
    %v470 = vld [vmem:[#allocation2 + $0x990] sm:$0xff]
    %v471 = vld [vmem:[#allocation2 + $0x998] sm:$0xff]
    %v472 = vld [vmem:[#allocation2 + $0x9a0] sm:$0xff]
    %v473 = vld [vmem:[#allocation2 + $0x9a8] sm:$0xff]
    %v474 = vld [vmem:[#allocation2 + $0x9b0] sm:$0xff]
    %v475 = vld [vmem:[#allocation2 + $0x9b8] sm:$0xff]
    %v476 = vld [vmem:[#allocation2 + $0x9c0] sm:$0xff]
    %v477 = vld [vmem:[#allocation2 + $0x9c8] sm:$0xff]
    %v478 = vld [vmem:[#allocation2 + $0x9d0] sm:$0xff]
    %v479 = vld [vmem:[#allocation2 + $0x9d8] sm:$0xff]
    %v480 = vld [vmem:[#allocation2 + $0x9e0] sm:$0xff]
    %v481 = vld [vmem:[#allocation2 + $0x9e8] sm:$0xff]
    %v482 = vld [vmem:[#allocation2 + $0x9f0] sm:$0xff]
    %v483 = vld [vmem:[#allocation2 + $0x9f8] sm:$0xff]
    %v484 = vld [vmem:[#allocation2 + $0xa00] sm:$0xff]
    %v485 = vld [vmem:[#allocation2 + $0xa08] sm:$0xff]
    %v486 = vld [vmem:[#allocation2 + $0xa10] sm:$0xff]
    %v487 = vld [vmem:[#allocation2 + $0xa18] sm:$0xff]
    %v488 = vld [vmem:[#allocation2 + $0xa20] sm:$0xff]
    %v489 = vld [vmem:[#allocation2 + $0xa28] sm:$0xff]
    %v490 = vld [vmem:[#allocation2 + $0xa30] sm:$0xff]
    %v491 = vld [vmem:[#allocation2 + $0xa38] sm:$0xff]
    %v492 = vld [vmem:[#allocation2 + $0xa40] sm:$0xff]
    %v493 = vld [vmem:[#allocation2 + $0xa48] sm:$0xff]
    %v494 = vld [vmem:[#allocation2 + $0xa50] sm:$0xff]
    %v495 = vld [vmem:[#allocation2 + $0xa58] sm:$0xff]
    %v496 = vld [vmem:[#allocation2 + $0xa60] sm:$0xff]
    %v497 = vld [vmem:[#allocation2 + $0xa68] sm:$0xff]
    %v498 = vld [vmem:[#allocation2 + $0xa70] sm:$0xff]
    %v499 = vld [vmem:[#allocation2 + $0xa78] sm:$0xff]
    %v500 = vld [vmem:[#allocation2 + $0xa80] sm:$0xff]
    %v501 = vld [vmem:[#allocation2 + $0xa88] sm:$0xff]
    %v502 = vld [vmem:[#allocation2 + $0xa90] sm:$0xff]
    %v503 = vld [vmem:[#allocation2 + $0xa98] sm:$0xff]
    %v504 = vld [vmem:[#allocation2 + $0xaa0] sm:$0xff]
    %v505 = vld [vmem:[#allocation2 + $0xaa8] sm:$0xff]
    %v506 = vld [vmem:[#allocation2 + $0xab0] sm:$0xff]
    %v507 = vld [vmem:[#allocation2 + $0xab8] sm:$0xff]
    %v508 = vld [vmem:[#allocation2 + $0xac0] sm:$0xff]
    %v509 = vld [vmem:[#allocation2 + $0xac8] sm:$0xff]
    %v510 = vld [vmem:[#allocation2 + $0xad0] sm:$0xff]
    %v511 = vld [vmem:[#allocation2 + $0xad8] sm:$0xff]
    %v512 = vld [vmem:[#allocation2 + $0xae0] sm:$0xff]
    %v513 = vld [vmem:[#allocation2 + $0xae8] sm:$0xff]
    %v514 = vld [vmem:[#allocation2 + $0xaf0] sm:$0xff]
    %v515 = vld [vmem:[#allocation2 + $0xaf8] sm:$0xff]
    %v516 = vld [vmem:[#allocation2 + $0xb00] sm:$0xff]
    %v517 = vld [vmem:[#allocation2 + $0xb08] sm:$0xff]
    %v518 = vld [vmem:[#allocation2 + $0xb10] sm:$0xff]
    %v519 = vld [vmem:[#allocation2 + $0xb18] sm:$0xff]
    %v520 = vld [vmem:[#allocation2 + $0xb20] sm:$0xff]
    %v521 = vld [vmem:[#allocation2 + $0xb28] sm:$0xff]
    %v522 = vld [vmem:[#allocation2 + $0xb30] sm:$0xff]
    %v523 = vld [vmem:[#allocation2 + $0xb38] sm:$0xff]
    %v524 = vld [vmem:[#allocation2 + $0xb40] sm:$0xff]
    %v525 = vld [vmem:[#allocation2 + $0xb48] sm:$0xff]
    %v526 = vld [vmem:[#allocation2 + $0xb50] sm:$0xff]
    %v527 = vld [vmem:[#allocation2 + $0xb58] sm:$0xff]
    %v528 = vld [vmem:[#allocation2 + $0xb60] sm:$0xff]
    %v529 = vld [vmem:[#allocation2 + $0xb68] sm:$0xff]
    %v530 = vld [vmem:[#allocation2 + $0xb70] sm:$0xff]
    %v531 = vld [vmem:[#allocation2 + $0xb78] sm:$0xff]
    %v532 = vld [vmem:[#allocation2 + $0xb80] sm:$0xff]
    %v533 = vld [vmem:[#allocation2 + $0xb88] sm:$0xff]
    %v534 = vld [vmem:[#allocation2 + $0xb90] sm:$0xff]
    %v535 = vld [vmem:[#allocation2 + $0xb98] sm:$0xff]
    %v536 = vld [vmem:[#allocation2 + $0xba0] sm:$0xff]
    %v537 = vld [vmem:[#allocation2 + $0xba8] sm:$0xff]
    %v538 = vld [vmem:[#allocation2 + $0xbb0] sm:$0xff]
    %v539 = vld [vmem:[#allocation2 + $0xbb8] sm:$0xff]
    %v540 = vld [vmem:[#allocation2 + $0xbc0] sm:$0xff]
    %v541 = vld [vmem:[#allocation2 + $0xbc8] sm:$0xff]
    %v542 = vld [vmem:[#allocation2 + $0xbd0] sm:$0xff]
    %v543 = vld [vmem:[#allocation2 + $0xbd8] sm:$0xff]
    %v544 = vld [vmem:[#allocation2 + $0xbe0] sm:$0xff]
    %v545 = vld [vmem:[#allocation2 + $0xbe8] sm:$0xff]
    %v546 = vld [vmem:[#allocation2 + $0xbf0] sm:$0xff]
    %v547 = vld [vmem:[#allocation2 + $0xbf8] sm:$0xff]
    %v551 = vunpack.c.l.b16 %v161
    %v552 = vunpack.c.h.b16 %v161
    %v553 = vunpack.c.l.b16 %v162
    %v554 = vunpack.c.h.b16 %v162
    %v555 = vunpack.c.l.b16 %v163
    %v556 = vunpack.c.h.b16 %v163
    %v557 = vpack.c.b16 %v551, %v551
    %v558 = vpack.c.b16 %v552, %v552
    %v559 = vpack.c.b16 %v553, %v553
    %v560 = vpack.c.b16 %v554, %v554
    %v561 = vpack.c.b16 %v555, %v555
    %v562 = vpack.c.b16 %v556, %v556
    %v953 = vunpack.c.l.b16 %v164
    %v954 = vunpack.c.h.b16 %v164
    %v955 = vunpack.c.l.b16 %v165
    %v956 = vunpack.c.h.b16 %v165
    %v957 = vunpack.c.l.b16 %v166
    %v958 = vunpack.c.h.b16 %v166
    %v959 = vunpack.c.l.b16 %v167
    %v960 = vunpack.c.h.b16 %v167
    %v961 = vunpack.c.l.b16 %v168
    %v962 = vunpack.c.h.b16 %v168
    %v963 = vunpack.c.l.b16 %v169
    %v964 = vunpack.c.h.b16 %v169
    %v965 = vunpack.c.l.b16 %v170
    %v966 = vunpack.c.h.b16 %v170
    %v967 = vunpack.c.l.b16 %v171
    %v968 = vunpack.c.h.b16 %v171
    %v969 = vunpack.c.l.b16 %v172
    %v970 = vunpack.c.h.b16 %v172
    %v971 = vunpack.c.l.b16 %v173
    %v972 = vunpack.c.h.b16 %v173
    %v973 = vunpack.c.l.b16 %v174
    %v974 = vunpack.c.h.b16 %v174
    %v975 = vunpack.c.l.b16 %v175
    %v976 = vunpack.c.h.b16 %v175
    %v977 = vunpack.c.l.b16 %v176
    %v978 = vunpack.c.h.b16 %v176
    %v979 = vunpack.c.l.b16 %v177
    %v980 = vunpack.c.h.b16 %v177
    %v981 = vunpack.c.l.b16 %v178
    %v982 = vunpack.c.h.b16 %v178
    %v983 = vunpack.c.l.b16 %v179
    %v984 = vunpack.c.h.b16 %v179
    %v985 = vunpack.c.l.b16 %v180
    %v986 = vunpack.c.h.b16 %v180
    %v987 = vunpack.c.l.b16 %v181
    %v988 = vunpack.c.h.b16 %v181
    %v989 = vunpack.c.l.b16 %v182
    %v990 = vunpack.c.h.b16 %v182
    %v991 = vunpack.c.l.b16 %v183
    %v992 = vunpack.c.h.b16 %v183
    %v993 = vunpack.c.l.b16 %v184
    %v994 = vunpack.c.h.b16 %v184
    %v995 = vunpack.c.l.b16 %v185
    %v996 = vunpack.c.h.b16 %v185
    %v997 = vunpack.c.l.b16 %v186
    %v998 = vunpack.c.h.b16 %v186
    %v999 = vunpack.c.l.b16 %v187
    %v1000 = vunpack.c.h.b16 %v187
    %v1001 = vunpack.c.l.b16 %v188
    %v1002 = vunpack.c.h.b16 %v188
    %v1003 = vunpack.c.l.b16 %v189
    %v1004 = vunpack.c.h.b16 %v189
    %v1005 = vunpack.c.l.b16 %v190
    %v1006 = vunpack.c.h.b16 %v190
    %v1007 = vunpack.c.l.b16 %v191
    %v1008 = vunpack.c.h.b16 %v191
    %v1009 = vunpack.c.l.b16 %v192
    %v1010 = vunpack.c.h.b16 %v192
    %v1011 = vunpack.c.l.b16 %v193
    %v1012 = vunpack.c.h.b16 %v193
    %v1013 = vunpack.c.l.b16 %v194
    %v1014 = vunpack.c.h.b16 %v194
    %v1015 = vunpack.c.l.b16 %v195
    %v1016 = vunpack.c.h.b16 %v195
    %v1017 = vunpack.c.l.b16 %v196
    %v1018 = vunpack.c.h.b16 %v196
    %v1019 = vunpack.c.l.b16 %v197
    %v1020 = vunpack.c.h.b16 %v197
    %v1021 = vunpack.c.l.b16 %v198
    %v1022 = vunpack.c.h.b16 %v198
    %v1023 = vunpack.c.l.b16 %v199
    %v1024 = vunpack.c.h.b16 %v199
    %v1025 = vunpack.c.l.b16 %v200
    %v1026 = vunpack.c.h.b16 %v200
    %v1027 = vunpack.c.l.b16 %v201
    %v1028 = vunpack.c.h.b16 %v201
    %v1029 = vunpack.c.l.b16 %v202
    %v1030 = vunpack.c.h.b16 %v202
    %v1031 = vunpack.c.l.b16 %v203
    %v1032 = vunpack.c.h.b16 %v203
    %v1033 = vunpack.c.l.b16 %v204
    %v1034 = vunpack.c.h.b16 %v204
    %v1035 = vunpack.c.l.b16 %v205
    %v1036 = vunpack.c.h.b16 %v205
    %v1037 = vunpack.c.l.b16 %v206
    %v1038 = vunpack.c.h.b16 %v206
    %v1039 = vunpack.c.l.b16 %v207
    %v1040 = vunpack.c.h.b16 %v207
    %v1041 = vunpack.c.l.b16 %v208
    %v1042 = vunpack.c.h.b16 %v208
    %v1043 = vunpack.c.l.b16 %v209
    %v1044 = vunpack.c.h.b16 %v209
    %v1045 = vunpack.c.l.b16 %v210
    %v1046 = vunpack.c.h.b16 %v210
    %v1047 = vunpack.c.l.b16 %v211
    %v1048 = vunpack.c.h.b16 %v211
    %v1049 = vunpack.c.l.b16 %v212
    %v1050 = vunpack.c.h.b16 %v212
    %v1051 = vunpack.c.l.b16 %v213
    %v1052 = vunpack.c.h.b16 %v213
    %v1053 = vunpack.c.l.b16 %v214
    %v1054 = vunpack.c.h.b16 %v214
    %v1055 = vunpack.c.l.b16 %v215
    %v1056 = vunpack.c.h.b16 %v215
    %v1057 = vunpack.c.l.b16 %v216
    %v1058 = vunpack.c.h.b16 %v216
    %v1059 = vunpack.c.l.b16 %v217
    %v1060 = vunpack.c.h.b16 %v217
    %v1061 = vunpack.c.l.b16 %v218
    %v1062 = vunpack.c.h.b16 %v218
    %v1063 = vunpack.c.l.b16 %v219
    %v1064 = vunpack.c.h.b16 %v219
    %v1065 = vunpack.c.l.b16 %v220
    %v1066 = vunpack.c.h.b16 %v220
    %v1067 = vunpack.c.l.b16 %v221
    %v1068 = vunpack.c.h.b16 %v221
    %v1069 = vunpack.c.l.b16 %v222
    %v1070 = vunpack.c.h.b16 %v222
    %v1071 = vunpack.c.l.b16 %v223
    %v1072 = vunpack.c.h.b16 %v223
    %v1073 = vunpack.c.l.b16 %v224
    %v1074 = vunpack.c.h.b16 %v224
    %v1075 = vunpack.c.l.b16 %v225
    %v1076 = vunpack.c.h.b16 %v225
    %v1077 = vunpack.c.l.b16 %v226
    %v1078 = vunpack.c.h.b16 %v226
    %v1079 = vunpack.c.l.b16 %v227
    %v1080 = vunpack.c.h.b16 %v227
    %v1081 = vunpack.c.l.b16 %v228
    %v1082 = vunpack.c.h.b16 %v228
    %v1083 = vunpack.c.l.b16 %v229
    %v1084 = vunpack.c.h.b16 %v229
    %v1085 = vunpack.c.l.b16 %v230
    %v1086 = vunpack.c.h.b16 %v230
    %v1087 = vunpack.c.l.b16 %v231
    %v1088 = vunpack.c.h.b16 %v231
    %v1089 = vunpack.c.l.b16 %v232
    %v1090 = vunpack.c.h.b16 %v232
    %v1091 = vunpack.c.l.b16 %v233
    %v1092 = vunpack.c.h.b16 %v233
    %v1093 = vunpack.c.l.b16 %v234
    %v1094 = vunpack.c.h.b16 %v234
    %v1095 = vunpack.c.l.b16 %v235
    %v1096 = vunpack.c.h.b16 %v235
    %v1097 = vunpack.c.l.b16 %v236
    %v1098 = vunpack.c.h.b16 %v236
    %v1099 = vunpack.c.l.b16 %v237
    %v1100 = vunpack.c.h.b16 %v237
    %v1101 = vunpack.c.l.b16 %v238
    %v1102 = vunpack.c.h.b16 %v238
    %v1103 = vunpack.c.l.b16 %v239
    %v1104 = vunpack.c.h.b16 %v239
    %v1105 = vunpack.c.l.b16 %v240
    %v1106 = vunpack.c.h.b16 %v240
    %v1107 = vunpack.c.l.b16 %v241
    %v1108 = vunpack.c.h.b16 %v241
    %v1109 = vunpack.c.l.b16 %v242
    %v1110 = vunpack.c.h.b16 %v242
    %v1111 = vunpack.c.l.b16 %v243
    %v1112 = vunpack.c.h.b16 %v243
    %v1113 = vunpack.c.l.b16 %v244
    %v1114 = vunpack.c.h.b16 %v244
    %v1115 = vunpack.c.l.b16 %v245
    %v1116 = vunpack.c.h.b16 %v245
    %v1117 = vunpack.c.l.b16 %v246
    %v1118 = vunpack.c.h.b16 %v246
    %v1119 = vunpack.c.l.b16 %v247
    %v1120 = vunpack.c.h.b16 %v247
    %v1121 = vunpack.c.l.b16 %v248
    %v1122 = vunpack.c.h.b16 %v248
    %v1123 = vunpack.c.l.b16 %v249
    %v1124 = vunpack.c.h.b16 %v249
    %v1125 = vunpack.c.l.b16 %v250
    %v1126 = vunpack.c.h.b16 %v250
    %v1127 = vunpack.c.l.b16 %v251
    %v1128 = vunpack.c.h.b16 %v251
    %v1129 = vunpack.c.l.b16 %v252
    %v1130 = vunpack.c.h.b16 %v252
    %v1131 = vunpack.c.l.b16 %v253
    %v1132 = vunpack.c.h.b16 %v253
    %v1133 = vunpack.c.l.b16 %v254
    %v1134 = vunpack.c.h.b16 %v254
    %v1135 = vunpack.c.l.b16 %v255
    %v1136 = vunpack.c.h.b16 %v255
    %v1137 = vunpack.c.l.b16 %v256
    %v1138 = vunpack.c.h.b16 %v256
    %v1139 = vunpack.c.l.b16 %v257
    %v1140 = vunpack.c.h.b16 %v257
    %v1141 = vunpack.c.l.b16 %v258
    %v1142 = vunpack.c.h.b16 %v258
    %v1143 = vunpack.c.l.b16 %v259
    %v1144 = vunpack.c.h.b16 %v259
    %v1145 = vunpack.c.l.b16 %v260
    %v1146 = vunpack.c.h.b16 %v260
    %v1147 = vunpack.c.l.b16 %v261
    %v1148 = vunpack.c.h.b16 %v261
    %v1149 = vunpack.c.l.b16 %v262
    %v1150 = vunpack.c.h.b16 %v262
    %v1151 = vunpack.c.l.b16 %v263
    %v1152 = vunpack.c.h.b16 %v263
    %v1153 = vunpack.c.l.b16 %v264
    %v1154 = vunpack.c.h.b16 %v264
    %v1155 = vunpack.c.l.b16 %v265
    %v1156 = vunpack.c.h.b16 %v265
    %v1157 = vunpack.c.l.b16 %v266
    %v1158 = vunpack.c.h.b16 %v266
    %v1159 = vunpack.c.l.b16 %v267
    %v1160 = vunpack.c.h.b16 %v267
    %v1161 = vunpack.c.l.b16 %v268
    %v1162 = vunpack.c.h.b16 %v268
    %v1163 = vunpack.c.l.b16 %v269
    %v1164 = vunpack.c.h.b16 %v269
    %v1165 = vunpack.c.l.b16 %v270
    %v1166 = vunpack.c.h.b16 %v270
    %v1167 = vunpack.c.l.b16 %v271
    %v1168 = vunpack.c.h.b16 %v271
    %v1169 = vunpack.c.l.b16 %v272
    %v1170 = vunpack.c.h.b16 %v272
    %v1171 = vunpack.c.l.b16 %v273
    %v1172 = vunpack.c.h.b16 %v273
    %v1173 = vunpack.c.l.b16 %v274
    %v1174 = vunpack.c.h.b16 %v274
    %v1175 = vunpack.c.l.b16 %v275
    %v1176 = vunpack.c.h.b16 %v275
    %v1177 = vunpack.c.l.b16 %v276
    %v1178 = vunpack.c.h.b16 %v276
    %v1179 = vunpack.c.l.b16 %v277
    %v1180 = vunpack.c.h.b16 %v277
    %v1181 = vunpack.c.l.b16 %v278
    %v1182 = vunpack.c.h.b16 %v278
    %v1183 = vunpack.c.l.b16 %v279
    %v1184 = vunpack.c.h.b16 %v279
    %v1185 = vunpack.c.l.b16 %v280
    %v1186 = vunpack.c.h.b16 %v280
    %v1187 = vunpack.c.l.b16 %v281
    %v1188 = vunpack.c.h.b16 %v281
    %v1189 = vunpack.c.l.b16 %v282
    %v1190 = vunpack.c.h.b16 %v282
    %v1191 = vunpack.c.l.b16 %v283
    %v1192 = vunpack.c.h.b16 %v283
    %v1193 = vunpack.c.l.b16 %v284
    %v1194 = vunpack.c.h.b16 %v284
    %v1195 = vunpack.c.l.b16 %v285
    %v1196 = vunpack.c.h.b16 %v285
    %v1197 = vunpack.c.l.b16 %v286
    %v1198 = vunpack.c.h.b16 %v286
    %v1199 = vunpack.c.l.b16 %v287
    %v1200 = vunpack.c.h.b16 %v287
    %v1201 = vunpack.c.l.b16 %v288
    %v1202 = vunpack.c.h.b16 %v288
    %v1203 = vunpack.c.l.b16 %v289
    %v1204 = vunpack.c.h.b16 %v289
    %v1205 = vunpack.c.l.b16 %v290
    %v1206 = vunpack.c.h.b16 %v290
    %v1207 = vunpack.c.l.b16 %v291
    %v1208 = vunpack.c.h.b16 %v291
    %v1209 = vunpack.c.l.b16 %v292
    %v1210 = vunpack.c.h.b16 %v292
    %v1211 = vunpack.c.l.b16 %v293
    %v1212 = vunpack.c.h.b16 %v293
    %v1213 = vunpack.c.l.b16 %v294
    %v1214 = vunpack.c.h.b16 %v294
    %v1215 = vunpack.c.l.b16 %v295
    %v1216 = vunpack.c.h.b16 %v295
    %v1217 = vunpack.c.l.b16 %v296
    %v1218 = vunpack.c.h.b16 %v296
    %v1219 = vunpack.c.l.b16 %v297
    %v1220 = vunpack.c.h.b16 %v297
    %v1221 = vunpack.c.l.b16 %v298
    %v1222 = vunpack.c.h.b16 %v298
    %v1223 = vunpack.c.l.b16 %v299
    %v1224 = vunpack.c.h.b16 %v299
    %v1225 = vunpack.c.l.b16 %v300
    %v1226 = vunpack.c.h.b16 %v300
    %v1227 = vunpack.c.l.b16 %v301
    %v1228 = vunpack.c.h.b16 %v301
    %v1229 = vunpack.c.l.b16 %v302
    %v1230 = vunpack.c.h.b16 %v302
    %v1231 = vunpack.c.l.b16 %v303
    %v1232 = vunpack.c.h.b16 %v303
    %v1233 = vunpack.c.l.b16 %v304
    %v1234 = vunpack.c.h.b16 %v304
    %v1235 = vunpack.c.l.b16 %v305
    %v1236 = vunpack.c.h.b16 %v305
    %v1237 = vunpack.c.l.b16 %v306
    %v1238 = vunpack.c.h.b16 %v306
    %v1239 = vunpack.c.l.b16 %v307
    %v1240 = vunpack.c.h.b16 %v307
    %v1241 = vunpack.c.l.b16 %v308
    %v1242 = vunpack.c.h.b16 %v308
    %v1243 = vunpack.c.l.b16 %v309
    %v1244 = vunpack.c.h.b16 %v309
    %v1245 = vunpack.c.l.b16 %v310
    %v1246 = vunpack.c.h.b16 %v310
    %v1247 = vunpack.c.l.b16 %v311
    %v1248 = vunpack.c.h.b16 %v311
    %v1249 = vunpack.c.l.b16 %v312
    %v1250 = vunpack.c.h.b16 %v312
    %v1251 = vunpack.c.l.b16 %v313
    %v1252 = vunpack.c.h.b16 %v313
    %v1253 = vunpack.c.l.b16 %v314
    %v1254 = vunpack.c.h.b16 %v314
    %v1255 = vunpack.c.l.b16 %v315
    %v1256 = vunpack.c.h.b16 %v315
    %v1257 = vunpack.c.l.b16 %v316
    %v1258 = vunpack.c.h.b16 %v316
    %v1259 = vunpack.c.l.b16 %v317
    %v1260 = vunpack.c.h.b16 %v317
    %v1261 = vunpack.c.l.b16 %v318
    %v1262 = vunpack.c.h.b16 %v318
    %v1263 = vunpack.c.l.b16 %v319
    %v1264 = vunpack.c.h.b16 %v319
    %v1265 = vunpack.c.l.b16 %v320
    %v1266 = vunpack.c.h.b16 %v320
    %v1267 = vunpack.c.l.b16 %v321
    %v1268 = vunpack.c.h.b16 %v321
    %v1269 = vunpack.c.l.b16 %v322
    %v1270 = vunpack.c.h.b16 %v322
    %v1271 = vunpack.c.l.b16 %v323
    %v1272 = vunpack.c.h.b16 %v323
    %v1273 = vunpack.c.l.b16 %v324
    %v1274 = vunpack.c.h.b16 %v324
    %v1275 = vunpack.c.l.b16 %v325
    %v1276 = vunpack.c.h.b16 %v325
    %v1277 = vunpack.c.l.b16 %v326
    %v1278 = vunpack.c.h.b16 %v326
    %v1279 = vunpack.c.l.b16 %v327
    %v1280 = vunpack.c.h.b16 %v327
    %v1281 = vunpack.c.l.b16 %v328
    %v1282 = vunpack.c.h.b16 %v328
    %v1283 = vunpack.c.l.b16 %v329
    %v1284 = vunpack.c.h.b16 %v329
    %v1285 = vunpack.c.l.b16 %v330
    %v1286 = vunpack.c.h.b16 %v330
    %v1287 = vunpack.c.l.b16 %v331
    %v1288 = vunpack.c.h.b16 %v331
    %v1289 = vunpack.c.l.b16 %v332
    %v1290 = vunpack.c.h.b16 %v332
    %v1291 = vunpack.c.l.b16 %v333
    %v1292 = vunpack.c.h.b16 %v333
    %v1293 = vunpack.c.l.b16 %v334
    %v1294 = vunpack.c.h.b16 %v334
    %v1295 = vunpack.c.l.b16 %v335
    %v1296 = vunpack.c.h.b16 %v335
    %v1297 = vunpack.c.l.b16 %v336
    %v1298 = vunpack.c.h.b16 %v336
    %v1299 = vunpack.c.l.b16 %v337
    %v1300 = vunpack.c.h.b16 %v337
    %v1301 = vunpack.c.l.b16 %v338
    %v1302 = vunpack.c.h.b16 %v338
    %v1303 = vunpack.c.l.b16 %v339
    %v1304 = vunpack.c.h.b16 %v339
    %v1305 = vunpack.c.l.b16 %v340
    %v1306 = vunpack.c.h.b16 %v340
    %v1307 = vunpack.c.l.b16 %v341
    %v1308 = vunpack.c.h.b16 %v341
    %v1309 = vunpack.c.l.b16 %v342
    %v1310 = vunpack.c.h.b16 %v342
    %v1311 = vunpack.c.l.b16 %v343
    %v1312 = vunpack.c.h.b16 %v343
    %v1313 = vunpack.c.l.b16 %v344
    %v1314 = vunpack.c.h.b16 %v344
    %v1315 = vunpack.c.l.b16 %v345
    %v1316 = vunpack.c.h.b16 %v345
    %v1317 = vunpack.c.l.b16 %v346
    %v1318 = vunpack.c.h.b16 %v346
    %v1319 = vunpack.c.l.b16 %v347
    %v1320 = vunpack.c.h.b16 %v347
    %v1321 = vunpack.c.l.b16 %v348
    %v1322 = vunpack.c.h.b16 %v348
    %v1323 = vunpack.c.l.b16 %v349
    %v1324 = vunpack.c.h.b16 %v349
    %v1325 = vunpack.c.l.b16 %v350
    %v1326 = vunpack.c.h.b16 %v350
    %v1327 = vunpack.c.l.b16 %v351
    %v1328 = vunpack.c.h.b16 %v351
    %v1329 = vunpack.c.l.b16 %v352
    %v1330 = vunpack.c.h.b16 %v352
    %v1331 = vunpack.c.l.b16 %v353
    %v1332 = vunpack.c.h.b16 %v353
    %v1333 = vunpack.c.l.b16 %v354
    %v1334 = vunpack.c.h.b16 %v354
    %v1335 = vunpack.c.l.b16 %v355
    %v1336 = vunpack.c.h.b16 %v355
    %v1337 = vunpack.c.l.b16 %v356
    %v1338 = vunpack.c.h.b16 %v356
    %v1339 = vunpack.c.l.b16 %v357
    %v1340 = vunpack.c.h.b16 %v357
    %v1341 = vunpack.c.l.b16 %v358
    %v1342 = vunpack.c.h.b16 %v358
    %v1343 = vunpack.c.l.b16 %v359
    %v1344 = vunpack.c.h.b16 %v359
    %v1345 = vunpack.c.l.b16 %v360
    %v1346 = vunpack.c.h.b16 %v360
    %v1347 = vunpack.c.l.b16 %v361
    %v1348 = vunpack.c.h.b16 %v361
    %v1349 = vunpack.c.l.b16 %v362
    %v1350 = vunpack.c.h.b16 %v362
    %v1351 = vunpack.c.l.b16 %v363
    %v1352 = vunpack.c.h.b16 %v363
    %v1353 = vunpack.c.l.b16 %v364
    %v1354 = vunpack.c.h.b16 %v364
    %v1355 = vunpack.c.l.b16 %v365
    %v1356 = vunpack.c.h.b16 %v365
    %v1357 = vunpack.c.l.b16 %v366
    %v1358 = vunpack.c.h.b16 %v366
    %v1359 = vunpack.c.l.b16 %v367
    %v1360 = vunpack.c.h.b16 %v367
    %v1361 = vunpack.c.l.b16 %v368
    %v1362 = vunpack.c.h.b16 %v368
    %v1363 = vunpack.c.l.b16 %v369
    %v1364 = vunpack.c.h.b16 %v369
    %v1365 = vunpack.c.l.b16 %v370
    %v1366 = vunpack.c.h.b16 %v370
    %v1367 = vunpack.c.l.b16 %v371
    %v1368 = vunpack.c.h.b16 %v371
    %v1369 = vunpack.c.l.b16 %v372
    %v1370 = vunpack.c.h.b16 %v372
    %v1371 = vunpack.c.l.b16 %v373
    %v1372 = vunpack.c.h.b16 %v373
    %v1373 = vunpack.c.l.b16 %v374
    %v1374 = vunpack.c.h.b16 %v374
    %v1375 = vunpack.c.l.b16 %v375
    %v1376 = vunpack.c.h.b16 %v375
    %v1377 = vunpack.c.l.b16 %v376
    %v1378 = vunpack.c.h.b16 %v376
    %v1379 = vunpack.c.l.b16 %v377
    %v1380 = vunpack.c.h.b16 %v377
    %v1381 = vunpack.c.l.b16 %v378
    %v1382 = vunpack.c.h.b16 %v378
    %v1383 = vunpack.c.l.b16 %v379
    %v1384 = vunpack.c.h.b16 %v379
    %v1385 = vunpack.c.l.b16 %v380
    %v1386 = vunpack.c.h.b16 %v380
    %v1387 = vunpack.c.l.b16 %v381
    %v1388 = vunpack.c.h.b16 %v381
    %v1389 = vunpack.c.l.b16 %v382
    %v1390 = vunpack.c.h.b16 %v382
    %v1391 = vunpack.c.l.b16 %v383
    %v1392 = vunpack.c.h.b16 %v383
    %v1393 = vunpack.c.l.b16 %v384
    %v1394 = vunpack.c.h.b16 %v384
    %v1395 = vunpack.c.l.b16 %v385
    %v1396 = vunpack.c.h.b16 %v385
    %v1397 = vunpack.c.l.b16 %v386
    %v1398 = vunpack.c.h.b16 %v386
    %v1399 = vunpack.c.l.b16 %v387
    %v1400 = vunpack.c.h.b16 %v387
    %v1401 = vunpack.c.l.b16 %v388
    %v1402 = vunpack.c.h.b16 %v388
    %v1403 = vunpack.c.l.b16 %v389
    %v1404 = vunpack.c.h.b16 %v389
    %v1405 = vunpack.c.l.b16 %v390
    %v1406 = vunpack.c.h.b16 %v390
    %v1407 = vunpack.c.l.b16 %v391
    %v1408 = vunpack.c.h.b16 %v391
    %v1409 = vunpack.c.l.b16 %v392
    %v1410 = vunpack.c.h.b16 %v392
    %v1411 = vunpack.c.l.b16 %v393
    %v1412 = vunpack.c.h.b16 %v393
    %v1413 = vunpack.c.l.b16 %v394
    %v1414 = vunpack.c.h.b16 %v394
    %v1415 = vunpack.c.l.b16 %v395
    %v1416 = vunpack.c.h.b16 %v395
    %v1417 = vunpack.c.l.b16 %v396
    %v1418 = vunpack.c.h.b16 %v396
    %v1419 = vunpack.c.l.b16 %v397
    %v1420 = vunpack.c.h.b16 %v397
    %v1421 = vunpack.c.l.b16 %v398
    %v1422 = vunpack.c.h.b16 %v398
    %v1423 = vunpack.c.l.b16 %v399
    %v1424 = vunpack.c.h.b16 %v399
    %v1425 = vunpack.c.l.b16 %v400
    %v1426 = vunpack.c.h.b16 %v400
    %v1427 = vunpack.c.l.b16 %v401
    %v1428 = vunpack.c.h.b16 %v401
    %v1429 = vunpack.c.l.b16 %v402
    %v1430 = vunpack.c.h.b16 %v402
    %v1431 = vunpack.c.l.b16 %v403
    %v1432 = vunpack.c.h.b16 %v403
    %v1433 = vunpack.c.l.b16 %v404
    %v1434 = vunpack.c.h.b16 %v404
    %v1435 = vunpack.c.l.b16 %v405
    %v1436 = vunpack.c.h.b16 %v405
    %v1437 = vunpack.c.l.b16 %v406
    %v1438 = vunpack.c.h.b16 %v406
    %v1439 = vunpack.c.l.b16 %v407
    %v1440 = vunpack.c.h.b16 %v407
    %v1441 = vunpack.c.l.b16 %v408
    %v1442 = vunpack.c.h.b16 %v408
    %v1443 = vunpack.c.l.b16 %v409
    %v1444 = vunpack.c.h.b16 %v409
    %v1445 = vunpack.c.l.b16 %v410
    %v1446 = vunpack.c.h.b16 %v410
    %v1447 = vunpack.c.l.b16 %v411
    %v1448 = vunpack.c.h.b16 %v411
    %v1449 = vunpack.c.l.b16 %v412
    %v1450 = vunpack.c.h.b16 %v412
    %v1451 = vunpack.c.l.b16 %v413
    %v1452 = vunpack.c.h.b16 %v413
    %v1453 = vunpack.c.l.b16 %v414
    %v1454 = vunpack.c.h.b16 %v414
    %v1455 = vunpack.c.l.b16 %v415
    %v1456 = vunpack.c.h.b16 %v415
    %v1457 = vunpack.c.l.b16 %v416
    %v1458 = vunpack.c.h.b16 %v416
    %v1459 = vunpack.c.l.b16 %v417
    %v1460 = vunpack.c.h.b16 %v417
    %v1461 = vunpack.c.l.b16 %v418
    %v1462 = vunpack.c.h.b16 %v418
    %v1463 = vunpack.c.l.b16 %v419
    %v1464 = vunpack.c.h.b16 %v419
    %v1465 = vunpack.c.l.b16 %v420
    %v1466 = vunpack.c.h.b16 %v420
    %v1467 = vunpack.c.l.b16 %v421
    %v1468 = vunpack.c.h.b16 %v421
    %v1469 = vunpack.c.l.b16 %v422
    %v1470 = vunpack.c.h.b16 %v422
    %v1471 = vunpack.c.l.b16 %v423
    %v1472 = vunpack.c.h.b16 %v423
    %v1473 = vunpack.c.l.b16 %v424
    %v1474 = vunpack.c.h.b16 %v424
    %v1475 = vunpack.c.l.b16 %v425
    %v1476 = vunpack.c.h.b16 %v425
    %v1477 = vunpack.c.l.b16 %v426
    %v1478 = vunpack.c.h.b16 %v426
    %v1479 = vunpack.c.l.b16 %v427
    %v1480 = vunpack.c.h.b16 %v427
    %v1481 = vunpack.c.l.b16 %v428
    %v1482 = vunpack.c.h.b16 %v428
    %v1483 = vunpack.c.l.b16 %v429
    %v1484 = vunpack.c.h.b16 %v429
    %v1485 = vunpack.c.l.b16 %v430
    %v1486 = vunpack.c.h.b16 %v430
    %v1487 = vunpack.c.l.b16 %v431
    %v1488 = vunpack.c.h.b16 %v431
    %v1489 = vunpack.c.l.b16 %v432
    %v1490 = vunpack.c.h.b16 %v432
    %v1491 = vunpack.c.l.b16 %v433
    %v1492 = vunpack.c.h.b16 %v433
    %v1493 = vunpack.c.l.b16 %v434
    %v1494 = vunpack.c.h.b16 %v434
    %v1495 = vunpack.c.l.b16 %v435
    %v1496 = vunpack.c.h.b16 %v435
    %v1497 = vunpack.c.l.b16 %v436
    %v1498 = vunpack.c.h.b16 %v436
    %v1499 = vunpack.c.l.b16 %v437
    %v1500 = vunpack.c.h.b16 %v437
    %v1501 = vunpack.c.l.b16 %v438
    %v1502 = vunpack.c.h.b16 %v438
    %v1503 = vunpack.c.l.b16 %v439
    %v1504 = vunpack.c.h.b16 %v439
    %v1505 = vunpack.c.l.b16 %v440
    %v1506 = vunpack.c.h.b16 %v440
    %v1507 = vunpack.c.l.b16 %v441
    %v1508 = vunpack.c.h.b16 %v441
    %v1509 = vunpack.c.l.b16 %v442
    %v1510 = vunpack.c.h.b16 %v442
    %v1511 = vunpack.c.l.b16 %v443
    %v1512 = vunpack.c.h.b16 %v443
    %v1513 = vunpack.c.l.b16 %v444
    %v1514 = vunpack.c.h.b16 %v444
    %v1515 = vunpack.c.l.b16 %v445
    %v1516 = vunpack.c.h.b16 %v445
    %v1517 = vunpack.c.l.b16 %v446
    %v1518 = vunpack.c.h.b16 %v446
    %v1519 = vunpack.c.l.b16 %v447
    %v1520 = vunpack.c.h.b16 %v447
    %v1521 = vunpack.c.l.b16 %v448
    %v1522 = vunpack.c.h.b16 %v448
    %v1523 = vunpack.c.l.b16 %v449
    %v1524 = vunpack.c.h.b16 %v449
    %v1525 = vunpack.c.l.b16 %v450
    %v1526 = vunpack.c.h.b16 %v450
    %v1527 = vunpack.c.l.b16 %v451
    %v1528 = vunpack.c.h.b16 %v451
    %v1529 = vunpack.c.l.b16 %v452
    %v1530 = vunpack.c.h.b16 %v452
    %v1531 = vunpack.c.l.b16 %v453
    %v1532 = vunpack.c.h.b16 %v453
    %v1533 = vunpack.c.l.b16 %v454
    %v1534 = vunpack.c.h.b16 %v454
    %v1535 = vunpack.c.l.b16 %v455
    %v1536 = vunpack.c.h.b16 %v455
    %v1537 = vunpack.c.l.b16 %v456
    %v1538 = vunpack.c.h.b16 %v456
    %v1539 = vunpack.c.l.b16 %v457
    %v1540 = vunpack.c.h.b16 %v457
    %v1541 = vunpack.c.l.b16 %v458
    %v1542 = vunpack.c.h.b16 %v458
    %v1543 = vunpack.c.l.b16 %v459
    %v1544 = vunpack.c.h.b16 %v459
    %v1545 = vunpack.c.l.b16 %v460
    %v1546 = vunpack.c.h.b16 %v460
    %v1547 = vunpack.c.l.b16 %v461
    %v1548 = vunpack.c.h.b16 %v461
    %v1549 = vunpack.c.l.b16 %v462
    %v1550 = vunpack.c.h.b16 %v462
    %v1551 = vunpack.c.l.b16 %v463
    %v1552 = vunpack.c.h.b16 %v463
    %v1553 = vunpack.c.l.b16 %v464
    %v1554 = vunpack.c.h.b16 %v464
    %v1555 = vunpack.c.l.b16 %v465
    %v1556 = vunpack.c.h.b16 %v465
    %v1557 = vunpack.c.l.b16 %v466
    %v1558 = vunpack.c.h.b16 %v466
    %v1559 = vunpack.c.l.b16 %v467
    %v1560 = vunpack.c.h.b16 %v467
    %v1561 = vunpack.c.l.b16 %v468
    %v1562 = vunpack.c.h.b16 %v468
    %v1563 = vunpack.c.l.b16 %v469
    %v1564 = vunpack.c.h.b16 %v469
    %v1565 = vunpack.c.l.b16 %v470
    %v1566 = vunpack.c.h.b16 %v470
    %v1567 = vunpack.c.l.b16 %v471
    %v1568 = vunpack.c.h.b16 %v471
    %v1569 = vunpack.c.l.b16 %v472
    %v1570 = vunpack.c.h.b16 %v472
    %v1571 = vunpack.c.l.b16 %v473
    %v1572 = vunpack.c.h.b16 %v473
    %v1573 = vunpack.c.l.b16 %v474
    %v1574 = vunpack.c.h.b16 %v474
    %v1575 = vunpack.c.l.b16 %v475
    %v1576 = vunpack.c.h.b16 %v475
    %v1577 = vunpack.c.l.b16 %v476
    %v1578 = vunpack.c.h.b16 %v476
    %v1579 = vunpack.c.l.b16 %v477
    %v1580 = vunpack.c.h.b16 %v477
    %v1581 = vunpack.c.l.b16 %v478
    %v1582 = vunpack.c.h.b16 %v478
    %v1583 = vunpack.c.l.b16 %v479
    %v1584 = vunpack.c.h.b16 %v479
    %v1585 = vunpack.c.l.b16 %v480
    %v1586 = vunpack.c.h.b16 %v480
    %v1587 = vunpack.c.l.b16 %v481
    %v1588 = vunpack.c.h.b16 %v481
    %v1589 = vunpack.c.l.b16 %v482
    %v1590 = vunpack.c.h.b16 %v482
    %v1591 = vunpack.c.l.b16 %v483
    %v1592 = vunpack.c.h.b16 %v483
    %v1593 = vunpack.c.l.b16 %v484
    %v1594 = vunpack.c.h.b16 %v484
    %v1595 = vunpack.c.l.b16 %v485
    %v1596 = vunpack.c.h.b16 %v485
    %v1597 = vunpack.c.l.b16 %v486
    %v1598 = vunpack.c.h.b16 %v486
    %v1599 = vunpack.c.l.b16 %v487
    %v1600 = vunpack.c.h.b16 %v487
    %v1601 = vunpack.c.l.b16 %v488
    %v1602 = vunpack.c.h.b16 %v488
    %v1603 = vunpack.c.l.b16 %v489
    %v1604 = vunpack.c.h.b16 %v489
    %v1605 = vunpack.c.l.b16 %v490
    %v1606 = vunpack.c.h.b16 %v490
    %v1607 = vunpack.c.l.b16 %v491
    %v1608 = vunpack.c.h.b16 %v491
    %v1609 = vunpack.c.l.b16 %v492
    %v1610 = vunpack.c.h.b16 %v492
    %v1611 = vunpack.c.l.b16 %v493
    %v1612 = vunpack.c.h.b16 %v493
    %v1613 = vunpack.c.l.b16 %v494
    %v1614 = vunpack.c.h.b16 %v494
    %v1615 = vunpack.c.l.b16 %v495
    %v1616 = vunpack.c.h.b16 %v495
    %v1617 = vunpack.c.l.b16 %v496
    %v1618 = vunpack.c.h.b16 %v496
    %v1619 = vunpack.c.l.b16 %v497
    %v1620 = vunpack.c.h.b16 %v497
    %v1621 = vunpack.c.l.b16 %v498
    %v1622 = vunpack.c.h.b16 %v498
    %v1623 = vunpack.c.l.b16 %v499
    %v1624 = vunpack.c.h.b16 %v499
    %v1625 = vunpack.c.l.b16 %v500
    %v1626 = vunpack.c.h.b16 %v500
    %v1627 = vunpack.c.l.b16 %v501
    %v1628 = vunpack.c.h.b16 %v501
    %v1629 = vunpack.c.l.b16 %v502
    %v1630 = vunpack.c.h.b16 %v502
    %v1631 = vunpack.c.l.b16 %v503
    %v1632 = vunpack.c.h.b16 %v503
    %v1633 = vunpack.c.l.b16 %v504
    %v1634 = vunpack.c.h.b16 %v504
    %v1635 = vunpack.c.l.b16 %v505
    %v1636 = vunpack.c.h.b16 %v505
    %v1637 = vunpack.c.l.b16 %v506
    %v1638 = vunpack.c.h.b16 %v506
    %v1639 = vunpack.c.l.b16 %v507
    %v1640 = vunpack.c.h.b16 %v507
    %v1641 = vunpack.c.l.b16 %v508
    %v1642 = vunpack.c.h.b16 %v508
    %v1643 = vunpack.c.l.b16 %v509
    %v1644 = vunpack.c.h.b16 %v509
    %v1645 = vunpack.c.l.b16 %v510
    %v1646 = vunpack.c.h.b16 %v510
    %v1647 = vunpack.c.l.b16 %v511
    %v1648 = vunpack.c.h.b16 %v511
    %v1649 = vunpack.c.l.b16 %v512
    %v1650 = vunpack.c.h.b16 %v512
    %v1651 = vunpack.c.l.b16 %v513
    %v1652 = vunpack.c.h.b16 %v513
    %v1653 = vunpack.c.l.b16 %v514
    %v1654 = vunpack.c.h.b16 %v514
    %v1655 = vunpack.c.l.b16 %v515
    %v1656 = vunpack.c.h.b16 %v515
    %v1657 = vunpack.c.l.b16 %v516
    %v1658 = vunpack.c.h.b16 %v516
    %v1659 = vunpack.c.l.b16 %v517
    %v1660 = vunpack.c.h.b16 %v517
    %v1661 = vunpack.c.l.b16 %v518
    %v1662 = vunpack.c.h.b16 %v518
    %v1663 = vunpack.c.l.b16 %v519
    %v1664 = vunpack.c.h.b16 %v519
    %v1665 = vunpack.c.l.b16 %v520
    %v1666 = vunpack.c.h.b16 %v520
    %v1667 = vunpack.c.l.b16 %v521
    %v1668 = vunpack.c.h.b16 %v521
    %v1669 = vunpack.c.l.b16 %v522
    %v1670 = vunpack.c.h.b16 %v522
    %v1671 = vunpack.c.l.b16 %v523
    %v1672 = vunpack.c.h.b16 %v523
    %v1673 = vunpack.c.l.b16 %v524
    %v1674 = vunpack.c.h.b16 %v524
    %v1675 = vunpack.c.l.b16 %v525
    %v1676 = vunpack.c.h.b16 %v525
    %v1677 = vunpack.c.l.b16 %v526
    %v1678 = vunpack.c.h.b16 %v526
    %v1679 = vunpack.c.l.b16 %v527
    %v1680 = vunpack.c.h.b16 %v527
    %v1681 = vunpack.c.l.b16 %v528
    %v1682 = vunpack.c.h.b16 %v528
    %v1683 = vunpack.c.l.b16 %v529
    %v1684 = vunpack.c.h.b16 %v529
    %v1685 = vunpack.c.l.b16 %v530
    %v1686 = vunpack.c.h.b16 %v530
    %v1687 = vunpack.c.l.b16 %v531
    %v1688 = vunpack.c.h.b16 %v531
    %v1689 = vunpack.c.l.b16 %v532
    %v1690 = vunpack.c.h.b16 %v532
    %v1691 = vunpack.c.l.b16 %v533
    %v1692 = vunpack.c.h.b16 %v533
    %v1693 = vunpack.c.l.b16 %v534
    %v1694 = vunpack.c.h.b16 %v534
    %v1695 = vunpack.c.l.b16 %v535
    %v1696 = vunpack.c.h.b16 %v535
    %v1697 = vunpack.c.l.b16 %v536
    %v1698 = vunpack.c.h.b16 %v536
    %v1699 = vunpack.c.l.b16 %v537
    %v1700 = vunpack.c.h.b16 %v537
    %v1701 = vunpack.c.l.b16 %v538
    %v1702 = vunpack.c.h.b16 %v538
    %v1703 = vunpack.c.l.b16 %v539
    %v1704 = vunpack.c.h.b16 %v539
    %v1705 = vunpack.c.l.b16 %v540
    %v1706 = vunpack.c.h.b16 %v540
    %v1707 = vunpack.c.l.b16 %v541
    %v1708 = vunpack.c.h.b16 %v541
    %v1709 = vunpack.c.l.b16 %v542
    %v1710 = vunpack.c.h.b16 %v542
    %v1711 = vunpack.c.l.b16 %v543
    %v1712 = vunpack.c.h.b16 %v543
    %v1713 = vunpack.c.l.b16 %v544
    %v1714 = vunpack.c.h.b16 %v544
    %v1715 = vunpack.c.l.b16 %v545
    %v1716 = vunpack.c.h.b16 %v545
    %v1717 = vunpack.c.l.b16 %v546
    %v1718 = vunpack.c.h.b16 %v546
    %v1719 = vunpack.c.l.b16 %v547
    %v1720 = vunpack.c.h.b16 %v547
    %v1721 = vpack.c.b16 %v961, %v953
    %v1722 = vpack.c.b16 %v962, %v954
    %v1723 = vpack.c.b16 %v963, %v955
    %v1724 = vpack.c.b16 %v964, %v956
    %v1725 = vpack.c.b16 %v965, %v957
    %v1726 = vpack.c.b16 %v966, %v958
    %v1727 = vpack.c.b16 %v967, %v959
    %v1728 = vpack.c.b16 %v968, %v960
    %v1729 = vpack.c.b16 %v977, %v969
    %v1730 = vpack.c.b16 %v978, %v970
    %v1731 = vpack.c.b16 %v979, %v971
    %v1732 = vpack.c.b16 %v980, %v972
    %v1733 = vpack.c.b16 %v981, %v973
    %v1734 = vpack.c.b16 %v982, %v974
    %v1735 = vpack.c.b16 %v983, %v975
    %v1736 = vpack.c.b16 %v984, %v976
    %v1737 = vpack.c.b16 %v993, %v985
    %v1738 = vpack.c.b16 %v994, %v986
    %v1739 = vpack.c.b16 %v995, %v987
    %v1740 = vpack.c.b16 %v996, %v988
    %v1741 = vpack.c.b16 %v997, %v989
    %v1742 = vpack.c.b16 %v998, %v990
    %v1743 = vpack.c.b16 %v999, %v991
    %v1744 = vpack.c.b16 %v1000, %v992
    %v1745 = vpack.c.b16 %v1009, %v1001
    %v1746 = vpack.c.b16 %v1010, %v1002
    %v1747 = vpack.c.b16 %v1011, %v1003
    %v1748 = vpack.c.b16 %v1012, %v1004
    %v1749 = vpack.c.b16 %v1013, %v1005
    %v1750 = vpack.c.b16 %v1014, %v1006
    %v1751 = vpack.c.b16 %v1015, %v1007
    %v1752 = vpack.c.b16 %v1016, %v1008
    %v1753 = vpack.c.b16 %v1025, %v1017
    %v1754 = vpack.c.b16 %v1026, %v1018
    %v1755 = vpack.c.b16 %v1027, %v1019
    %v1756 = vpack.c.b16 %v1028, %v1020
    %v1757 = vpack.c.b16 %v1029, %v1021
    %v1758 = vpack.c.b16 %v1030, %v1022
    %v1759 = vpack.c.b16 %v1031, %v1023
    %v1760 = vpack.c.b16 %v1032, %v1024
    %v1761 = vpack.c.b16 %v1041, %v1033
    %v1762 = vpack.c.b16 %v1042, %v1034
    %v1763 = vpack.c.b16 %v1043, %v1035
    %v1764 = vpack.c.b16 %v1044, %v1036
    %v1765 = vpack.c.b16 %v1045, %v1037
    %v1766 = vpack.c.b16 %v1046, %v1038
    %v1767 = vpack.c.b16 %v1047, %v1039
    %v1768 = vpack.c.b16 %v1048, %v1040
    %v1769 = vpack.c.b16 %v1057, %v1049
    %v1770 = vpack.c.b16 %v1058, %v1050
    %v1771 = vpack.c.b16 %v1059, %v1051
    %v1772 = vpack.c.b16 %v1060, %v1052
    %v1773 = vpack.c.b16 %v1061, %v1053
    %v1774 = vpack.c.b16 %v1062, %v1054
    %v1775 = vpack.c.b16 %v1063, %v1055
    %v1776 = vpack.c.b16 %v1064, %v1056
    %v1777 = vpack.c.b16 %v1073, %v1065
    %v1778 = vpack.c.b16 %v1074, %v1066
    %v1779 = vpack.c.b16 %v1075, %v1067
    %v1780 = vpack.c.b16 %v1076, %v1068
    %v1781 = vpack.c.b16 %v1077, %v1069
    %v1782 = vpack.c.b16 %v1078, %v1070
    %v1783 = vpack.c.b16 %v1079, %v1071
    %v1784 = vpack.c.b16 %v1080, %v1072
    %v1785 = vpack.c.b16 %v1089, %v1081
    %v1786 = vpack.c.b16 %v1090, %v1082
    %v1787 = vpack.c.b16 %v1091, %v1083
    %v1788 = vpack.c.b16 %v1092, %v1084
    %v1789 = vpack.c.b16 %v1093, %v1085
    %v1790 = vpack.c.b16 %v1094, %v1086
    %v1791 = vpack.c.b16 %v1095, %v1087
    %v1792 = vpack.c.b16 %v1096, %v1088
    %v1793 = vpack.c.b16 %v1105, %v1097
    %v1794 = vpack.c.b16 %v1106, %v1098
    %v1795 = vpack.c.b16 %v1107, %v1099
    %v1796 = vpack.c.b16 %v1108, %v1100
    %v1797 = vpack.c.b16 %v1109, %v1101
    %v1798 = vpack.c.b16 %v1110, %v1102
    %v1799 = vpack.c.b16 %v1111, %v1103
    %v1800 = vpack.c.b16 %v1112, %v1104
    %v1801 = vpack.c.b16 %v1121, %v1113
    %v1802 = vpack.c.b16 %v1122, %v1114
    %v1803 = vpack.c.b16 %v1123, %v1115
    %v1804 = vpack.c.b16 %v1124, %v1116
    %v1805 = vpack.c.b16 %v1125, %v1117
    %v1806 = vpack.c.b16 %v1126, %v1118
    %v1807 = vpack.c.b16 %v1127, %v1119
    %v1808 = vpack.c.b16 %v1128, %v1120
    %v1809 = vpack.c.b16 %v1137, %v1129
    %v1810 = vpack.c.b16 %v1138, %v1130
    %v1811 = vpack.c.b16 %v1139, %v1131
    %v1812 = vpack.c.b16 %v1140, %v1132
    %v1813 = vpack.c.b16 %v1141, %v1133
    %v1814 = vpack.c.b16 %v1142, %v1134
    %v1815 = vpack.c.b16 %v1143, %v1135
    %v1816 = vpack.c.b16 %v1144, %v1136
    %v1817 = vpack.c.b16 %v1153, %v1145
    %v1818 = vpack.c.b16 %v1154, %v1146
    %v1819 = vpack.c.b16 %v1155, %v1147
    %v1820 = vpack.c.b16 %v1156, %v1148
    %v1821 = vpack.c.b16 %v1157, %v1149
    %v1822 = vpack.c.b16 %v1158, %v1150
    %v1823 = vpack.c.b16 %v1159, %v1151
    %v1824 = vpack.c.b16 %v1160, %v1152
    %v1825 = vpack.c.b16 %v1169, %v1161
    %v1826 = vpack.c.b16 %v1170, %v1162
    %v1827 = vpack.c.b16 %v1171, %v1163
    %v1828 = vpack.c.b16 %v1172, %v1164
    %v1829 = vpack.c.b16 %v1173, %v1165
    %v1830 = vpack.c.b16 %v1174, %v1166
    %v1831 = vpack.c.b16 %v1175, %v1167
    %v1832 = vpack.c.b16 %v1176, %v1168
    %v1833 = vpack.c.b16 %v1185, %v1177
    %v1834 = vpack.c.b16 %v1186, %v1178
    %v1835 = vpack.c.b16 %v1187, %v1179
    %v1836 = vpack.c.b16 %v1188, %v1180
    %v1837 = vpack.c.b16 %v1189, %v1181
    %v1838 = vpack.c.b16 %v1190, %v1182
    %v1839 = vpack.c.b16 %v1191, %v1183
    %v1840 = vpack.c.b16 %v1192, %v1184
    %v1841 = vpack.c.b16 %v1201, %v1193
    %v1842 = vpack.c.b16 %v1202, %v1194
    %v1843 = vpack.c.b16 %v1203, %v1195
    %v1844 = vpack.c.b16 %v1204, %v1196
    %v1845 = vpack.c.b16 %v1205, %v1197
    %v1846 = vpack.c.b16 %v1206, %v1198
    %v1847 = vpack.c.b16 %v1207, %v1199
    %v1848 = vpack.c.b16 %v1208, %v1200
    %v1849 = vpack.c.b16 %v1217, %v1209
    %v1850 = vpack.c.b16 %v1218, %v1210
    %v1851 = vpack.c.b16 %v1219, %v1211
    %v1852 = vpack.c.b16 %v1220, %v1212
    %v1853 = vpack.c.b16 %v1221, %v1213
    %v1854 = vpack.c.b16 %v1222, %v1214
    %v1855 = vpack.c.b16 %v1223, %v1215
    %v1856 = vpack.c.b16 %v1224, %v1216
    %v1857 = vpack.c.b16 %v1233, %v1225
    %v1858 = vpack.c.b16 %v1234, %v1226
    %v1859 = vpack.c.b16 %v1235, %v1227
    %v1860 = vpack.c.b16 %v1236, %v1228
    %v1861 = vpack.c.b16 %v1237, %v1229
    %v1862 = vpack.c.b16 %v1238, %v1230
    %v1863 = vpack.c.b16 %v1239, %v1231
    %v1864 = vpack.c.b16 %v1240, %v1232
    %v1865 = vpack.c.b16 %v1249, %v1241
    %v1866 = vpack.c.b16 %v1250, %v1242
    %v1867 = vpack.c.b16 %v1251, %v1243
    %v1868 = vpack.c.b16 %v1252, %v1244
    %v1869 = vpack.c.b16 %v1253, %v1245
    %v1870 = vpack.c.b16 %v1254, %v1246
    %v1871 = vpack.c.b16 %v1255, %v1247
    %v1872 = vpack.c.b16 %v1256, %v1248
    %v1873 = vpack.c.b16 %v1265, %v1257
    %v1874 = vpack.c.b16 %v1266, %v1258
    %v1875 = vpack.c.b16 %v1267, %v1259
    %v1876 = vpack.c.b16 %v1268, %v1260
    %v1877 = vpack.c.b16 %v1269, %v1261
    %v1878 = vpack.c.b16 %v1270, %v1262
    %v1879 = vpack.c.b16 %v1271, %v1263
    %v1880 = vpack.c.b16 %v1272, %v1264
    %v1881 = vpack.c.b16 %v1281, %v1273
    %v1882 = vpack.c.b16 %v1282, %v1274
    %v1883 = vpack.c.b16 %v1283, %v1275
    %v1884 = vpack.c.b16 %v1284, %v1276
    %v1885 = vpack.c.b16 %v1285, %v1277
    %v1886 = vpack.c.b16 %v1286, %v1278
    %v1887 = vpack.c.b16 %v1287, %v1279
    %v1888 = vpack.c.b16 %v1288, %v1280
    %v1889 = vpack.c.b16 %v1297, %v1289
    %v1890 = vpack.c.b16 %v1298, %v1290
    %v1891 = vpack.c.b16 %v1299, %v1291
    %v1892 = vpack.c.b16 %v1300, %v1292
    %v1893 = vpack.c.b16 %v1301, %v1293
    %v1894 = vpack.c.b16 %v1302, %v1294
    %v1895 = vpack.c.b16 %v1303, %v1295
    %v1896 = vpack.c.b16 %v1304, %v1296
    %v1897 = vpack.c.b16 %v1313, %v1305
    %v1898 = vpack.c.b16 %v1314, %v1306
    %v1899 = vpack.c.b16 %v1315, %v1307
    %v1900 = vpack.c.b16 %v1316, %v1308
    %v1901 = vpack.c.b16 %v1317, %v1309
    %v1902 = vpack.c.b16 %v1318, %v1310
    %v1903 = vpack.c.b16 %v1319, %v1311
    %v1904 = vpack.c.b16 %v1320, %v1312
    %v1905 = vpack.c.b16 %v1329, %v1321
    %v1906 = vpack.c.b16 %v1330, %v1322
    %v1907 = vpack.c.b16 %v1331, %v1323
    %v1908 = vpack.c.b16 %v1332, %v1324
    %v1909 = vpack.c.b16 %v1333, %v1325
    %v1910 = vpack.c.b16 %v1334, %v1326
    %v1911 = vpack.c.b16 %v1335, %v1327
    %v1912 = vpack.c.b16 %v1336, %v1328
    %v1913 = vpack.c.b16 %v1345, %v1337
    %v1914 = vpack.c.b16 %v1346, %v1338
    %v1915 = vpack.c.b16 %v1347, %v1339
    %v1916 = vpack.c.b16 %v1348, %v1340
    %v1917 = vpack.c.b16 %v1349, %v1341
    %v1918 = vpack.c.b16 %v1350, %v1342
    %v1919 = vpack.c.b16 %v1351, %v1343
    %v1920 = vpack.c.b16 %v1352, %v1344
    %v1921 = vpack.c.b16 %v1361, %v1353
    %v1922 = vpack.c.b16 %v1362, %v1354
    %v1923 = vpack.c.b16 %v1363, %v1355
    %v1924 = vpack.c.b16 %v1364, %v1356
    %v1925 = vpack.c.b16 %v1365, %v1357
    %v1926 = vpack.c.b16 %v1366, %v1358
    %v1927 = vpack.c.b16 %v1367, %v1359
    %v1928 = vpack.c.b16 %v1368, %v1360
    %v1929 = vpack.c.b16 %v1377, %v1369
    %v1930 = vpack.c.b16 %v1378, %v1370
    %v1931 = vpack.c.b16 %v1379, %v1371
    %v1932 = vpack.c.b16 %v1380, %v1372
    %v1933 = vpack.c.b16 %v1381, %v1373
    %v1934 = vpack.c.b16 %v1382, %v1374
    %v1935 = vpack.c.b16 %v1383, %v1375
    %v1936 = vpack.c.b16 %v1384, %v1376
    %v1937 = vpack.c.b16 %v1393, %v1385
    %v1938 = vpack.c.b16 %v1394, %v1386
    %v1939 = vpack.c.b16 %v1395, %v1387
    %v1940 = vpack.c.b16 %v1396, %v1388
    %v1941 = vpack.c.b16 %v1397, %v1389
    %v1942 = vpack.c.b16 %v1398, %v1390
    %v1943 = vpack.c.b16 %v1399, %v1391
    %v1944 = vpack.c.b16 %v1400, %v1392
    %v1945 = vpack.c.b16 %v1409, %v1401
    %v1946 = vpack.c.b16 %v1410, %v1402
    %v1947 = vpack.c.b16 %v1411, %v1403
    %v1948 = vpack.c.b16 %v1412, %v1404
    %v1949 = vpack.c.b16 %v1413, %v1405
    %v1950 = vpack.c.b16 %v1414, %v1406
    %v1951 = vpack.c.b16 %v1415, %v1407
    %v1952 = vpack.c.b16 %v1416, %v1408
    %v1953 = vpack.c.b16 %v1425, %v1417
    %v1954 = vpack.c.b16 %v1426, %v1418
    %v1955 = vpack.c.b16 %v1427, %v1419
    %v1956 = vpack.c.b16 %v1428, %v1420
    %v1957 = vpack.c.b16 %v1429, %v1421
    %v1958 = vpack.c.b16 %v1430, %v1422
    %v1959 = vpack.c.b16 %v1431, %v1423
    %v1960 = vpack.c.b16 %v1432, %v1424
    %v1961 = vpack.c.b16 %v1441, %v1433
    %v1962 = vpack.c.b16 %v1442, %v1434
    %v1963 = vpack.c.b16 %v1443, %v1435
    %v1964 = vpack.c.b16 %v1444, %v1436
    %v1965 = vpack.c.b16 %v1445, %v1437
    %v1966 = vpack.c.b16 %v1446, %v1438
    %v1967 = vpack.c.b16 %v1447, %v1439
    %v1968 = vpack.c.b16 %v1448, %v1440
    %v1969 = vpack.c.b16 %v1457, %v1449
    %v1970 = vpack.c.b16 %v1458, %v1450
    %v1971 = vpack.c.b16 %v1459, %v1451
    %v1972 = vpack.c.b16 %v1460, %v1452
    %v1973 = vpack.c.b16 %v1461, %v1453
    %v1974 = vpack.c.b16 %v1462, %v1454
    %v1975 = vpack.c.b16 %v1463, %v1455
    %v1976 = vpack.c.b16 %v1464, %v1456
    %v1977 = vpack.c.b16 %v1473, %v1465
    %v1978 = vpack.c.b16 %v1474, %v1466
    %v1979 = vpack.c.b16 %v1475, %v1467
    %v1980 = vpack.c.b16 %v1476, %v1468
    %v1981 = vpack.c.b16 %v1477, %v1469
    %v1982 = vpack.c.b16 %v1478, %v1470
    %v1983 = vpack.c.b16 %v1479, %v1471
    %v1984 = vpack.c.b16 %v1480, %v1472
    %v1985 = vpack.c.b16 %v1489, %v1481
    %v1986 = vpack.c.b16 %v1490, %v1482
    %v1987 = vpack.c.b16 %v1491, %v1483
    %v1988 = vpack.c.b16 %v1492, %v1484
    %v1989 = vpack.c.b16 %v1493, %v1485
    %v1990 = vpack.c.b16 %v1494, %v1486
    %v1991 = vpack.c.b16 %v1495, %v1487
    %v1992 = vpack.c.b16 %v1496, %v1488
    %v1993 = vpack.c.b16 %v1505, %v1497
    %v1994 = vpack.c.b16 %v1506, %v1498
    %v1995 = vpack.c.b16 %v1507, %v1499
    %v1996 = vpack.c.b16 %v1508, %v1500
    %v1997 = vpack.c.b16 %v1509, %v1501
    %v1998 = vpack.c.b16 %v1510, %v1502
    %v1999 = vpack.c.b16 %v1511, %v1503
    %v2000 = vpack.c.b16 %v1512, %v1504
    %v2001 = vpack.c.b16 %v1521, %v1513
    %v2002 = vpack.c.b16 %v1522, %v1514
    %v2003 = vpack.c.b16 %v1523, %v1515
    %v2004 = vpack.c.b16 %v1524, %v1516
    %v2005 = vpack.c.b16 %v1525, %v1517
    %v2006 = vpack.c.b16 %v1526, %v1518
    %v2007 = vpack.c.b16 %v1527, %v1519
    %v2008 = vpack.c.b16 %v1528, %v1520
    %v2009 = vpack.c.b16 %v1537, %v1529
    %v2010 = vpack.c.b16 %v1538, %v1530
    %v2011 = vpack.c.b16 %v1539, %v1531
    %v2012 = vpack.c.b16 %v1540, %v1532
    %v2013 = vpack.c.b16 %v1541, %v1533
    %v2014 = vpack.c.b16 %v1542, %v1534
    %v2015 = vpack.c.b16 %v1543, %v1535
    %v2016 = vpack.c.b16 %v1544, %v1536
    %v2017 = vpack.c.b16 %v1553, %v1545
    %v2018 = vpack.c.b16 %v1554, %v1546
    %v2019 = vpack.c.b16 %v1555, %v1547
    %v2020 = vpack.c.b16 %v1556, %v1548
    %v2021 = vpack.c.b16 %v1557, %v1549
    %v2022 = vpack.c.b16 %v1558, %v1550
    %v2023 = vpack.c.b16 %v1559, %v1551
    %v2024 = vpack.c.b16 %v1560, %v1552
    %v2025 = vpack.c.b16 %v1569, %v1561
    %v2026 = vpack.c.b16 %v1570, %v1562
    %v2027 = vpack.c.b16 %v1571, %v1563
    %v2028 = vpack.c.b16 %v1572, %v1564
    %v2029 = vpack.c.b16 %v1573, %v1565
    %v2030 = vpack.c.b16 %v1574, %v1566
    %v2031 = vpack.c.b16 %v1575, %v1567
    %v2032 = vpack.c.b16 %v1576, %v1568
    %v2033 = vpack.c.b16 %v1585, %v1577
    %v2034 = vpack.c.b16 %v1586, %v1578
    %v2035 = vpack.c.b16 %v1587, %v1579
    %v2036 = vpack.c.b16 %v1588, %v1580
    %v2037 = vpack.c.b16 %v1589, %v1581
    %v2038 = vpack.c.b16 %v1590, %v1582
    %v2039 = vpack.c.b16 %v1591, %v1583
    %v2040 = vpack.c.b16 %v1592, %v1584
    %v2041 = vpack.c.b16 %v1601, %v1593
    %v2042 = vpack.c.b16 %v1602, %v1594
    %v2043 = vpack.c.b16 %v1603, %v1595
    %v2044 = vpack.c.b16 %v1604, %v1596
    %v2045 = vpack.c.b16 %v1605, %v1597
    %v2046 = vpack.c.b16 %v1606, %v1598
    %v2047 = vpack.c.b16 %v1607, %v1599
    %v2048 = vpack.c.b16 %v1608, %v1600
    %v2049 = vpack.c.b16 %v1617, %v1609
    %v2050 = vpack.c.b16 %v1618, %v1610
    %v2051 = vpack.c.b16 %v1619, %v1611
    %v2052 = vpack.c.b16 %v1620, %v1612
    %v2053 = vpack.c.b16 %v1621, %v1613
    %v2054 = vpack.c.b16 %v1622, %v1614
    %v2055 = vpack.c.b16 %v1623, %v1615
    %v2056 = vpack.c.b16 %v1624, %v1616
    %v2057 = vpack.c.b16 %v1633, %v1625
    %v2058 = vpack.c.b16 %v1634, %v1626
    %v2059 = vpack.c.b16 %v1635, %v1627
    %v2060 = vpack.c.b16 %v1636, %v1628
    %v2061 = vpack.c.b16 %v1637, %v1629
    %v2062 = vpack.c.b16 %v1638, %v1630
    %v2063 = vpack.c.b16 %v1639, %v1631
    %v2064 = vpack.c.b16 %v1640, %v1632
    %v2065 = vpack.c.b16 %v1649, %v1641
    %v2066 = vpack.c.b16 %v1650, %v1642
    %v2067 = vpack.c.b16 %v1651, %v1643
    %v2068 = vpack.c.b16 %v1652, %v1644
    %v2069 = vpack.c.b16 %v1653, %v1645
    %v2070 = vpack.c.b16 %v1654, %v1646
    %v2071 = vpack.c.b16 %v1655, %v1647
    %v2072 = vpack.c.b16 %v1656, %v1648
    %v2073 = vpack.c.b16 %v1665, %v1657
    %v2074 = vpack.c.b16 %v1666, %v1658
    %v2075 = vpack.c.b16 %v1667, %v1659
    %v2076 = vpack.c.b16 %v1668, %v1660
    %v2077 = vpack.c.b16 %v1669, %v1661
    %v2078 = vpack.c.b16 %v1670, %v1662
    %v2079 = vpack.c.b16 %v1671, %v1663
    %v2080 = vpack.c.b16 %v1672, %v1664
    %v2081 = vpack.c.b16 %v1681, %v1673
    %v2082 = vpack.c.b16 %v1682, %v1674
    %v2083 = vpack.c.b16 %v1683, %v1675
    %v2084 = vpack.c.b16 %v1684, %v1676
    %v2085 = vpack.c.b16 %v1685, %v1677
    %v2086 = vpack.c.b16 %v1686, %v1678
    %v2087 = vpack.c.b16 %v1687, %v1679
    %v2088 = vpack.c.b16 %v1688, %v1680
    %v2089 = vpack.c.b16 %v1697, %v1689
    %v2090 = vpack.c.b16 %v1698, %v1690
    %v2091 = vpack.c.b16 %v1699, %v1691
    %v2092 = vpack.c.b16 %v1700, %v1692
    %v2093 = vpack.c.b16 %v1701, %v1693
    %v2094 = vpack.c.b16 %v1702, %v1694
    %v2095 = vpack.c.b16 %v1703, %v1695
    %v2096 = vpack.c.b16 %v1704, %v1696
    %v2097 = vpack.c.b16 %v1713, %v1705
    %v2098 = vpack.c.b16 %v1714, %v1706
    %v2099 = vpack.c.b16 %v1715, %v1707
    %v2100 = vpack.c.b16 %v1716, %v1708
    %v2101 = vpack.c.b16 %v1717, %v1709
    %v2102 = vpack.c.b16 %v1718, %v1710
    %v2103 = vpack.c.b16 %v1719, %v1711
    %v2104 = vpack.c.b16 %v1720, %v1712
    %2489 = vmatprep.subr.bf16.mxu0 %v1778
    %2490 = vmatpush1.bf16.msra.mxu0 %v1777
    %2491 = vmatprep.subr.bf16.mxu0 %v1770
    %2492 = vmatpush1.bf16.msra.mxu0 %v1769
    %2493 = vmatprep.subr.bf16.mxu0 %v1762
    %2494 = vmatpush1.bf16.msra.mxu0 %v1761
    %2495 = vmatprep.subr.bf16.mxu0 %v1754
    %2496 = vmatpush1.bf16.msra.mxu0 %v1753
    %2497 = vmatprep.subr.bf16.mxu0 %v1746
    %2498 = vmatpush1.bf16.msra.mxu0 %v1745
    %2499 = vmatprep.subr.bf16.mxu0 %v1738
    %2500 = vmatpush1.bf16.msra.mxu0 %v1737
    %2501 = vmatprep.subr.bf16.mxu0 %v1730
    %2502 = vmatpush1.bf16.msra.mxu0 %v1729
    %2503 = vmatprep.subr.bf16.mxu0 %v1722
    %2504 = vmatpush1.bf16.msra.mxu0 %v1721
    %2505 = vmatprep.subr.bf16.mxu0 %v1842
    %2506 = vmatpush2.bf16.msra.mxu0 %v1841
    %2507 = vmatprep.subr.bf16.mxu0 %v1834
    %2508 = vmatpush2.bf16.msra.mxu0 %v1833
    %2509 = vmatprep.subr.bf16.mxu0 %v1826
    %2510 = vmatpush2.bf16.msra.mxu0 %v1825
    %2511 = vmatprep.subr.bf16.mxu0 %v1818
    %2512 = vmatpush2.bf16.msra.mxu0 %v1817
    %2513 = vmatprep.subr.bf16.mxu0 %v1810
    %2514 = vmatpush2.bf16.msra.mxu0 %v1809
    %2515 = vmatprep.subr.bf16.mxu0 %v1802
    %2516 = vmatpush2.bf16.msra.mxu0 %v1801
    %2517 = vmatprep.subr.bf16.mxu0 %v1794
    %2518 = vmatpush2.bf16.msra.mxu0 %v1793
    %2519 = vmatprep.subr.bf16.mxu0 %v1786
    %2520 = vmatpush2.bf16.msra.mxu0 %v1785
    %2521 = vmatprep.mubr.bf16.mxu0 %v558
    %2522 = vmatmul.mubr.bf16.gmra.mxu0 %v557
    %v2523 = vpop.f32.mrf.mxu0
    %v2524 = vadd.f32 0.0, %v2523
    %v2525 = vpop.f32.mrf.mxu0
    %v2526 = vadd.f32 0.0, %v2525
    %v2527 = vpop.f32.mrf.mxu0
    %v2528 = vpop.f32.mrf.mxu0
    %2529 = vdwg.mxu0
    %2530 = vmatprep.subr.bf16.mxu0 %v1906
    %2531 = vmatpush1.bf16.msra.mxu0 %v1905
    %2532 = vmatprep.subr.bf16.mxu0 %v1898
    %2533 = vmatpush1.bf16.msra.mxu0 %v1897
    %2534 = vmatprep.subr.bf16.mxu0 %v1890
    %2535 = vmatpush1.bf16.msra.mxu0 %v1889
    %2536 = vmatprep.subr.bf16.mxu0 %v1882
    %2537 = vmatpush1.bf16.msra.mxu0 %v1881
    %2538 = vmatprep.subr.bf16.mxu0 %v1874
    %2539 = vmatpush1.bf16.msra.mxu0 %v1873
    %2540 = vmatprep.subr.bf16.mxu0 %v1866
    %2541 = vmatpush1.bf16.msra.mxu0 %v1865
    %2542 = vmatprep.subr.bf16.mxu0 %v1858
    %2543 = vmatpush1.bf16.msra.mxu0 %v1857
    %2544 = vmatprep.subr.bf16.mxu0 %v1850
    %2545 = vmatpush1.bf16.msra.mxu0 %v1849
    %2546 = vmatprep.subr.bf16.mxu0 %v1970
    %2547 = vmatpush2.bf16.msra.mxu0 %v1969
    %2548 = vmatprep.subr.bf16.mxu0 %v1962
    %2549 = vmatpush2.bf16.msra.mxu0 %v1961
    %2550 = vmatprep.subr.bf16.mxu0 %v1954
    %2551 = vmatpush2.bf16.msra.mxu0 %v1953
    %2552 = vmatprep.subr.bf16.mxu0 %v1946
    %2553 = vmatpush2.bf16.msra.mxu0 %v1945
    %2554 = vmatprep.subr.bf16.mxu0 %v1938
    %2555 = vmatpush2.bf16.msra.mxu0 %v1937
    %2556 = vmatprep.subr.bf16.mxu0 %v1930
    %2557 = vmatpush2.bf16.msra.mxu0 %v1929
    %2558 = vmatprep.subr.bf16.mxu0 %v1922
    %2559 = vmatpush2.bf16.msra.mxu0 %v1921
    %2560 = vmatprep.subr.bf16.mxu0 %v1914
    %2561 = vmatpush2.bf16.msra.mxu0 %v1913
    %2562 = vmatprep.mubr.bf16.mxu0 %v560
    %2563 = vmatmul.mubr.bf16.gmra.mxu0 %v559
    %v2564 = vpop.f32.mrf.mxu0
    %v2565 = vadd.f32 %v2524, %v2564
    %v2566 = vpop.f32.mrf.mxu0
    %v2567 = vadd.f32 %v2526, %v2566
    %v2568 = vpop.f32.mrf.mxu0
    %v2569 = vpop.f32.mrf.mxu0
    %2570 = vdwg.mxu0
    %2571 = vmatprep.subr.bf16.mxu0 %v2034
    %2572 = vmatpush1.bf16.msra.mxu0 %v2033
    %2573 = vmatprep.subr.bf16.mxu0 %v2026
    %2574 = vmatpush1.bf16.msra.mxu0 %v2025
    %2575 = vmatprep.subr.bf16.mxu0 %v2018
    %2576 = vmatpush1.bf16.msra.mxu0 %v2017
    %2577 = vmatprep.subr.bf16.mxu0 %v2010
    %2578 = vmatpush1.bf16.msra.mxu0 %v2009
    %2579 = vmatprep.subr.bf16.mxu0 %v2002
    %2580 = vmatpush1.bf16.msra.mxu0 %v2001
    %2581 = vmatprep.subr.bf16.mxu0 %v1994
    %2582 = vmatpush1.bf16.msra.mxu0 %v1993
    %2583 = vmatprep.subr.bf16.mxu0 %v1986
    %2584 = vmatpush1.bf16.msra.mxu0 %v1985
    %2585 = vmatprep.subr.bf16.mxu0 %v1978
    %2586 = vmatpush1.bf16.msra.mxu0 %v1977
    %2587 = vmatprep.subr.bf16.mxu0 %v2098
    %2588 = vmatpush2.bf16.msra.mxu0 %v2097
    %2589 = vmatprep.subr.bf16.mxu0 %v2090
    %2590 = vmatpush2.bf16.msra.mxu0 %v2089
    %2591 = vmatprep.subr.bf16.mxu0 %v2082
    %2592 = vmatpush2.bf16.msra.mxu0 %v2081
    %2593 = vmatprep.subr.bf16.mxu0 %v2074
    %2594 = vmatpush2.bf16.msra.mxu0 %v2073
    %2595 = vmatprep.subr.bf16.mxu0 %v2066
    %2596 = vmatpush2.bf16.msra.mxu0 %v2065
    %2597 = vmatprep.subr.bf16.mxu0 %v2058
    %2598 = vmatpush2.bf16.msra.mxu0 %v2057
    %2599 = vmatprep.subr.bf16.mxu0 %v2050
    %2600 = vmatpush2.bf16.msra.mxu0 %v2049
    %2601 = vmatprep.subr.bf16.mxu0 %v2042
    %2602 = vmatpush2.bf16.msra.mxu0 %v2041
    %2603 = vmatprep.mubr.bf16.mxu0 %v562
    %2604 = vmatmul.mubr.bf16.gmra.mxu0 %v561
    %v2605 = vpop.f32.mrf.mxu0
    %v2606 = vadd.f32 %v2565, %v2605
    %v2607 = vpop.f32.mrf.mxu0
    %v2608 = vadd.f32 %v2567, %v2607
    %v2609 = vpop.f32.mrf.mxu0
    %v2610 = vpop.f32.mrf.mxu0
    %2611 = vdwg.mxu0
    %2612 = vmatprep.subr.bf16.mxu0 %v1780
    %2613 = vmatpush1.bf16.msra.mxu0 %v1779
    %2614 = vmatprep.subr.bf16.mxu0 %v1772
    %2615 = vmatpush1.bf16.msra.mxu0 %v1771
    %2616 = vmatprep.subr.bf16.mxu0 %v1764
    %2617 = vmatpush1.bf16.msra.mxu0 %v1763
    %2618 = vmatprep.subr.bf16.mxu0 %v1756
    %2619 = vmatpush1.bf16.msra.mxu0 %v1755
    %2620 = vmatprep.subr.bf16.mxu0 %v1748
    %2621 = vmatpush1.bf16.msra.mxu0 %v1747
    %2622 = vmatprep.subr.bf16.mxu0 %v1740
    %2623 = vmatpush1.bf16.msra.mxu0 %v1739
    %2624 = vmatprep.subr.bf16.mxu0 %v1732
    %2625 = vmatpush1.bf16.msra.mxu0 %v1731
    %2626 = vmatprep.subr.bf16.mxu0 %v1724
    %2627 = vmatpush1.bf16.msra.mxu0 %v1723
    %2628 = vmatprep.subr.bf16.mxu0 %v1844
    %2629 = vmatpush2.bf16.msra.mxu0 %v1843
    %2630 = vmatprep.subr.bf16.mxu0 %v1836
    %2631 = vmatpush2.bf16.msra.mxu0 %v1835
    %2632 = vmatprep.subr.bf16.mxu0 %v1828
    %2633 = vmatpush2.bf16.msra.mxu0 %v1827
    %2634 = vmatprep.subr.bf16.mxu0 %v1820
    %2635 = vmatpush2.bf16.msra.mxu0 %v1819
    %2636 = vmatprep.subr.bf16.mxu0 %v1812
    %2637 = vmatpush2.bf16.msra.mxu0 %v1811
    %2638 = vmatprep.subr.bf16.mxu0 %v1804
    %2639 = vmatpush2.bf16.msra.mxu0 %v1803
    %2640 = vmatprep.subr.bf16.mxu0 %v1796
    %2641 = vmatpush2.bf16.msra.mxu0 %v1795
    %2642 = vmatprep.subr.bf16.mxu0 %v1788
    %2643 = vmatpush2.bf16.msra.mxu0 %v1787
    %2644 = vmatprep.mubr.bf16.mxu0 %v558
    %2645 = vmatmul.mubr.bf16.gmra.mxu0 %v557
    %v2646 = vpop.f32.mrf.mxu0
    %v2647 = vadd.f32 0.0, %v2646
    %v2648 = vpop.f32.mrf.mxu0
    %v2649 = vadd.f32 0.0, %v2648
    %v2650 = vpop.f32.mrf.mxu0
    %v2651 = vpop.f32.mrf.mxu0
    %2652 = vdwg.mxu0
    %2653 = vmatprep.subr.bf16.mxu0 %v1908
    %2654 = vmatpush1.bf16.msra.mxu0 %v1907
    %2655 = vmatprep.subr.bf16.mxu0 %v1900
    %2656 = vmatpush1.bf16.msra.mxu0 %v1899
    %2657 = vmatprep.subr.bf16.mxu0 %v1892
    %2658 = vmatpush1.bf16.msra.mxu0 %v1891
    %2659 = vmatprep.subr.bf16.mxu0 %v1884
    %2660 = vmatpush1.bf16.msra.mxu0 %v1883
    %2661 = vmatprep.subr.bf16.mxu0 %v1876
    %2662 = vmatpush1.bf16.msra.mxu0 %v1875
    %2663 = vmatprep.subr.bf16.mxu0 %v1868
    %2664 = vmatpush1.bf16.msra.mxu0 %v1867
    %2665 = vmatprep.subr.bf16.mxu0 %v1860
    %2666 = vmatpush1.bf16.msra.mxu0 %v1859
    %2667 = vmatprep.subr.bf16.mxu0 %v1852
    %2668 = vmatpush1.bf16.msra.mxu0 %v1851
    %2669 = vmatprep.subr.bf16.mxu0 %v1972
    %2670 = vmatpush2.bf16.msra.mxu0 %v1971
    %2671 = vmatprep.subr.bf16.mxu0 %v1964
    %2672 = vmatpush2.bf16.msra.mxu0 %v1963
    %2673 = vmatprep.subr.bf16.mxu0 %v1956
    %2674 = vmatpush2.bf16.msra.mxu0 %v1955
    %2675 = vmatprep.subr.bf16.mxu0 %v1948
    %2676 = vmatpush2.bf16.msra.mxu0 %v1947
    %2677 = vmatprep.subr.bf16.mxu0 %v1940
    %2678 = vmatpush2.bf16.msra.mxu0 %v1939
    %2679 = vmatprep.subr.bf16.mxu0 %v1932
    %2680 = vmatpush2.bf16.msra.mxu0 %v1931
    %2681 = vmatprep.subr.bf16.mxu0 %v1924
    %2682 = vmatpush2.bf16.msra.mxu0 %v1923
    %2683 = vmatprep.subr.bf16.mxu0 %v1916
    %2684 = vmatpush2.bf16.msra.mxu0 %v1915
    %2685 = vmatprep.mubr.bf16.mxu0 %v560
    %2686 = vmatmul.mubr.bf16.gmra.mxu0 %v559
    %v2687 = vpop.f32.mrf.mxu0
    %v2688 = vadd.f32 %v2647, %v2687
    %v2689 = vpop.f32.mrf.mxu0
    %v2690 = vadd.f32 %v2649, %v2689
    %v2691 = vpop.f32.mrf.mxu0
    %v2692 = vpop.f32.mrf.mxu0
    %2693 = vdwg.mxu0
    %2694 = vmatprep.subr.bf16.mxu0 %v2036
    %2695 = vmatpush1.bf16.msra.mxu0 %v2035
    %2696 = vmatprep.subr.bf16.mxu0 %v2028
    %2697 = vmatpush1.bf16.msra.mxu0 %v2027
    %2698 = vmatprep.subr.bf16.mxu0 %v2020
    %2699 = vmatpush1.bf16.msra.mxu0 %v2019
    %2700 = vmatprep.subr.bf16.mxu0 %v2012
    %2701 = vmatpush1.bf16.msra.mxu0 %v2011
    %2702 = vmatprep.subr.bf16.mxu0 %v2004
    %2703 = vmatpush1.bf16.msra.mxu0 %v2003
    %2704 = vmatprep.subr.bf16.mxu0 %v1996
    %2705 = vmatpush1.bf16.msra.mxu0 %v1995
    %2706 = vmatprep.subr.bf16.mxu0 %v1988
    %2707 = vmatpush1.bf16.msra.mxu0 %v1987
    %2708 = vmatprep.subr.bf16.mxu0 %v1980
    %2709 = vmatpush1.bf16.msra.mxu0 %v1979
    %2710 = vmatprep.subr.bf16.mxu0 %v2100
    %2711 = vmatpush2.bf16.msra.mxu0 %v2099
    %2712 = vmatprep.subr.bf16.mxu0 %v2092
    %2713 = vmatpush2.bf16.msra.mxu0 %v2091
    %2714 = vmatprep.subr.bf16.mxu0 %v2084
    %2715 = vmatpush2.bf16.msra.mxu0 %v2083
    %2716 = vmatprep.subr.bf16.mxu0 %v2076
    %2717 = vmatpush2.bf16.msra.mxu0 %v2075
    %2718 = vmatprep.subr.bf16.mxu0 %v2068
    %2719 = vmatpush2.bf16.msra.mxu0 %v2067
    %2720 = vmatprep.subr.bf16.mxu0 %v2060
    %2721 = vmatpush2.bf16.msra.mxu0 %v2059
    %2722 = vmatprep.subr.bf16.mxu0 %v2052
    %2723 = vmatpush2.bf16.msra.mxu0 %v2051
    %2724 = vmatprep.subr.bf16.mxu0 %v2044
    %2725 = vmatpush2.bf16.msra.mxu0 %v2043
    %2726 = vmatprep.mubr.bf16.mxu0 %v562
    %2727 = vmatmul.mubr.bf16.gmra.mxu0 %v561
    %v2728 = vpop.f32.mrf.mxu0
    %v2729 = vadd.f32 %v2688, %v2728
    %v2730 = vpop.f32.mrf.mxu0
    %v2731 = vadd.f32 %v2690, %v2730
    %v2732 = vpop.f32.mrf.mxu0
    %v2733 = vpop.f32.mrf.mxu0
    %2734 = vdwg.mxu0
    %2735 = vmatprep.subr.bf16.mxu0 %v1782
    %2736 = vmatpush1.bf16.msra.mxu0 %v1781
    %2737 = vmatprep.subr.bf16.mxu0 %v1774
    %2738 = vmatpush1.bf16.msra.mxu0 %v1773
    %2739 = vmatprep.subr.bf16.mxu0 %v1766
    %2740 = vmatpush1.bf16.msra.mxu0 %v1765
    %2741 = vmatprep.subr.bf16.mxu0 %v1758
    %2742 = vmatpush1.bf16.msra.mxu0 %v1757
    %2743 = vmatprep.subr.bf16.mxu0 %v1750
    %2744 = vmatpush1.bf16.msra.mxu0 %v1749
    %2745 = vmatprep.subr.bf16.mxu0 %v1742
    %2746 = vmatpush1.bf16.msra.mxu0 %v1741
    %2747 = vmatprep.subr.bf16.mxu0 %v1734
    %2748 = vmatpush1.bf16.msra.mxu0 %v1733
    %2749 = vmatprep.subr.bf16.mxu0 %v1726
    %2750 = vmatpush1.bf16.msra.mxu0 %v1725
    %2751 = vmatprep.subr.bf16.mxu0 %v1846
    %2752 = vmatpush2.bf16.msra.mxu0 %v1845
    %2753 = vmatprep.subr.bf16.mxu0 %v1838
    %2754 = vmatpush2.bf16.msra.mxu0 %v1837
    %2755 = vmatprep.subr.bf16.mxu0 %v1830
    %2756 = vmatpush2.bf16.msra.mxu0 %v1829
    %2757 = vmatprep.subr.bf16.mxu0 %v1822
    %2758 = vmatpush2.bf16.msra.mxu0 %v1821
    %2759 = vmatprep.subr.bf16.mxu0 %v1814
    %2760 = vmatpush2.bf16.msra.mxu0 %v1813
    %2761 = vmatprep.subr.bf16.mxu0 %v1806
    %2762 = vmatpush2.bf16.msra.mxu0 %v1805
    %2763 = vmatprep.subr.bf16.mxu0 %v1798
    %2764 = vmatpush2.bf16.msra.mxu0 %v1797
    %2765 = vmatprep.subr.bf16.mxu0 %v1790
    %2766 = vmatpush2.bf16.msra.mxu0 %v1789
    %2767 = vmatprep.mubr.bf16.mxu0 %v558
    %2768 = vmatmul.mubr.bf16.gmra.mxu0 %v557
    %v2769 = vpop.f32.mrf.mxu0
    %v2770 = vadd.f32 0.0, %v2769
    %v2771 = vpop.f32.mrf.mxu0
    %v2772 = vadd.f32 0.0, %v2771
    %v2773 = vpop.f32.mrf.mxu0
    %v2774 = vpop.f32.mrf.mxu0
    %2775 = vdwg.mxu0
    %2776 = vmatprep.subr.bf16.mxu0 %v1910
    %2777 = vmatpush1.bf16.msra.mxu0 %v1909
    %2778 = vmatprep.subr.bf16.mxu0 %v1902
    %2779 = vmatpush1.bf16.msra.mxu0 %v1901
    %2780 = vmatprep.subr.bf16.mxu0 %v1894
    %2781 = vmatpush1.bf16.msra.mxu0 %v1893
    %2782 = vmatprep.subr.bf16.mxu0 %v1886
    %2783 = vmatpush1.bf16.msra.mxu0 %v1885
    %2784 = vmatprep.subr.bf16.mxu0 %v1878
    %2785 = vmatpush1.bf16.msra.mxu0 %v1877
    %2786 = vmatprep.subr.bf16.mxu0 %v1870
    %2787 = vmatpush1.bf16.msra.mxu0 %v1869
    %2788 = vmatprep.subr.bf16.mxu0 %v1862
    %2789 = vmatpush1.bf16.msra.mxu0 %v1861
    %2790 = vmatprep.subr.bf16.mxu0 %v1854
    %2791 = vmatpush1.bf16.msra.mxu0 %v1853
    %2792 = vmatprep.subr.bf16.mxu0 %v1974
    %2793 = vmatpush2.bf16.msra.mxu0 %v1973
    %2794 = vmatprep.subr.bf16.mxu0 %v1966
    %2795 = vmatpush2.bf16.msra.mxu0 %v1965
    %2796 = vmatprep.subr.bf16.mxu0 %v1958
    %2797 = vmatpush2.bf16.msra.mxu0 %v1957
    %2798 = vmatprep.subr.bf16.mxu0 %v1950
    %2799 = vmatpush2.bf16.msra.mxu0 %v1949
    %2800 = vmatprep.subr.bf16.mxu0 %v1942
    %2801 = vmatpush2.bf16.msra.mxu0 %v1941
    %2802 = vmatprep.subr.bf16.mxu0 %v1934
    %2803 = vmatpush2.bf16.msra.mxu0 %v1933
    %2804 = vmatprep.subr.bf16.mxu0 %v1926
    %2805 = vmatpush2.bf16.msra.mxu0 %v1925
    %2806 = vmatprep.subr.bf16.mxu0 %v1918
    %2807 = vmatpush2.bf16.msra.mxu0 %v1917
    %2808 = vmatprep.mubr.bf16.mxu0 %v560
    %2809 = vmatmul.mubr.bf16.gmra.mxu0 %v559
    %v2810 = vpop.f32.mrf.mxu0
    %v2811 = vadd.f32 %v2770, %v2810
    %v2812 = vpop.f32.mrf.mxu0
    %v2813 = vadd.f32 %v2772, %v2812
    %v2814 = vpop.f32.mrf.mxu0
    %v2815 = vpop.f32.mrf.mxu0
    %2816 = vdwg.mxu0
    %2817 = vmatprep.subr.bf16.mxu0 %v2038
    %2818 = vmatpush1.bf16.msra.mxu0 %v2037
    %2819 = vmatprep.subr.bf16.mxu0 %v2030
    %2820 = vmatpush1.bf16.msra.mxu0 %v2029
    %2821 = vmatprep.subr.bf16.mxu0 %v2022
    %2822 = vmatpush1.bf16.msra.mxu0 %v2021
    %2823 = vmatprep.subr.bf16.mxu0 %v2014
    %2824 = vmatpush1.bf16.msra.mxu0 %v2013
    %2825 = vmatprep.subr.bf16.mxu0 %v2006
    %2826 = vmatpush1.bf16.msra.mxu0 %v2005
    %2827 = vmatprep.subr.bf16.mxu0 %v1998
    %2828 = vmatpush1.bf16.msra.mxu0 %v1997
    %2829 = vmatprep.subr.bf16.mxu0 %v1990
    %2830 = vmatpush1.bf16.msra.mxu0 %v1989
    %2831 = vmatprep.subr.bf16.mxu0 %v1982
    %2832 = vmatpush1.bf16.msra.mxu0 %v1981
    %2833 = vmatprep.subr.bf16.mxu0 %v2102
    %2834 = vmatpush2.bf16.msra.mxu0 %v2101
    %2835 = vmatprep.subr.bf16.mxu0 %v2094
    %2836 = vmatpush2.bf16.msra.mxu0 %v2093
    %2837 = vmatprep.subr.bf16.mxu0 %v2086
    %2838 = vmatpush2.bf16.msra.mxu0 %v2085
    %2839 = vmatprep.subr.bf16.mxu0 %v2078
    %2840 = vmatpush2.bf16.msra.mxu0 %v2077
    %2841 = vmatprep.subr.bf16.mxu0 %v2070
    %2842 = vmatpush2.bf16.msra.mxu0 %v2069
    %2843 = vmatprep.subr.bf16.mxu0 %v2062
    %2844 = vmatpush2.bf16.msra.mxu0 %v2061
    %2845 = vmatprep.subr.bf16.mxu0 %v2054
    %2846 = vmatpush2.bf16.msra.mxu0 %v2053
    %2847 = vmatprep.subr.bf16.mxu0 %v2046
    %2848 = vmatpush2.bf16.msra.mxu0 %v2045
    %2849 = vmatprep.mubr.bf16.mxu0 %v562
    %2850 = vmatmul.mubr.bf16.gmra.mxu0 %v561
    %v2851 = vpop.f32.mrf.mxu0
    %v2852 = vadd.f32 %v2811, %v2851
    %v2853 = vpop.f32.mrf.mxu0
    %v2854 = vadd.f32 %v2813, %v2853
    %v2855 = vpop.f32.mrf.mxu0
    %v2856 = vpop.f32.mrf.mxu0
    %2857 = vdwg.mxu0
    %2858 = vmatprep.subr.bf16.mxu0 %v1784
    %2859 = vmatpush1.bf16.msra.mxu0 %v1783
    %2860 = vmatprep.subr.bf16.mxu0 %v1776
    %2861 = vmatpush1.bf16.msra.mxu0 %v1775
    %2862 = vmatprep.subr.bf16.mxu0 %v1768
    %2863 = vmatpush1.bf16.msra.mxu0 %v1767
    %2864 = vmatprep.subr.bf16.mxu0 %v1760
    %2865 = vmatpush1.bf16.msra.mxu0 %v1759
    %2866 = vmatprep.subr.bf16.mxu0 %v1752
    %2867 = vmatpush1.bf16.msra.mxu0 %v1751
    %2868 = vmatprep.subr.bf16.mxu0 %v1744
    %2869 = vmatpush1.bf16.msra.mxu0 %v1743
    %2870 = vmatprep.subr.bf16.mxu0 %v1736
    %2871 = vmatpush1.bf16.msra.mxu0 %v1735
    %2872 = vmatprep.subr.bf16.mxu0 %v1728
    %2873 = vmatpush1.bf16.msra.mxu0 %v1727
    %2874 = vmatprep.subr.bf16.mxu0 %v1848
    %2875 = vmatpush2.bf16.msra.mxu0 %v1847
    %2876 = vmatprep.subr.bf16.mxu0 %v1840
    %2877 = vmatpush2.bf16.msra.mxu0 %v1839
    %2878 = vmatprep.subr.bf16.mxu0 %v1832
    %2879 = vmatpush2.bf16.msra.mxu0 %v1831
    %2880 = vmatprep.subr.bf16.mxu0 %v1824
    %2881 = vmatpush2.bf16.msra.mxu0 %v1823
    %2882 = vmatprep.subr.bf16.mxu0 %v1816
    %2883 = vmatpush2.bf16.msra.mxu0 %v1815
    %2884 = vmatprep.subr.bf16.mxu0 %v1808
    %2885 = vmatpush2.bf16.msra.mxu0 %v1807
    %2886 = vmatprep.subr.bf16.mxu0 %v1800
    %2887 = vmatpush2.bf16.msra.mxu0 %v1799
    %2888 = vmatprep.subr.bf16.mxu0 %v1792
    %2889 = vmatpush2.bf16.msra.mxu0 %v1791
    %2890 = vmatprep.mubr.bf16.mxu0 %v558
    %2891 = vmatmul.mubr.bf16.gmra.mxu0 %v557
    %v2892 = vpop.f32.mrf.mxu0
    %v2893 = vadd.f32 0.0, %v2892
    %v2894 = vpop.f32.mrf.mxu0
    %v2895 = vadd.f32 0.0, %v2894
    %v2896 = vpop.f32.mrf.mxu0
    %v2897 = vpop.f32.mrf.mxu0
    %2898 = vdwg.mxu0
    %2899 = vmatprep.subr.bf16.mxu0 %v1912
    %2900 = vmatpush1.bf16.msra.mxu0 %v1911
    %2901 = vmatprep.subr.bf16.mxu0 %v1904
    %2902 = vmatpush1.bf16.msra.mxu0 %v1903
    %2903 = vmatprep.subr.bf16.mxu0 %v1896
    %2904 = vmatpush1.bf16.msra.mxu0 %v1895
    %2905 = vmatprep.subr.bf16.mxu0 %v1888
    %2906 = vmatpush1.bf16.msra.mxu0 %v1887
    %2907 = vmatprep.subr.bf16.mxu0 %v1880
    %2908 = vmatpush1.bf16.msra.mxu0 %v1879
    %2909 = vmatprep.subr.bf16.mxu0 %v1872
    %2910 = vmatpush1.bf16.msra.mxu0 %v1871
    %2911 = vmatprep.subr.bf16.mxu0 %v1864
    %2912 = vmatpush1.bf16.msra.mxu0 %v1863
    %2913 = vmatprep.subr.bf16.mxu0 %v1856
    %2914 = vmatpush1.bf16.msra.mxu0 %v1855
    %2915 = vmatprep.subr.bf16.mxu0 %v1976
    %2916 = vmatpush2.bf16.msra.mxu0 %v1975
    %2917 = vmatprep.subr.bf16.mxu0 %v1968
    %2918 = vmatpush2.bf16.msra.mxu0 %v1967
    %2919 = vmatprep.subr.bf16.mxu0 %v1960
    %2920 = vmatpush2.bf16.msra.mxu0 %v1959
    %2921 = vmatprep.subr.bf16.mxu0 %v1952
    %2922 = vmatpush2.bf16.msra.mxu0 %v1951
    %2923 = vmatprep.subr.bf16.mxu0 %v1944
    %2924 = vmatpush2.bf16.msra.mxu0 %v1943
    %2925 = vmatprep.subr.bf16.mxu0 %v1936
    %2926 = vmatpush2.bf16.msra.mxu0 %v1935
    %2927 = vmatprep.subr.bf16.mxu0 %v1928
    %2928 = vmatpush2.bf16.msra.mxu0 %v1927
    %2929 = vmatprep.subr.bf16.mxu0 %v1920
    %2930 = vmatpush2.bf16.msra.mxu0 %v1919
    %2931 = vmatprep.mubr.bf16.mxu0 %v560
    %2932 = vmatmul.mubr.bf16.gmra.mxu0 %v559
    %v2933 = vpop.f32.mrf.mxu0
    %v2934 = vadd.f32 %v2893, %v2933
    %v2935 = vpop.f32.mrf.mxu0
    %v2936 = vadd.f32 %v2895, %v2935
    %v2937 = vpop.f32.mrf.mxu0
    %v2938 = vpop.f32.mrf.mxu0
    %2939 = vdwg.mxu0
    %2940 = vmatprep.subr.bf16.mxu0 %v2040
    %2941 = vmatpush1.bf16.msra.mxu0 %v2039
    %2942 = vmatprep.subr.bf16.mxu0 %v2032
    %2943 = vmatpush1.bf16.msra.mxu0 %v2031
    %2944 = vmatprep.subr.bf16.mxu0 %v2024
    %2945 = vmatpush1.bf16.msra.mxu0 %v2023
    %2946 = vmatprep.subr.bf16.mxu0 %v2016
    %2947 = vmatpush1.bf16.msra.mxu0 %v2015
    %2948 = vmatprep.subr.bf16.mxu0 %v2008
    %2949 = vmatpush1.bf16.msra.mxu0 %v2007
    %2950 = vmatprep.subr.bf16.mxu0 %v2000
    %2951 = vmatpush1.bf16.msra.mxu0 %v1999
    %2952 = vmatprep.subr.bf16.mxu0 %v1992
    %2953 = vmatpush1.bf16.msra.mxu0 %v1991
    %2954 = vmatprep.subr.bf16.mxu0 %v1984
    %2955 = vmatpush1.bf16.msra.mxu0 %v1983
    %2956 = vmatprep.subr.bf16.mxu0 %v2104
    %2957 = vmatpush2.bf16.msra.mxu0 %v2103
    %2958 = vmatprep.subr.bf16.mxu0 %v2096
    %2959 = vmatpush2.bf16.msra.mxu0 %v2095
    %2960 = vmatprep.subr.bf16.mxu0 %v2088
    %2961 = vmatpush2.bf16.msra.mxu0 %v2087
    %2962 = vmatprep.subr.bf16.mxu0 %v2080
    %2963 = vmatpush2.bf16.msra.mxu0 %v2079
    %2964 = vmatprep.subr.bf16.mxu0 %v2072
    %2965 = vmatpush2.bf16.msra.mxu0 %v2071
    %2966 = vmatprep.subr.bf16.mxu0 %v2064
    %2967 = vmatpush2.bf16.msra.mxu0 %v2063
    %2968 = vmatprep.subr.bf16.mxu0 %v2056
    %2969 = vmatpush2.bf16.msra.mxu0 %v2055
    %2970 = vmatprep.subr.bf16.mxu0 %v2048
    %2971 = vmatpush2.bf16.msra.mxu0 %v2047
    %2972 = vmatprep.mubr.bf16.mxu0 %v562
    %2973 = vmatmul.mubr.bf16.gmra.mxu0 %v561
    %v2974 = vpop.f32.mrf.mxu0
    %v2975 = vadd.f32 %v2934, %v2974
    %v2976 = vpop.f32.mrf.mxu0
    %v2977 = vadd.f32 %v2936, %v2976
    %v2978 = vpop.f32.mrf.mxu0
    %v2979 = vpop.f32.mrf.mxu0
    %2980 = vdwg.mxu0
    %v2981 = vmax.f32 %v2606, %v2729
    %v2982 = vmax.f32 %v2608, %v2731
    %v2983 = vmax.f32 %v2981, %v2852
    %v2984 = vmax.f32 %v2982, %v2854
    %v2985 = vmax.f32 %v2983, %v2975
    %v2986 = vmax.f32 %v2984, %v2977
    %v2987 = vld [vmem:[#allocation5] sm:$0x3]
    %v2989 = vlaneseq
    %v2990 = vshrl.u32 %v2989, 7
    %v2991 = vsub.s32 0, %v2990
    %v2992 = vrot.slane %v2987, %v2991
    %v2993 = vlaneseq
    %v2994 = vshrl.u32 %v2993, 7
    %v2995 = vsub.s32 1, %v2994
    %v2996 = vrot.slane %v2987, %v2995
    %v2999 = vadd.f32 %v2985, %v2992
    %v3000 = vadd.f32 %v2986, %v2996
    %v3001 = vmax.f32 %v2999, 0.0
    %v3002 = vmax.f32 %v3000, 0.0
    %v3003 = vpack.c.bf16 %v3001, %v3001
    %v3004 = vpack.c.bf16 %v3002, %v3002
    %v3005 = vld [vmem:[#allocation7] sm:$0xff]
    %v3006 = vld [vmem:[#allocation7 + $0x8] sm:$0xff]
    %v3007 = vld [vmem:[#allocation7 + $0x10] sm:$0xff]
    %v3008 = vld [vmem:[#allocation7 + $0x18] sm:$0xff]
    %v3009 = vld [vmem:[#allocation7 + $0x20] sm:$0xff]
    %v3010 = vld [vmem:[#allocation7 + $0x28] sm:$0xff]
    %v3011 = vld [vmem:[#allocation7 + $0x30] sm:$0xff]
    %v3012 = vld [vmem:[#allocation7 + $0x38] sm:$0xff]
    %v3013 = vld [vmem:[#allocation7 + $0x40] sm:$0xff]
    %v3014 = vld [vmem:[#allocation7 + $0x48] sm:$0xff]
    %v3015 = vld [vmem:[#allocation7 + $0x50] sm:$0xff]
    %v3016 = vld [vmem:[#allocation7 + $0x58] sm:$0xff]
    %v3017 = vld [vmem:[#allocation7 + $0x60] sm:$0xff]
    %v3018 = vld [vmem:[#allocation7 + $0x68] sm:$0xff]
    %v3019 = vld [vmem:[#allocation7 + $0x70] sm:$0xff]
    %v3020 = vld [vmem:[#allocation7 + $0x78] sm:$0xff]
    %v3021 = vld [vmem:[#allocation7 + $0x80] sm:$0xff]
    %v3022 = vld [vmem:[#allocation7 + $0x88] sm:$0xff]
    %v3023 = vld [vmem:[#allocation7 + $0x90] sm:$0xff]
    %v3024 = vld [vmem:[#allocation7 + $0x98] sm:$0xff]
    %v3025 = vld [vmem:[#allocation7 + $0xa0] sm:$0xff]
    %v3026 = vld [vmem:[#allocation7 + $0xa8] sm:$0xff]
    %v3027 = vld [vmem:[#allocation7 + $0xb0] sm:$0xff]
    %v3028 = vld [vmem:[#allocation7 + $0xb8] sm:$0xff]
    %v3029 = vld [vmem:[#allocation7 + $0xc0] sm:$0xff]
    %v3030 = vld [vmem:[#allocation7 + $0xc8] sm:$0xff]
    %v3031 = vld [vmem:[#allocation7 + $0xd0] sm:$0xff]
    %v3032 = vld [vmem:[#allocation7 + $0xd8] sm:$0xff]
    %v3033 = vld [vmem:[#allocation7 + $0xe0] sm:$0xff]
    %v3034 = vld [vmem:[#allocation7 + $0xe8] sm:$0xff]
    %v3035 = vld [vmem:[#allocation7 + $0xf0] sm:$0xff]
    %v3036 = vld [vmem:[#allocation7 + $0xf8] sm:$0xff]
    %v3037 = vld [vmem:[#allocation7 + $0x100] sm:$0xff]
    %v3038 = vld [vmem:[#allocation7 + $0x108] sm:$0xff]
    %v3039 = vld [vmem:[#allocation7 + $0x110] sm:$0xff]
    %v3040 = vld [vmem:[#allocation7 + $0x118] sm:$0xff]
    %v3041 = vld [vmem:[#allocation7 + $0x120] sm:$0xff]
    %v3042 = vld [vmem:[#allocation7 + $0x128] sm:$0xff]
    %v3043 = vld [vmem:[#allocation7 + $0x130] sm:$0xff]
    %v3044 = vld [vmem:[#allocation7 + $0x138] sm:$0xff]
    %v3045 = vld [vmem:[#allocation7 + $0x140] sm:$0xff]
    %v3046 = vld [vmem:[#allocation7 + $0x148] sm:$0xff]
    %v3047 = vld [vmem:[#allocation7 + $0x150] sm:$0xff]
    %v3048 = vld [vmem:[#allocation7 + $0x158] sm:$0xff]
    %v3049 = vld [vmem:[#allocation7 + $0x160] sm:$0xff]
    %v3050 = vld [vmem:[#allocation7 + $0x168] sm:$0xff]
    %v3051 = vld [vmem:[#allocation7 + $0x170] sm:$0xff]
    %v3052 = vld [vmem:[#allocation7 + $0x178] sm:$0xff]
    %v3053 = vld [vmem:[#allocation7 + $0x180] sm:$0xff]
    %v3054 = vld [vmem:[#allocation7 + $0x188] sm:$0xff]
    %v3055 = vld [vmem:[#allocation7 + $0x190] sm:$0xff]
    %v3056 = vld [vmem:[#allocation7 + $0x198] sm:$0xff]
    %v3057 = vld [vmem:[#allocation7 + $0x1a0] sm:$0xff]
    %v3058 = vld [vmem:[#allocation7 + $0x1a8] sm:$0xff]
    %v3059 = vld [vmem:[#allocation7 + $0x1b0] sm:$0xff]
    %v3060 = vld [vmem:[#allocation7 + $0x1b8] sm:$0xff]
    %v3061 = vld [vmem:[#allocation7 + $0x1c0] sm:$0xff]
    %v3062 = vld [vmem:[#allocation7 + $0x1c8] sm:$0xff]
    %v3063 = vld [vmem:[#allocation7 + $0x1d0] sm:$0xff]
    %v3064 = vld [vmem:[#allocation7 + $0x1d8] sm:$0xff]
    %v3065 = vld [vmem:[#allocation7 + $0x1e0] sm:$0xff]
    %v3066 = vld [vmem:[#allocation7 + $0x1e8] sm:$0xff]
    %v3067 = vld [vmem:[#allocation7 + $0x1f0] sm:$0xff]
    %v3068 = vld [vmem:[#allocation7 + $0x1f8] sm:$0xff]
    %v3133 = vunpack.c.l.b16 %v3005
    %v3134 = vunpack.c.h.b16 %v3005
    %v3135 = vunpack.c.l.b16 %v3006
    %v3136 = vunpack.c.h.b16 %v3006
    %v3137 = vunpack.c.l.b16 %v3007
    %v3138 = vunpack.c.h.b16 %v3007
    %v3139 = vunpack.c.l.b16 %v3008
    %v3140 = vunpack.c.h.b16 %v3008
    %v3141 = vunpack.c.l.b16 %v3009
    %v3142 = vunpack.c.h.b16 %v3009
    %v3143 = vunpack.c.l.b16 %v3010
    %v3144 = vunpack.c.h.b16 %v3010
    %v3145 = vunpack.c.l.b16 %v3011
    %v3146 = vunpack.c.h.b16 %v3011
    %v3147 = vunpack.c.l.b16 %v3012
    %v3148 = vunpack.c.h.b16 %v3012
    %v3149 = vunpack.c.l.b16 %v3013
    %v3150 = vunpack.c.h.b16 %v3013
    %v3151 = vunpack.c.l.b16 %v3014
    %v3152 = vunpack.c.h.b16 %v3014
    %v3153 = vunpack.c.l.b16 %v3015
    %v3154 = vunpack.c.h.b16 %v3015
    %v3155 = vunpack.c.l.b16 %v3016
    %v3156 = vunpack.c.h.b16 %v3016
    %v3157 = vunpack.c.l.b16 %v3017
    %v3158 = vunpack.c.h.b16 %v3017
    %v3159 = vunpack.c.l.b16 %v3018
    %v3160 = vunpack.c.h.b16 %v3018
    %v3161 = vunpack.c.l.b16 %v3019
    %v3162 = vunpack.c.h.b16 %v3019
    %v3163 = vunpack.c.l.b16 %v3020
    %v3164 = vunpack.c.h.b16 %v3020
    %v3165 = vunpack.c.l.b16 %v3021
    %v3166 = vunpack.c.h.b16 %v3021
    %v3167 = vunpack.c.l.b16 %v3022
    %v3168 = vunpack.c.h.b16 %v3022
    %v3169 = vunpack.c.l.b16 %v3023
    %v3170 = vunpack.c.h.b16 %v3023
    %v3171 = vunpack.c.l.b16 %v3024
    %v3172 = vunpack.c.h.b16 %v3024
    %v3173 = vunpack.c.l.b16 %v3025
    %v3174 = vunpack.c.h.b16 %v3025
    %v3175 = vunpack.c.l.b16 %v3026
    %v3176 = vunpack.c.h.b16 %v3026
    %v3177 = vunpack.c.l.b16 %v3027
    %v3178 = vunpack.c.h.b16 %v3027
    %v3179 = vunpack.c.l.b16 %v3028
    %v3180 = vunpack.c.h.b16 %v3028
    %v3181 = vunpack.c.l.b16 %v3029
    %v3182 = vunpack.c.h.b16 %v3029
    %v3183 = vunpack.c.l.b16 %v3030
    %v3184 = vunpack.c.h.b16 %v3030
    %v3185 = vunpack.c.l.b16 %v3031
    %v3186 = vunpack.c.h.b16 %v3031
    %v3187 = vunpack.c.l.b16 %v3032
    %v3188 = vunpack.c.h.b16 %v3032
    %v3189 = vunpack.c.l.b16 %v3033
    %v3190 = vunpack.c.h.b16 %v3033
    %v3191 = vunpack.c.l.b16 %v3034
    %v3192 = vunpack.c.h.b16 %v3034
    %v3193 = vunpack.c.l.b16 %v3035
    %v3194 = vunpack.c.h.b16 %v3035
    %v3195 = vunpack.c.l.b16 %v3036
    %v3196 = vunpack.c.h.b16 %v3036
    %v3197 = vunpack.c.l.b16 %v3037
    %v3198 = vunpack.c.h.b16 %v3037
    %v3199 = vunpack.c.l.b16 %v3038
    %v3200 = vunpack.c.h.b16 %v3038
    %v3201 = vunpack.c.l.b16 %v3039
    %v3202 = vunpack.c.h.b16 %v3039
    %v3203 = vunpack.c.l.b16 %v3040
    %v3204 = vunpack.c.h.b16 %v3040
    %v3205 = vunpack.c.l.b16 %v3041
    %v3206 = vunpack.c.h.b16 %v3041
    %v3207 = vunpack.c.l.b16 %v3042
    %v3208 = vunpack.c.h.b16 %v3042
    %v3209 = vunpack.c.l.b16 %v3043
    %v3210 = vunpack.c.h.b16 %v3043
    %v3211 = vunpack.c.l.b16 %v3044
    %v3212 = vunpack.c.h.b16 %v3044
    %v3213 = vunpack.c.l.b16 %v3045
    %v3214 = vunpack.c.h.b16 %v3045
    %v3215 = vunpack.c.l.b16 %v3046
    %v3216 = vunpack.c.h.b16 %v3046
    %v3217 = vunpack.c.l.b16 %v3047
    %v3218 = vunpack.c.h.b16 %v3047
    %v3219 = vunpack.c.l.b16 %v3048
    %v3220 = vunpack.c.h.b16 %v3048
    %v3221 = vunpack.c.l.b16 %v3049
    %v3222 = vunpack.c.h.b16 %v3049
    %v3223 = vunpack.c.l.b16 %v3050
    %v3224 = vunpack.c.h.b16 %v3050
    %v3225 = vunpack.c.l.b16 %v3051
    %v3226 = vunpack.c.h.b16 %v3051
    %v3227 = vunpack.c.l.b16 %v3052
    %v3228 = vunpack.c.h.b16 %v3052
    %v3229 = vunpack.c.l.b16 %v3053
    %v3230 = vunpack.c.h.b16 %v3053
    %v3231 = vunpack.c.l.b16 %v3054
    %v3232 = vunpack.c.h.b16 %v3054
    %v3233 = vunpack.c.l.b16 %v3055
    %v3234 = vunpack.c.h.b16 %v3055
    %v3235 = vunpack.c.l.b16 %v3056
    %v3236 = vunpack.c.h.b16 %v3056
    %v3237 = vunpack.c.l.b16 %v3057
    %v3238 = vunpack.c.h.b16 %v3057
    %v3239 = vunpack.c.l.b16 %v3058
    %v3240 = vunpack.c.h.b16 %v3058
    %v3241 = vunpack.c.l.b16 %v3059
    %v3242 = vunpack.c.h.b16 %v3059
    %v3243 = vunpack.c.l.b16 %v3060
    %v3244 = vunpack.c.h.b16 %v3060
    %v3245 = vunpack.c.l.b16 %v3061
    %v3246 = vunpack.c.h.b16 %v3061
    %v3247 = vunpack.c.l.b16 %v3062
    %v3248 = vunpack.c.h.b16 %v3062
    %v3249 = vunpack.c.l.b16 %v3063
    %v3250 = vunpack.c.h.b16 %v3063
    %v3251 = vunpack.c.l.b16 %v3064
    %v3252 = vunpack.c.h.b16 %v3064
    %v3253 = vunpack.c.l.b16 %v3065
    %v3254 = vunpack.c.h.b16 %v3065
    %v3255 = vunpack.c.l.b16 %v3066
    %v3256 = vunpack.c.h.b16 %v3066
    %v3257 = vunpack.c.l.b16 %v3067
    %v3258 = vunpack.c.h.b16 %v3067
    %v3259 = vunpack.c.l.b16 %v3068
    %v3260 = vunpack.c.h.b16 %v3068
    %v3261 = vpack.c.b16 %v3137, %v3133
    %v3262 = vpack.c.b16 %v3138, %v3134
    %v3263 = vpack.c.b16 %v3139, %v3135
    %v3264 = vpack.c.b16 %v3140, %v3136
    %v3265 = vpack.c.b16 %v3145, %v3141
    %v3266 = vpack.c.b16 %v3146, %v3142
    %v3267 = vpack.c.b16 %v3147, %v3143
    %v3268 = vpack.c.b16 %v3148, %v3144
    %v3269 = vpack.c.b16 %v3153, %v3149
    %v3270 = vpack.c.b16 %v3154, %v3150
    %v3271 = vpack.c.b16 %v3155, %v3151
    %v3272 = vpack.c.b16 %v3156, %v3152
    %v3273 = vpack.c.b16 %v3161, %v3157
    %v3274 = vpack.c.b16 %v3162, %v3158
    %v3275 = vpack.c.b16 %v3163, %v3159
    %v3276 = vpack.c.b16 %v3164, %v3160
    %v3277 = vpack.c.b16 %v3169, %v3165
    %v3278 = vpack.c.b16 %v3170, %v3166
    %v3279 = vpack.c.b16 %v3171, %v3167
    %v3280 = vpack.c.b16 %v3172, %v3168
    %v3281 = vpack.c.b16 %v3177, %v3173
    %v3282 = vpack.c.b16 %v3178, %v3174
    %v3283 = vpack.c.b16 %v3179, %v3175
    %v3284 = vpack.c.b16 %v3180, %v3176
    %v3285 = vpack.c.b16 %v3185, %v3181
    %v3286 = vpack.c.b16 %v3186, %v3182
    %v3287 = vpack.c.b16 %v3187, %v3183
    %v3288 = vpack.c.b16 %v3188, %v3184
    %v3289 = vpack.c.b16 %v3193, %v3189
    %v3290 = vpack.c.b16 %v3194, %v3190
    %v3291 = vpack.c.b16 %v3195, %v3191
    %v3292 = vpack.c.b16 %v3196, %v3192
    %v3293 = vpack.c.b16 %v3201, %v3197
    %v3294 = vpack.c.b16 %v3202, %v3198
    %v3295 = vpack.c.b16 %v3203, %v3199
    %v3296 = vpack.c.b16 %v3204, %v3200
    %v3297 = vpack.c.b16 %v3209, %v3205
    %v3298 = vpack.c.b16 %v3210, %v3206
    %v3299 = vpack.c.b16 %v3211, %v3207
    %v3300 = vpack.c.b16 %v3212, %v3208
    %v3301 = vpack.c.b16 %v3217, %v3213
    %v3302 = vpack.c.b16 %v3218, %v3214
    %v3303 = vpack.c.b16 %v3219, %v3215
    %v3304 = vpack.c.b16 %v3220, %v3216
    %v3305 = vpack.c.b16 %v3225, %v3221
    %v3306 = vpack.c.b16 %v3226, %v3222
    %v3307 = vpack.c.b16 %v3227, %v3223
    %v3308 = vpack.c.b16 %v3228, %v3224
    %v3309 = vpack.c.b16 %v3233, %v3229
    %v3310 = vpack.c.b16 %v3234, %v3230
    %v3311 = vpack.c.b16 %v3235, %v3231
    %v3312 = vpack.c.b16 %v3236, %v3232
    %v3313 = vpack.c.b16 %v3241, %v3237
    %v3314 = vpack.c.b16 %v3242, %v3238
    %v3315 = vpack.c.b16 %v3243, %v3239
    %v3316 = vpack.c.b16 %v3244, %v3240
    %v3317 = vpack.c.b16 %v3249, %v3245
    %v3318 = vpack.c.b16 %v3250, %v3246
    %v3319 = vpack.c.b16 %v3251, %v3247
    %v3320 = vpack.c.b16 %v3252, %v3248
    %v3321 = vpack.c.b16 %v3257, %v3253
    %v3322 = vpack.c.b16 %v3258, %v3254
    %v3323 = vpack.c.b16 %v3259, %v3255
    %v3324 = vpack.c.b16 %v3260, %v3256
    %3389 = vmatprep.subr.bf16.mxu0 %v3290
    %3390 = vmatpush1.bf16.msra.mxu0 %v3289
    %3391 = vmatprep.subr.bf16.mxu0 %v3286
    %3392 = vmatpush1.bf16.msra.mxu0 %v3285
    %3393 = vmatprep.subr.bf16.mxu0 %v3282
    %3394 = vmatpush1.bf16.msra.mxu0 %v3281
    %3395 = vmatprep.subr.bf16.mxu0 %v3278
    %3396 = vmatpush1.bf16.msra.mxu0 %v3277
    %3397 = vmatprep.subr.bf16.mxu0 %v3274
    %3398 = vmatpush1.bf16.msra.mxu0 %v3273
    %3399 = vmatprep.subr.bf16.mxu0 %v3270
    %3400 = vmatpush1.bf16.msra.mxu0 %v3269
    %3401 = vmatprep.subr.bf16.mxu0 %v3266
    %3402 = vmatpush1.bf16.msra.mxu0 %v3265
    %3403 = vmatprep.subr.bf16.mxu0 %v3262
    %3404 = vmatpush1.bf16.msra.mxu0 %v3261
    %3405 = vmatprep.subr.bf16.mxu0 %v3322
    %3406 = vmatpush2.bf16.msra.mxu0 %v3321
    %3407 = vmatprep.subr.bf16.mxu0 %v3318
    %3408 = vmatpush2.bf16.msra.mxu0 %v3317
    %3409 = vmatprep.subr.bf16.mxu0 %v3314
    %3410 = vmatpush2.bf16.msra.mxu0 %v3313
    %3411 = vmatprep.subr.bf16.mxu0 %v3310
    %3412 = vmatpush2.bf16.msra.mxu0 %v3309
    %3413 = vmatprep.subr.bf16.mxu0 %v3306
    %3414 = vmatpush2.bf16.msra.mxu0 %v3305
    %3415 = vmatprep.subr.bf16.mxu0 %v3302
    %3416 = vmatpush2.bf16.msra.mxu0 %v3301
    %3417 = vmatprep.subr.bf16.mxu0 %v3298
    %3418 = vmatpush2.bf16.msra.mxu0 %v3297
    %3419 = vmatprep.subr.bf16.mxu0 %v3294
    %3420 = vmatpush2.bf16.msra.mxu0 %v3293
    %3421 = vmatprep.mubr.bf16.mxu0 %v3004
    %3422 = vmatmul.mubr.bf16.gmra.mxu0 %v3003
    %v3423 = vpop.f32.mrf.mxu0
    %v3424 = vadd.f32 0.0, %v3423
    %v3425 = vpop.f32.mrf.mxu0
    %v3426 = vadd.f32 0.0, %v3425
    %v3427 = vpop.f32.mrf.mxu0
    %v3428 = vpop.f32.mrf.mxu0
    %3429 = vdwg.mxu0
    %3430 = vmatprep.subr.bf16.mxu0 %v3292
    %3431 = vmatpush1.bf16.msra.mxu0 %v3291
    %3432 = vmatprep.subr.bf16.mxu0 %v3288
    %3433 = vmatpush1.bf16.msra.mxu0 %v3287
    %3434 = vmatprep.subr.bf16.mxu0 %v3284
    %3435 = vmatpush1.bf16.msra.mxu0 %v3283
    %3436 = vmatprep.subr.bf16.mxu0 %v3280
    %3437 = vmatpush1.bf16.msra.mxu0 %v3279
    %3438 = vmatprep.subr.bf16.mxu0 %v3276
    %3439 = vmatpush1.bf16.msra.mxu0 %v3275
    %3440 = vmatprep.subr.bf16.mxu0 %v3272
    %3441 = vmatpush1.bf16.msra.mxu0 %v3271
    %3442 = vmatprep.subr.bf16.mxu0 %v3268
    %3443 = vmatpush1.bf16.msra.mxu0 %v3267
    %3444 = vmatprep.subr.bf16.mxu0 %v3264
    %3445 = vmatpush1.bf16.msra.mxu0 %v3263
    %3446 = vmatprep.subr.bf16.mxu0 %v3324
    %3447 = vmatpush2.bf16.msra.mxu0 %v3323
    %3448 = vmatprep.subr.bf16.mxu0 %v3320
    %3449 = vmatpush2.bf16.msra.mxu0 %v3319
    %3450 = vmatprep.subr.bf16.mxu0 %v3316
    %3451 = vmatpush2.bf16.msra.mxu0 %v3315
    %3452 = vmatprep.subr.bf16.mxu0 %v3312
    %3453 = vmatpush2.bf16.msra.mxu0 %v3311
    %3454 = vmatprep.subr.bf16.mxu0 %v3308
    %3455 = vmatpush2.bf16.msra.mxu0 %v3307
    %3456 = vmatprep.subr.bf16.mxu0 %v3304
    %3457 = vmatpush2.bf16.msra.mxu0 %v3303
    %3458 = vmatprep.subr.bf16.mxu0 %v3300
    %3459 = vmatpush2.bf16.msra.mxu0 %v3299
    %3460 = vmatprep.subr.bf16.mxu0 %v3296
    %3461 = vmatpush2.bf16.msra.mxu0 %v3295
    %3462 = vmatprep.mubr.bf16.mxu0 %v3004
    %3463 = vmatmul.mubr.bf16.gmra.mxu0 %v3003
    %v3464 = vpop.f32.mrf.mxu0
    %v3465 = vadd.f32 0.0, %v3464
    %v3466 = vpop.f32.mrf.mxu0
    %v3467 = vadd.f32 0.0, %v3466
    %v3468 = vpop.f32.mrf.mxu0
    %v3469 = vpop.f32.mrf.mxu0
    %3470 = vdwg.mxu0
    %v3471 = vmax.f32 %v3424, %v3426
    %v3472 = vmax.f32 %v3471, %v3465
    %v3473 = vmax.f32 %v3472, %v3467
    %v3474 = vld [vmem:[#allocation8] sm:$0x1]
    %v3476 = vlaneseq
    %v3477 = vshrl.u32 %v3476, 7
    %v3478 = vsub.s32 0, %v3477
    %v3479 = vrot.slane %v3474, %v3478
    %v3481 = vadd.f32 %v3473, %v3479
    %v3482 = vmax.f32 %v3481, 0.0
    %v3483 = vpack.c.bf16 %v3482, %v3482
    %v3484 = vld [vmem:[#allocation10] sm:$0xff]
    %v3485 = vld [vmem:[#allocation10 + $0x8] sm:$0xff]
    %v3486 = vld [vmem:[#allocation10 + $0x10] sm:$0xff]
    %v3487 = vld [vmem:[#allocation10 + $0x18] sm:$0xff]
    %v3488 = vld [vmem:[#allocation10 + $0x20] sm:$0xff]
    %v3489 = vld [vmem:[#allocation10 + $0x28] sm:$0xff]
    %v3490 = vld [vmem:[#allocation10 + $0x30] sm:$0xff]
    %v3491 = vld [vmem:[#allocation10 + $0x38] sm:$0xff]
    %v3492 = vld [vmem:[#allocation10 + $0x40] sm:$0xff]
    %v3493 = vld [vmem:[#allocation10 + $0x48] sm:$0xff]
    %v3494 = vld [vmem:[#allocation10 + $0x50] sm:$0xff]
    %v3495 = vld [vmem:[#allocation10 + $0x58] sm:$0xff]
    %v3496 = vld [vmem:[#allocation10 + $0x60] sm:$0xff]
    %v3497 = vld [vmem:[#allocation10 + $0x68] sm:$0xff]
    %v3498 = vld [vmem:[#allocation10 + $0x70] sm:$0xff]
    %v3499 = vld [vmem:[#allocation10 + $0x78] sm:$0xff]
    %v3500 = vld [vmem:[#allocation11] sm:$0x3]
    %v3502 = vlaneseq
    %v3503 = vshrl.u32 %v3502, 7
    %v3504 = vsub.s32 0, %v3503
    %v3505 = vrot.slane %v3500, %v3504
    %v3506 = vlaneseq
    %v3507 = vshrl.u32 %v3506, 7
    %v3508 = vsub.s32 1, %v3507
    %v3509 = vrot.slane %v3500, %v3508
    %v3528 = vunpack.c.l.b16 %v3484
    %v3529 = vunpack.c.h.b16 %v3484
    %v3530 = vunpack.c.l.b16 %v3485
    %v3531 = vunpack.c.h.b16 %v3485
    %v3532 = vunpack.c.l.b16 %v3486
    %v3533 = vunpack.c.h.b16 %v3486
    %v3534 = vunpack.c.l.b16 %v3487
    %v3535 = vunpack.c.h.b16 %v3487
    %v3536 = vunpack.c.l.b16 %v3488
    %v3537 = vunpack.c.h.b16 %v3488
    %v3538 = vunpack.c.l.b16 %v3489
    %v3539 = vunpack.c.h.b16 %v3489
    %v3540 = vunpack.c.l.b16 %v3490
    %v3541 = vunpack.c.h.b16 %v3490
    %v3542 = vunpack.c.l.b16 %v3491
    %v3543 = vunpack.c.h.b16 %v3491
    %v3544 = vunpack.c.l.b16 %v3492
    %v3545 = vunpack.c.h.b16 %v3492
    %v3546 = vunpack.c.l.b16 %v3493
    %v3547 = vunpack.c.h.b16 %v3493
    %v3548 = vunpack.c.l.b16 %v3494
    %v3549 = vunpack.c.h.b16 %v3494
    %v3550 = vunpack.c.l.b16 %v3495
    %v3551 = vunpack.c.h.b16 %v3495
    %v3552 = vunpack.c.l.b16 %v3496
    %v3553 = vunpack.c.h.b16 %v3496
    %v3554 = vunpack.c.l.b16 %v3497
    %v3555 = vunpack.c.h.b16 %v3497
    %v3556 = vunpack.c.l.b16 %v3498
    %v3557 = vunpack.c.h.b16 %v3498
    %v3558 = vunpack.c.l.b16 %v3499
    %v3559 = vunpack.c.h.b16 %v3499
    %v3560 = vpack.c.b16 %v3530, %v3528
    %v3561 = vpack.c.b16 %v3531, %v3529
    %v3562 = vpack.c.b16 %v3534, %v3532
    %v3563 = vpack.c.b16 %v3535, %v3533
    %v3564 = vpack.c.b16 %v3538, %v3536
    %v3565 = vpack.c.b16 %v3539, %v3537
    %v3566 = vpack.c.b16 %v3542, %v3540
    %v3567 = vpack.c.b16 %v3543, %v3541
    %v3568 = vpack.c.b16 %v3546, %v3544
    %v3569 = vpack.c.b16 %v3547, %v3545
    %v3570 = vpack.c.b16 %v3550, %v3548
    %v3571 = vpack.c.b16 %v3551, %v3549
    %v3572 = vpack.c.b16 %v3554, %v3552
    %v3573 = vpack.c.b16 %v3555, %v3553
    %v3574 = vpack.c.b16 %v3558, %v3556
    %v3575 = vpack.c.b16 %v3559, %v3557
    %3592 = vmatprep.subr.bf16.mxu0 %v3575
    %3593 = vmatpush1.bf16.msra.mxu0 %v3574
    %3594 = vmatprep.subr.bf16.mxu0 %v3573
    %3595 = vmatpush1.bf16.msra.mxu0 %v3572
    %3596 = vmatprep.subr.bf16.mxu0 %v3571
    %3597 = vmatpush1.bf16.msra.mxu0 %v3570
    %3598 = vmatprep.subr.bf16.mxu0 %v3569
    %3599 = vmatpush1.bf16.msra.mxu0 %v3568
    %3600 = vmatprep.subr.bf16.mxu0 %v3567
    %3601 = vmatpush1.bf16.msra.mxu0 %v3566
    %3602 = vmatprep.subr.bf16.mxu0 %v3565
    %3603 = vmatpush1.bf16.msra.mxu0 %v3564
    %3604 = vmatprep.subr.bf16.mxu0 %v3563
    %3605 = vmatpush1.bf16.msra.mxu0 %v3562
    %3606 = vmatprep.subr.bf16.mxu0 %v3561
    %3607 = vmatpush1.bf16.msra.mxu0 %v3560
    %3608 = vmatprep.subr.bf16.mxu0 0
    %3609 = vmatpush2.bf16.msra.mxu0 0
    %3610 = vmatprep.subr.bf16.mxu0 0
    %3611 = vmatpush2.bf16.msra.mxu0 0
    %3612 = vmatprep.subr.bf16.mxu0 0
    %3613 = vmatpush2.bf16.msra.mxu0 0
    %3614 = vmatprep.subr.bf16.mxu0 0
    %3615 = vmatpush2.bf16.msra.mxu0 0
    %3616 = vmatprep.subr.bf16.mxu0 0
    %3617 = vmatpush2.bf16.msra.mxu0 0
    %3618 = vmatprep.subr.bf16.mxu0 0
    %3619 = vmatpush2.bf16.msra.mxu0 0
    %3620 = vmatprep.subr.bf16.mxu0 0
    %3621 = vmatpush2.bf16.msra.mxu0 0
    %3622 = vmatprep.subr.bf16.mxu0 0
    %3623 = vmatpush2.bf16.msra.mxu0 0
    %3624 = vmatprep.mubr.bf16.mxu0 0
    %3625 = vmatmul.mubr.bf16.gmra.mxu0 %v3483
    %v3626 = vpop.f32.mrf.mxu0
    %v3627 = vadd.f32 %v3505, %v3626
    %v3628 = vpop.f32.mrf.mxu0
    %v3629 = vadd.f32 %v3509, %v3628
    %v3630 = vpop.f32.mrf.mxu0
    %v3631 = vpop.f32.mrf.mxu0
    %3632 = vdwg.mxu0
    %v3633 = vmax.f32 %v3627, 0.0
    %v3634 = vmax.f32 %v3629, 0.0
    %v3635 = vpack.c.bf16 %v3633, %v3633
    %v3636 = vpack.c.bf16 %v3634, %v3634
    %v3637 = vld [vmem:[#allocation13] sm:$0xff]
    %v3638 = vld [vmem:[#allocation13 + $0x8] sm:$0xff]
    %v3639 = vld [vmem:[#allocation13 + $0x10] sm:$0xff]
    %v3640 = vld [vmem:[#allocation13 + $0x18] sm:$0xff]
    %v3641 = vld [vmem:[#allocation13 + $0x20] sm:$0xff]
    %v3642 = vld [vmem:[#allocation13 + $0x28] sm:$0xff]
    %v3643 = vld [vmem:[#allocation13 + $0x30] sm:$0xff]
    %v3644 = vld [vmem:[#allocation13 + $0x38] sm:$0xff]
    %v3645 = vld [vmem:[#allocation13 + $0x40] sm:$0xff]
    %v3646 = vld [vmem:[#allocation13 + $0x48] sm:$0xff]
    %v3647 = vld [vmem:[#allocation13 + $0x50] sm:$0xff]
    %v3648 = vld [vmem:[#allocation13 + $0x58] sm:$0xff]
    %v3649 = vld [vmem:[#allocation13 + $0x60] sm:$0xff]
    %v3650 = vld [vmem:[#allocation13 + $0x68] sm:$0xff]
    %v3651 = vld [vmem:[#allocation13 + $0x70] sm:$0xff]
    %v3652 = vld [vmem:[#allocation13 + $0x78] sm:$0xff]
    %v3653 = vld [vmem:[#allocation13 + $0x80] sm:$0xff]
    %v3654 = vld [vmem:[#allocation13 + $0x88] sm:$0xff]
    %v3655 = vld [vmem:[#allocation13 + $0x90] sm:$0xff]
    %v3656 = vld [vmem:[#allocation13 + $0x98] sm:$0xff]
    %v3657 = vld [vmem:[#allocation13 + $0xa0] sm:$0xff]
    %v3658 = vld [vmem:[#allocation13 + $0xa8] sm:$0xff]
    %v3659 = vld [vmem:[#allocation13 + $0xb0] sm:$0xff]
    %v3660 = vld [vmem:[#allocation13 + $0xb8] sm:$0xff]
    %v3661 = vld [vmem:[#allocation13 + $0xc0] sm:$0xff]
    %v3662 = vld [vmem:[#allocation13 + $0xc8] sm:$0xff]
    %v3663 = vld [vmem:[#allocation13 + $0xd0] sm:$0xff]
    %v3664 = vld [vmem:[#allocation13 + $0xd8] sm:$0xff]
    %v3665 = vld [vmem:[#allocation13 + $0xe0] sm:$0xff]
    %v3666 = vld [vmem:[#allocation13 + $0xe8] sm:$0xff]
    %v3667 = vld [vmem:[#allocation13 + $0xf0] sm:$0xff]
    %v3668 = vld [vmem:[#allocation13 + $0xf8] sm:$0xff]
    %v3669 = vld [vmem:[#allocation13 + $0x100] sm:$0xff]
    %v3670 = vld [vmem:[#allocation13 + $0x108] sm:$0xff]
    %v3671 = vld [vmem:[#allocation13 + $0x110] sm:$0xff]
    %v3672 = vld [vmem:[#allocation13 + $0x118] sm:$0xff]
    %v3673 = vld [vmem:[#allocation13 + $0x120] sm:$0xff]
    %v3674 = vld [vmem:[#allocation13 + $0x128] sm:$0xff]
    %v3675 = vld [vmem:[#allocation13 + $0x130] sm:$0xff]
    %v3676 = vld [vmem:[#allocation13 + $0x138] sm:$0xff]
    %v3677 = vld [vmem:[#allocation13 + $0x140] sm:$0xff]
    %v3678 = vld [vmem:[#allocation13 + $0x148] sm:$0xff]
    %v3679 = vld [vmem:[#allocation13 + $0x150] sm:$0xff]
    %v3680 = vld [vmem:[#allocation13 + $0x158] sm:$0xff]
    %v3681 = vld [vmem:[#allocation13 + $0x160] sm:$0xff]
    %v3682 = vld [vmem:[#allocation13 + $0x168] sm:$0xff]
    %v3683 = vld [vmem:[#allocation13 + $0x170] sm:$0xff]
    %v3684 = vld [vmem:[#allocation13 + $0x178] sm:$0xff]
    %v3685 = vld [vmem:[#allocation13 + $0x180] sm:$0xff]
    %v3686 = vld [vmem:[#allocation13 + $0x188] sm:$0xff]
    %v3687 = vld [vmem:[#allocation13 + $0x190] sm:$0xff]
    %v3688 = vld [vmem:[#allocation13 + $0x198] sm:$0xff]
    %v3689 = vld [vmem:[#allocation13 + $0x1a0] sm:$0xff]
    %v3690 = vld [vmem:[#allocation13 + $0x1a8] sm:$0xff]
    %v3691 = vld [vmem:[#allocation13 + $0x1b0] sm:$0xff]
    %v3692 = vld [vmem:[#allocation13 + $0x1b8] sm:$0xff]
    %v3693 = vld [vmem:[#allocation13 + $0x1c0] sm:$0xff]
    %v3694 = vld [vmem:[#allocation13 + $0x1c8] sm:$0xff]
    %v3695 = vld [vmem:[#allocation13 + $0x1d0] sm:$0xff]
    %v3696 = vld [vmem:[#allocation13 + $0x1d8] sm:$0xff]
    %v3697 = vld [vmem:[#allocation13 + $0x1e0] sm:$0xff]
    %v3698 = vld [vmem:[#allocation13 + $0x1e8] sm:$0xff]
    %v3699 = vld [vmem:[#allocation13 + $0x1f0] sm:$0xff]
    %v3700 = vld [vmem:[#allocation13 + $0x1f8] sm:$0xff]
    %v3701 = vld [vmem:[#allocation13 + $0x200] sm:$0xff]
    %v3702 = vld [vmem:[#allocation13 + $0x208] sm:$0xff]
    %v3703 = vld [vmem:[#allocation13 + $0x210] sm:$0xff]
    %v3704 = vld [vmem:[#allocation13 + $0x218] sm:$0xff]
    %v3705 = vld [vmem:[#allocation13 + $0x220] sm:$0xff]
    %v3706 = vld [vmem:[#allocation13 + $0x228] sm:$0xff]
    %v3707 = vld [vmem:[#allocation13 + $0x230] sm:$0xff]
    %v3708 = vld [vmem:[#allocation13 + $0x238] sm:$0xff]
    %v3709 = vld [vmem:[#allocation13 + $0x240] sm:$0xff]
    %v3710 = vld [vmem:[#allocation13 + $0x248] sm:$0xff]
    %v3711 = vld [vmem:[#allocation13 + $0x250] sm:$0xff]
    %v3712 = vld [vmem:[#allocation13 + $0x258] sm:$0xff]
    %v3713 = vld [vmem:[#allocation13 + $0x260] sm:$0xff]
    %v3714 = vld [vmem:[#allocation13 + $0x268] sm:$0xff]
    %v3715 = vld [vmem:[#allocation13 + $0x270] sm:$0xff]
    %v3716 = vld [vmem:[#allocation13 + $0x278] sm:$0xff]
    %v3717 = vld [vmem:[#allocation13 + $0x280] sm:$0xff]
    %v3718 = vld [vmem:[#allocation13 + $0x288] sm:$0xff]
    %v3719 = vld [vmem:[#allocation13 + $0x290] sm:$0xff]
    %v3720 = vld [vmem:[#allocation13 + $0x298] sm:$0xff]
    %v3721 = vld [vmem:[#allocation13 + $0x2a0] sm:$0xff]
    %v3722 = vld [vmem:[#allocation13 + $0x2a8] sm:$0xff]
    %v3723 = vld [vmem:[#allocation13 + $0x2b0] sm:$0xff]
    %v3724 = vld [vmem:[#allocation13 + $0x2b8] sm:$0xff]
    %v3725 = vld [vmem:[#allocation13 + $0x2c0] sm:$0xff]
    %v3726 = vld [vmem:[#allocation13 + $0x2c8] sm:$0xff]
    %v3727 = vld [vmem:[#allocation13 + $0x2d0] sm:$0xff]
    %v3728 = vld [vmem:[#allocation13 + $0x2d8] sm:$0xff]
    %v3729 = vld [vmem:[#allocation13 + $0x2e0] sm:$0xff]
    %v3730 = vld [vmem:[#allocation13 + $0x2e8] sm:$0xff]
    %v3731 = vld [vmem:[#allocation13 + $0x2f0] sm:$0xff]
    %v3732 = vld [vmem:[#allocation13 + $0x2f8] sm:$0xff]
    %v3733 = vld [vmem:[#allocation13 + $0x300] sm:$0xff]
    %v3734 = vld [vmem:[#allocation13 + $0x308] sm:$0xff]
    %v3735 = vld [vmem:[#allocation13 + $0x310] sm:$0xff]
    %v3736 = vld [vmem:[#allocation13 + $0x318] sm:$0xff]
    %v3737 = vld [vmem:[#allocation13 + $0x320] sm:$0xff]
    %v3738 = vld [vmem:[#allocation13 + $0x328] sm:$0xff]
    %v3739 = vld [vmem:[#allocation13 + $0x330] sm:$0xff]
    %v3740 = vld [vmem:[#allocation13 + $0x338] sm:$0xff]
    %v3741 = vld [vmem:[#allocation13 + $0x340] sm:$0xff]
    %v3742 = vld [vmem:[#allocation13 + $0x348] sm:$0xff]
    %v3743 = vld [vmem:[#allocation13 + $0x350] sm:$0xff]
    %v3744 = vld [vmem:[#allocation13 + $0x358] sm:$0xff]
    %v3745 = vld [vmem:[#allocation13 + $0x360] sm:$0xff]
    %v3746 = vld [vmem:[#allocation13 + $0x368] sm:$0xff]
    %v3747 = vld [vmem:[#allocation13 + $0x370] sm:$0xff]
    %v3748 = vld [vmem:[#allocation13 + $0x378] sm:$0xff]
    %v3749 = vld [vmem:[#allocation13 + $0x380] sm:$0xff]
    %v3750 = vld [vmem:[#allocation13 + $0x388] sm:$0xff]
    %v3751 = vld [vmem:[#allocation13 + $0x390] sm:$0xff]
    %v3752 = vld [vmem:[#allocation13 + $0x398] sm:$0xff]
    %v3753 = vld [vmem:[#allocation13 + $0x3a0] sm:$0xff]
    %v3754 = vld [vmem:[#allocation13 + $0x3a8] sm:$0xff]
    %v3755 = vld [vmem:[#allocation13 + $0x3b0] sm:$0xff]
    %v3756 = vld [vmem:[#allocation13 + $0x3b8] sm:$0xff]
    %v3757 = vld [vmem:[#allocation13 + $0x3c0] sm:$0xff]
    %v3758 = vld [vmem:[#allocation13 + $0x3c8] sm:$0xff]
    %v3759 = vld [vmem:[#allocation13 + $0x3d0] sm:$0xff]
    %v3760 = vld [vmem:[#allocation13 + $0x3d8] sm:$0xff]
    %v3761 = vld [vmem:[#allocation13 + $0x3e0] sm:$0xff]
    %v3762 = vld [vmem:[#allocation13 + $0x3e8] sm:$0xff]
    %v3763 = vld [vmem:[#allocation13 + $0x3f0] sm:$0xff]
    %v3764 = vld [vmem:[#allocation13 + $0x3f8] sm:$0xff]
    %v3765 = vld [vmem:[#allocation13 + $0x400] sm:$0xff]
    %v3766 = vld [vmem:[#allocation13 + $0x408] sm:$0xff]
    %v3767 = vld [vmem:[#allocation13 + $0x410] sm:$0xff]
    %v3768 = vld [vmem:[#allocation13 + $0x418] sm:$0xff]
    %v3769 = vld [vmem:[#allocation13 + $0x420] sm:$0xff]
    %v3770 = vld [vmem:[#allocation13 + $0x428] sm:$0xff]
    %v3771 = vld [vmem:[#allocation13 + $0x430] sm:$0xff]
    %v3772 = vld [vmem:[#allocation13 + $0x438] sm:$0xff]
    %v3773 = vld [vmem:[#allocation13 + $0x440] sm:$0xff]
    %v3774 = vld [vmem:[#allocation13 + $0x448] sm:$0xff]
    %v3775 = vld [vmem:[#allocation13 + $0x450] sm:$0xff]
    %v3776 = vld [vmem:[#allocation13 + $0x458] sm:$0xff]
    %v3777 = vld [vmem:[#allocation13 + $0x460] sm:$0xff]
    %v3778 = vld [vmem:[#allocation13 + $0x468] sm:$0xff]
    %v3779 = vld [vmem:[#allocation13 + $0x470] sm:$0xff]
    %v3780 = vld [vmem:[#allocation13 + $0x478] sm:$0xff]
    %v3781 = vld [vmem:[#allocation13 + $0x480] sm:$0xff]
    %v3782 = vld [vmem:[#allocation13 + $0x488] sm:$0xff]
    %v3783 = vld [vmem:[#allocation13 + $0x490] sm:$0xff]
    %v3784 = vld [vmem:[#allocation13 + $0x498] sm:$0xff]
    %v3785 = vld [vmem:[#allocation13 + $0x4a0] sm:$0xff]
    %v3786 = vld [vmem:[#allocation13 + $0x4a8] sm:$0xff]
    %v3787 = vld [vmem:[#allocation13 + $0x4b0] sm:$0xff]
    %v3788 = vld [vmem:[#allocation13 + $0x4b8] sm:$0xff]
    %v3789 = vld [vmem:[#allocation13 + $0x4c0] sm:$0xff]
    %v3790 = vld [vmem:[#allocation13 + $0x4c8] sm:$0xff]
    %v3791 = vld [vmem:[#allocation13 + $0x4d0] sm:$0xff]
    %v3792 = vld [vmem:[#allocation13 + $0x4d8] sm:$0xff]
    %v3793 = vld [vmem:[#allocation13 + $0x4e0] sm:$0xff]
    %v3794 = vld [vmem:[#allocation13 + $0x4e8] sm:$0xff]
    %v3795 = vld [vmem:[#allocation13 + $0x4f0] sm:$0xff]
    %v3796 = vld [vmem:[#allocation13 + $0x4f8] sm:$0xff]
    %v3797 = vld [vmem:[#allocation13 + $0x500] sm:$0xff]
    %v3798 = vld [vmem:[#allocation13 + $0x508] sm:$0xff]
    %v3799 = vld [vmem:[#allocation13 + $0x510] sm:$0xff]
    %v3800 = vld [vmem:[#allocation13 + $0x518] sm:$0xff]
    %v3801 = vld [vmem:[#allocation13 + $0x520] sm:$0xff]
    %v3802 = vld [vmem:[#allocation13 + $0x528] sm:$0xff]
    %v3803 = vld [vmem:[#allocation13 + $0x530] sm:$0xff]
    %v3804 = vld [vmem:[#allocation13 + $0x538] sm:$0xff]
    %v3805 = vld [vmem:[#allocation13 + $0x540] sm:$0xff]
    %v3806 = vld [vmem:[#allocation13 + $0x548] sm:$0xff]
    %v3807 = vld [vmem:[#allocation13 + $0x550] sm:$0xff]
    %v3808 = vld [vmem:[#allocation13 + $0x558] sm:$0xff]
    %v3809 = vld [vmem:[#allocation13 + $0x560] sm:$0xff]
    %v3810 = vld [vmem:[#allocation13 + $0x568] sm:$0xff]
    %v3811 = vld [vmem:[#allocation13 + $0x570] sm:$0xff]
    %v3812 = vld [vmem:[#allocation13 + $0x578] sm:$0xff]
    %v3813 = vld [vmem:[#allocation13 + $0x580] sm:$0xff]
    %v3814 = vld [vmem:[#allocation13 + $0x588] sm:$0xff]
    %v3815 = vld [vmem:[#allocation13 + $0x590] sm:$0xff]
    %v3816 = vld [vmem:[#allocation13 + $0x598] sm:$0xff]
    %v3817 = vld [vmem:[#allocation13 + $0x5a0] sm:$0xff]
    %v3818 = vld [vmem:[#allocation13 + $0x5a8] sm:$0xff]
    %v3819 = vld [vmem:[#allocation13 + $0x5b0] sm:$0xff]
    %v3820 = vld [vmem:[#allocation13 + $0x5b8] sm:$0xff]
    %v3821 = vld [vmem:[#allocation13 + $0x5c0] sm:$0xff]
    %v3822 = vld [vmem:[#allocation13 + $0x5c8] sm:$0xff]
    %v3823 = vld [vmem:[#allocation13 + $0x5d0] sm:$0xff]
    %v3824 = vld [vmem:[#allocation13 + $0x5d8] sm:$0xff]
    %v3825 = vld [vmem:[#allocation13 + $0x5e0] sm:$0xff]
    %v3826 = vld [vmem:[#allocation13 + $0x5e8] sm:$0xff]
    %v3827 = vld [vmem:[#allocation13 + $0x5f0] sm:$0xff]
    %v3828 = vld [vmem:[#allocation13 + $0x5f8] sm:$0xff]
    %v3829 = vld [vmem:[#allocation13 + $0x600] sm:$0xff]
    %v3830 = vld [vmem:[#allocation13 + $0x608] sm:$0xff]
    %v3831 = vld [vmem:[#allocation13 + $0x610] sm:$0xff]
    %v3832 = vld [vmem:[#allocation13 + $0x618] sm:$0xff]
    %v3833 = vld [vmem:[#allocation13 + $0x620] sm:$0xff]
    %v3834 = vld [vmem:[#allocation13 + $0x628] sm:$0xff]
    %v3835 = vld [vmem:[#allocation13 + $0x630] sm:$0xff]
    %v3836 = vld [vmem:[#allocation13 + $0x638] sm:$0xff]
    %v3837 = vld [vmem:[#allocation13 + $0x640] sm:$0xff]
    %v3838 = vld [vmem:[#allocation13 + $0x648] sm:$0xff]
    %v3839 = vld [vmem:[#allocation13 + $0x650] sm:$0xff]
    %v3840 = vld [vmem:[#allocation13 + $0x658] sm:$0xff]
    %v3841 = vld [vmem:[#allocation13 + $0x660] sm:$0xff]
    %v3842 = vld [vmem:[#allocation13 + $0x668] sm:$0xff]
    %v3843 = vld [vmem:[#allocation13 + $0x670] sm:$0xff]
    %v3844 = vld [vmem:[#allocation13 + $0x678] sm:$0xff]
    %v3845 = vld [vmem:[#allocation13 + $0x680] sm:$0xff]
    %v3846 = vld [vmem:[#allocation13 + $0x688] sm:$0xff]
    %v3847 = vld [vmem:[#allocation13 + $0x690] sm:$0xff]
    %v3848 = vld [vmem:[#allocation13 + $0x698] sm:$0xff]
    %v3849 = vld [vmem:[#allocation13 + $0x6a0] sm:$0xff]
    %v3850 = vld [vmem:[#allocation13 + $0x6a8] sm:$0xff]
    %v3851 = vld [vmem:[#allocation13 + $0x6b0] sm:$0xff]
    %v3852 = vld [vmem:[#allocation13 + $0x6b8] sm:$0xff]
    %v3853 = vld [vmem:[#allocation13 + $0x6c0] sm:$0xff]
    %v3854 = vld [vmem:[#allocation13 + $0x6c8] sm:$0xff]
    %v3855 = vld [vmem:[#allocation13 + $0x6d0] sm:$0xff]
    %v3856 = vld [vmem:[#allocation13 + $0x6d8] sm:$0xff]
    %v3857 = vld [vmem:[#allocation13 + $0x6e0] sm:$0xff]
    %v3858 = vld [vmem:[#allocation13 + $0x6e8] sm:$0xff]
    %v3859 = vld [vmem:[#allocation13 + $0x6f0] sm:$0xff]
    %v3860 = vld [vmem:[#allocation13 + $0x6f8] sm:$0xff]
    %v3861 = vld [vmem:[#allocation13 + $0x700] sm:$0xff]
    %v3862 = vld [vmem:[#allocation13 + $0x708] sm:$0xff]
    %v3863 = vld [vmem:[#allocation13 + $0x710] sm:$0xff]
    %v3864 = vld [vmem:[#allocation13 + $0x718] sm:$0xff]
    %v3865 = vld [vmem:[#allocation13 + $0x720] sm:$0xff]
    %v3866 = vld [vmem:[#allocation13 + $0x728] sm:$0xff]
    %v3867 = vld [vmem:[#allocation13 + $0x730] sm:$0xff]
    %v3868 = vld [vmem:[#allocation13 + $0x738] sm:$0xff]
    %v3869 = vld [vmem:[#allocation13 + $0x740] sm:$0xff]
    %v3870 = vld [vmem:[#allocation13 + $0x748] sm:$0xff]
    %v3871 = vld [vmem:[#allocation13 + $0x750] sm:$0xff]
    %v3872 = vld [vmem:[#allocation13 + $0x758] sm:$0xff]
    %v3873 = vld [vmem:[#allocation13 + $0x760] sm:$0xff]
    %v3874 = vld [vmem:[#allocation13 + $0x768] sm:$0xff]
    %v3875 = vld [vmem:[#allocation13 + $0x770] sm:$0xff]
    %v3876 = vld [vmem:[#allocation13 + $0x778] sm:$0xff]
    %v3877 = vld [vmem:[#allocation13 + $0x780] sm:$0xff]
    %v3878 = vld [vmem:[#allocation13 + $0x788] sm:$0xff]
    %v3879 = vld [vmem:[#allocation13 + $0x790] sm:$0xff]
    %v3880 = vld [vmem:[#allocation13 + $0x798] sm:$0xff]
    %v3881 = vld [vmem:[#allocation13 + $0x7a0] sm:$0xff]
    %v3882 = vld [vmem:[#allocation13 + $0x7a8] sm:$0xff]
    %v3883 = vld [vmem:[#allocation13 + $0x7b0] sm:$0xff]
    %v3884 = vld [vmem:[#allocation13 + $0x7b8] sm:$0xff]
    %v3885 = vld [vmem:[#allocation13 + $0x7c0] sm:$0xff]
    %v3886 = vld [vmem:[#allocation13 + $0x7c8] sm:$0xff]
    %v3887 = vld [vmem:[#allocation13 + $0x7d0] sm:$0xff]
    %v3888 = vld [vmem:[#allocation13 + $0x7d8] sm:$0xff]
    %v3889 = vld [vmem:[#allocation13 + $0x7e0] sm:$0xff]
    %v3890 = vld [vmem:[#allocation13 + $0x7e8] sm:$0xff]
    %v3891 = vld [vmem:[#allocation13 + $0x7f0] sm:$0xff]
    %v3892 = vld [vmem:[#allocation13 + $0x7f8] sm:$0xff]
    %v3893 = vld [vmem:[#allocation14] sm:$0xff]
    %v3894 = vld [vmem:[#allocation14 + $0x8] sm:$0xff]
    %v3897 = vlaneseq
    %v3898 = vshrl.u32 %v3897, 7
    %v3899 = vsub.s32 0, %v3898
    %v3900 = vrot.slane %v3893, %v3899
    %v3901 = vlaneseq
    %v3902 = vshrl.u32 %v3901, 7
    %v3903 = vsub.s32 1, %v3902
    %v3904 = vrot.slane %v3893, %v3903
    %v3905 = vlaneseq
    %v3906 = vshrl.u32 %v3905, 7
    %v3907 = vsub.s32 2, %v3906
    %v3908 = vrot.slane %v3893, %v3907
    %v3909 = vlaneseq
    %v3910 = vshrl.u32 %v3909, 7
    %v3911 = vsub.s32 3, %v3910
    %v3912 = vrot.slane %v3893, %v3911
    %v3913 = vlaneseq
    %v3914 = vshrl.u32 %v3913, 7
    %v3915 = vsub.s32 4, %v3914
    %v3916 = vrot.slane %v3893, %v3915
    %v3917 = vlaneseq
    %v3918 = vshrl.u32 %v3917, 7
    %v3919 = vsub.s32 5, %v3918
    %v3920 = vrot.slane %v3893, %v3919
    %v3921 = vlaneseq
    %v3922 = vshrl.u32 %v3921, 7
    %v3923 = vsub.s32 6, %v3922
    %v3924 = vrot.slane %v3893, %v3923
    %v3925 = vlaneseq
    %v3926 = vshrl.u32 %v3925, 7
    %v3927 = vsub.s32 7, %v3926
    %v3928 = vrot.slane %v3893, %v3927
    %v3929 = vlaneseq
    %v3930 = vshrl.u32 %v3929, 7
    %v3931 = vsub.s32 0, %v3930
    %v3932 = vrot.slane %v3894, %v3931
    %v3933 = vlaneseq
    %v3934 = vshrl.u32 %v3933, 7
    %v3935 = vsub.s32 1, %v3934
    %v3936 = vrot.slane %v3894, %v3935
    %v3937 = vlaneseq
    %v3938 = vshrl.u32 %v3937, 7
    %v3939 = vsub.s32 2, %v3938
    %v3940 = vrot.slane %v3894, %v3939
    %v3941 = vlaneseq
    %v3942 = vshrl.u32 %v3941, 7
    %v3943 = vsub.s32 3, %v3942
    %v3944 = vrot.slane %v3894, %v3943
    %v3945 = vlaneseq
    %v3946 = vshrl.u32 %v3945, 7
    %v3947 = vsub.s32 4, %v3946
    %v3948 = vrot.slane %v3894, %v3947
    %v3949 = vlaneseq
    %v3950 = vshrl.u32 %v3949, 7
    %v3951 = vsub.s32 5, %v3950
    %v3952 = vrot.slane %v3894, %v3951
    %v3953 = vlaneseq
    %v3954 = vshrl.u32 %v3953, 7
    %v3955 = vsub.s32 6, %v3954
    %v3956 = vrot.slane %v3894, %v3955
    %v3957 = vlaneseq
    %v3958 = vshrl.u32 %v3957, 7
    %v3959 = vsub.s32 7, %v3958
    %v3960 = vrot.slane %v3894, %v3959
    %v4233 = vunpack.c.l.b16 %v3637
    %v4234 = vunpack.c.h.b16 %v3637
    %v4235 = vunpack.c.l.b16 %v3638
    %v4236 = vunpack.c.h.b16 %v3638
    %v4237 = vunpack.c.l.b16 %v3639
    %v4238 = vunpack.c.h.b16 %v3639
    %v4239 = vunpack.c.l.b16 %v3640
    %v4240 = vunpack.c.h.b16 %v3640
    %v4241 = vunpack.c.l.b16 %v3641
    %v4242 = vunpack.c.h.b16 %v3641
    %v4243 = vunpack.c.l.b16 %v3642
    %v4244 = vunpack.c.h.b16 %v3642
    %v4245 = vunpack.c.l.b16 %v3643
    %v4246 = vunpack.c.h.b16 %v3643
    %v4247 = vunpack.c.l.b16 %v3644
    %v4248 = vunpack.c.h.b16 %v3644
    %v4249 = vunpack.c.l.b16 %v3645
    %v4250 = vunpack.c.h.b16 %v3645
    %v4251 = vunpack.c.l.b16 %v3646
    %v4252 = vunpack.c.h.b16 %v3646
    %v4253 = vunpack.c.l.b16 %v3647
    %v4254 = vunpack.c.h.b16 %v3647
    %v4255 = vunpack.c.l.b16 %v3648
    %v4256 = vunpack.c.h.b16 %v3648
    %v4257 = vunpack.c.l.b16 %v3649
    %v4258 = vunpack.c.h.b16 %v3649
    %v4259 = vunpack.c.l.b16 %v3650
    %v4260 = vunpack.c.h.b16 %v3650
    %v4261 = vunpack.c.l.b16 %v3651
    %v4262 = vunpack.c.h.b16 %v3651
    %v4263 = vunpack.c.l.b16 %v3652
    %v4264 = vunpack.c.h.b16 %v3652
    %v4265 = vunpack.c.l.b16 %v3653
    %v4266 = vunpack.c.h.b16 %v3653
    %v4267 = vunpack.c.l.b16 %v3654
    %v4268 = vunpack.c.h.b16 %v3654
    %v4269 = vunpack.c.l.b16 %v3655
    %v4270 = vunpack.c.h.b16 %v3655
    %v4271 = vunpack.c.l.b16 %v3656
    %v4272 = vunpack.c.h.b16 %v3656
    %v4273 = vunpack.c.l.b16 %v3657
    %v4274 = vunpack.c.h.b16 %v3657
    %v4275 = vunpack.c.l.b16 %v3658
    %v4276 = vunpack.c.h.b16 %v3658
    %v4277 = vunpack.c.l.b16 %v3659
    %v4278 = vunpack.c.h.b16 %v3659
    %v4279 = vunpack.c.l.b16 %v3660
    %v4280 = vunpack.c.h.b16 %v3660
    %v4281 = vunpack.c.l.b16 %v3661
    %v4282 = vunpack.c.h.b16 %v3661
    %v4283 = vunpack.c.l.b16 %v3662
    %v4284 = vunpack.c.h.b16 %v3662
    %v4285 = vunpack.c.l.b16 %v3663
    %v4286 = vunpack.c.h.b16 %v3663
    %v4287 = vunpack.c.l.b16 %v3664
    %v4288 = vunpack.c.h.b16 %v3664
    %v4289 = vunpack.c.l.b16 %v3665
    %v4290 = vunpack.c.h.b16 %v3665
    %v4291 = vunpack.c.l.b16 %v3666
    %v4292 = vunpack.c.h.b16 %v3666
    %v4293 = vunpack.c.l.b16 %v3667
    %v4294 = vunpack.c.h.b16 %v3667
    %v4295 = vunpack.c.l.b16 %v3668
    %v4296 = vunpack.c.h.b16 %v3668
    %v4297 = vunpack.c.l.b16 %v3669
    %v4298 = vunpack.c.h.b16 %v3669
    %v4299 = vunpack.c.l.b16 %v3670
    %v4300 = vunpack.c.h.b16 %v3670
    %v4301 = vunpack.c.l.b16 %v3671
    %v4302 = vunpack.c.h.b16 %v3671
    %v4303 = vunpack.c.l.b16 %v3672
    %v4304 = vunpack.c.h.b16 %v3672
    %v4305 = vunpack.c.l.b16 %v3673
    %v4306 = vunpack.c.h.b16 %v3673
    %v4307 = vunpack.c.l.b16 %v3674
    %v4308 = vunpack.c.h.b16 %v3674
    %v4309 = vunpack.c.l.b16 %v3675
    %v4310 = vunpack.c.h.b16 %v3675
    %v4311 = vunpack.c.l.b16 %v3676
    %v4312 = vunpack.c.h.b16 %v3676
    %v4313 = vunpack.c.l.b16 %v3677
    %v4314 = vunpack.c.h.b16 %v3677
    %v4315 = vunpack.c.l.b16 %v3678
    %v4316 = vunpack.c.h.b16 %v3678
    %v4317 = vunpack.c.l.b16 %v3679
    %v4318 = vunpack.c.h.b16 %v3679
    %v4319 = vunpack.c.l.b16 %v3680
    %v4320 = vunpack.c.h.b16 %v3680
    %v4321 = vunpack.c.l.b16 %v3681
    %v4322 = vunpack.c.h.b16 %v3681
    %v4323 = vunpack.c.l.b16 %v3682
    %v4324 = vunpack.c.h.b16 %v3682
    %v4325 = vunpack.c.l.b16 %v3683
    %v4326 = vunpack.c.h.b16 %v3683
    %v4327 = vunpack.c.l.b16 %v3684
    %v4328 = vunpack.c.h.b16 %v3684
    %v4329 = vunpack.c.l.b16 %v3685
    %v4330 = vunpack.c.h.b16 %v3685
    %v4331 = vunpack.c.l.b16 %v3686
    %v4332 = vunpack.c.h.b16 %v3686
    %v4333 = vunpack.c.l.b16 %v3687
    %v4334 = vunpack.c.h.b16 %v3687
    %v4335 = vunpack.c.l.b16 %v3688
    %v4336 = vunpack.c.h.b16 %v3688
    %v4337 = vunpack.c.l.b16 %v3689
    %v4338 = vunpack.c.h.b16 %v3689
    %v4339 = vunpack.c.l.b16 %v3690
    %v4340 = vunpack.c.h.b16 %v3690
    %v4341 = vunpack.c.l.b16 %v3691
    %v4342 = vunpack.c.h.b16 %v3691
    %v4343 = vunpack.c.l.b16 %v3692
    %v4344 = vunpack.c.h.b16 %v3692
    %v4345 = vunpack.c.l.b16 %v3693
    %v4346 = vunpack.c.h.b16 %v3693
    %v4347 = vunpack.c.l.b16 %v3694
    %v4348 = vunpack.c.h.b16 %v3694
    %v4349 = vunpack.c.l.b16 %v3695
    %v4350 = vunpack.c.h.b16 %v3695
    %v4351 = vunpack.c.l.b16 %v3696
    %v4352 = vunpack.c.h.b16 %v3696
    %v4353 = vunpack.c.l.b16 %v3697
    %v4354 = vunpack.c.h.b16 %v3697
    %v4355 = vunpack.c.l.b16 %v3698
    %v4356 = vunpack.c.h.b16 %v3698
    %v4357 = vunpack.c.l.b16 %v3699
    %v4358 = vunpack.c.h.b16 %v3699
    %v4359 = vunpack.c.l.b16 %v3700
    %v4360 = vunpack.c.h.b16 %v3700
    %v4361 = vunpack.c.l.b16 %v3701
    %v4362 = vunpack.c.h.b16 %v3701
    %v4363 = vunpack.c.l.b16 %v3702
    %v4364 = vunpack.c.h.b16 %v3702
    %v4365 = vunpack.c.l.b16 %v3703
    %v4366 = vunpack.c.h.b16 %v3703
    %v4367 = vunpack.c.l.b16 %v3704
    %v4368 = vunpack.c.h.b16 %v3704
    %v4369 = vunpack.c.l.b16 %v3705
    %v4370 = vunpack.c.h.b16 %v3705
    %v4371 = vunpack.c.l.b16 %v3706
    %v4372 = vunpack.c.h.b16 %v3706
    %v4373 = vunpack.c.l.b16 %v3707
    %v4374 = vunpack.c.h.b16 %v3707
    %v4375 = vunpack.c.l.b16 %v3708
    %v4376 = vunpack.c.h.b16 %v3708
    %v4377 = vunpack.c.l.b16 %v3709
    %v4378 = vunpack.c.h.b16 %v3709
    %v4379 = vunpack.c.l.b16 %v3710
    %v4380 = vunpack.c.h.b16 %v3710
    %v4381 = vunpack.c.l.b16 %v3711
    %v4382 = vunpack.c.h.b16 %v3711
    %v4383 = vunpack.c.l.b16 %v3712
    %v4384 = vunpack.c.h.b16 %v3712
    %v4385 = vunpack.c.l.b16 %v3713
    %v4386 = vunpack.c.h.b16 %v3713
    %v4387 = vunpack.c.l.b16 %v3714
    %v4388 = vunpack.c.h.b16 %v3714
    %v4389 = vunpack.c.l.b16 %v3715
    %v4390 = vunpack.c.h.b16 %v3715
    %v4391 = vunpack.c.l.b16 %v3716
    %v4392 = vunpack.c.h.b16 %v3716
    %v4393 = vunpack.c.l.b16 %v3717
    %v4394 = vunpack.c.h.b16 %v3717
    %v4395 = vunpack.c.l.b16 %v3718
    %v4396 = vunpack.c.h.b16 %v3718
    %v4397 = vunpack.c.l.b16 %v3719
    %v4398 = vunpack.c.h.b16 %v3719
    %v4399 = vunpack.c.l.b16 %v3720
    %v4400 = vunpack.c.h.b16 %v3720
    %v4401 = vunpack.c.l.b16 %v3721
    %v4402 = vunpack.c.h.b16 %v3721
    %v4403 = vunpack.c.l.b16 %v3722
    %v4404 = vunpack.c.h.b16 %v3722
    %v4405 = vunpack.c.l.b16 %v3723
    %v4406 = vunpack.c.h.b16 %v3723
    %v4407 = vunpack.c.l.b16 %v3724
    %v4408 = vunpack.c.h.b16 %v3724
    %v4409 = vunpack.c.l.b16 %v3725
    %v4410 = vunpack.c.h.b16 %v3725
    %v4411 = vunpack.c.l.b16 %v3726
    %v4412 = vunpack.c.h.b16 %v3726
    %v4413 = vunpack.c.l.b16 %v3727
    %v4414 = vunpack.c.h.b16 %v3727
    %v4415 = vunpack.c.l.b16 %v3728
    %v4416 = vunpack.c.h.b16 %v3728
    %v4417 = vunpack.c.l.b16 %v3729
    %v4418 = vunpack.c.h.b16 %v3729
    %v4419 = vunpack.c.l.b16 %v3730
    %v4420 = vunpack.c.h.b16 %v3730
    %v4421 = vunpack.c.l.b16 %v3731
    %v4422 = vunpack.c.h.b16 %v3731
    %v4423 = vunpack.c.l.b16 %v3732
    %v4424 = vunpack.c.h.b16 %v3732
    %v4425 = vunpack.c.l.b16 %v3733
    %v4426 = vunpack.c.h.b16 %v3733
    %v4427 = vunpack.c.l.b16 %v3734
    %v4428 = vunpack.c.h.b16 %v3734
    %v4429 = vunpack.c.l.b16 %v3735
    %v4430 = vunpack.c.h.b16 %v3735
    %v4431 = vunpack.c.l.b16 %v3736
    %v4432 = vunpack.c.h.b16 %v3736
    %v4433 = vunpack.c.l.b16 %v3737
    %v4434 = vunpack.c.h.b16 %v3737
    %v4435 = vunpack.c.l.b16 %v3738
    %v4436 = vunpack.c.h.b16 %v3738
    %v4437 = vunpack.c.l.b16 %v3739
    %v4438 = vunpack.c.h.b16 %v3739
    %v4439 = vunpack.c.l.b16 %v3740
    %v4440 = vunpack.c.h.b16 %v3740
    %v4441 = vunpack.c.l.b16 %v3741
    %v4442 = vunpack.c.h.b16 %v3741
    %v4443 = vunpack.c.l.b16 %v3742
    %v4444 = vunpack.c.h.b16 %v3742
    %v4445 = vunpack.c.l.b16 %v3743
    %v4446 = vunpack.c.h.b16 %v3743
    %v4447 = vunpack.c.l.b16 %v3744
    %v4448 = vunpack.c.h.b16 %v3744
    %v4449 = vunpack.c.l.b16 %v3745
    %v4450 = vunpack.c.h.b16 %v3745
    %v4451 = vunpack.c.l.b16 %v3746
    %v4452 = vunpack.c.h.b16 %v3746
    %v4453 = vunpack.c.l.b16 %v3747
    %v4454 = vunpack.c.h.b16 %v3747
    %v4455 = vunpack.c.l.b16 %v3748
    %v4456 = vunpack.c.h.b16 %v3748
    %v4457 = vunpack.c.l.b16 %v3749
    %v4458 = vunpack.c.h.b16 %v3749
    %v4459 = vunpack.c.l.b16 %v3750
    %v4460 = vunpack.c.h.b16 %v3750
    %v4461 = vunpack.c.l.b16 %v3751
    %v4462 = vunpack.c.h.b16 %v3751
    %v4463 = vunpack.c.l.b16 %v3752
    %v4464 = vunpack.c.h.b16 %v3752
    %v4465 = vunpack.c.l.b16 %v3753
    %v4466 = vunpack.c.h.b16 %v3753
    %v4467 = vunpack.c.l.b16 %v3754
    %v4468 = vunpack.c.h.b16 %v3754
    %v4469 = vunpack.c.l.b16 %v3755
    %v4470 = vunpack.c.h.b16 %v3755
    %v4471 = vunpack.c.l.b16 %v3756
    %v4472 = vunpack.c.h.b16 %v3756
    %v4473 = vunpack.c.l.b16 %v3757
    %v4474 = vunpack.c.h.b16 %v3757
    %v4475 = vunpack.c.l.b16 %v3758
    %v4476 = vunpack.c.h.b16 %v3758
    %v4477 = vunpack.c.l.b16 %v3759
    %v4478 = vunpack.c.h.b16 %v3759
    %v4479 = vunpack.c.l.b16 %v3760
    %v4480 = vunpack.c.h.b16 %v3760
    %v4481 = vunpack.c.l.b16 %v3761
    %v4482 = vunpack.c.h.b16 %v3761
    %v4483 = vunpack.c.l.b16 %v3762
    %v4484 = vunpack.c.h.b16 %v3762
    %v4485 = vunpack.c.l.b16 %v3763
    %v4486 = vunpack.c.h.b16 %v3763
    %v4487 = vunpack.c.l.b16 %v3764
    %v4488 = vunpack.c.h.b16 %v3764
    %v4489 = vunpack.c.l.b16 %v3765
    %v4490 = vunpack.c.h.b16 %v3765
    %v4491 = vunpack.c.l.b16 %v3766
    %v4492 = vunpack.c.h.b16 %v3766
    %v4493 = vunpack.c.l.b16 %v3767
    %v4494 = vunpack.c.h.b16 %v3767
    %v4495 = vunpack.c.l.b16 %v3768
    %v4496 = vunpack.c.h.b16 %v3768
    %v4497 = vunpack.c.l.b16 %v3769
    %v4498 = vunpack.c.h.b16 %v3769
    %v4499 = vunpack.c.l.b16 %v3770
    %v4500 = vunpack.c.h.b16 %v3770
    %v4501 = vunpack.c.l.b16 %v3771
    %v4502 = vunpack.c.h.b16 %v3771
    %v4503 = vunpack.c.l.b16 %v3772
    %v4504 = vunpack.c.h.b16 %v3772
    %v4505 = vunpack.c.l.b16 %v3773
    %v4506 = vunpack.c.h.b16 %v3773
    %v4507 = vunpack.c.l.b16 %v3774
    %v4508 = vunpack.c.h.b16 %v3774
    %v4509 = vunpack.c.l.b16 %v3775
    %v4510 = vunpack.c.h.b16 %v3775
    %v4511 = vunpack.c.l.b16 %v3776
    %v4512 = vunpack.c.h.b16 %v3776
    %v4513 = vunpack.c.l.b16 %v3777
    %v4514 = vunpack.c.h.b16 %v3777
    %v4515 = vunpack.c.l.b16 %v3778
    %v4516 = vunpack.c.h.b16 %v3778
    %v4517 = vunpack.c.l.b16 %v3779
    %v4518 = vunpack.c.h.b16 %v3779
    %v4519 = vunpack.c.l.b16 %v3780
    %v4520 = vunpack.c.h.b16 %v3780
    %v4521 = vunpack.c.l.b16 %v3781
    %v4522 = vunpack.c.h.b16 %v3781
    %v4523 = vunpack.c.l.b16 %v3782
    %v4524 = vunpack.c.h.b16 %v3782
    %v4525 = vunpack.c.l.b16 %v3783
    %v4526 = vunpack.c.h.b16 %v3783
    %v4527 = vunpack.c.l.b16 %v3784
    %v4528 = vunpack.c.h.b16 %v3784
    %v4529 = vunpack.c.l.b16 %v3785
    %v4530 = vunpack.c.h.b16 %v3785
    %v4531 = vunpack.c.l.b16 %v3786
    %v4532 = vunpack.c.h.b16 %v3786
    %v4533 = vunpack.c.l.b16 %v3787
    %v4534 = vunpack.c.h.b16 %v3787
    %v4535 = vunpack.c.l.b16 %v3788
    %v4536 = vunpack.c.h.b16 %v3788
    %v4537 = vunpack.c.l.b16 %v3789
    %v4538 = vunpack.c.h.b16 %v3789
    %v4539 = vunpack.c.l.b16 %v3790
    %v4540 = vunpack.c.h.b16 %v3790
    %v4541 = vunpack.c.l.b16 %v3791
    %v4542 = vunpack.c.h.b16 %v3791
    %v4543 = vunpack.c.l.b16 %v3792
    %v4544 = vunpack.c.h.b16 %v3792
    %v4545 = vunpack.c.l.b16 %v3793
    %v4546 = vunpack.c.h.b16 %v3793
    %v4547 = vunpack.c.l.b16 %v3794
    %v4548 = vunpack.c.h.b16 %v3794
    %v4549 = vunpack.c.l.b16 %v3795
    %v4550 = vunpack.c.h.b16 %v3795
    %v4551 = vunpack.c.l.b16 %v3796
    %v4552 = vunpack.c.h.b16 %v3796
    %v4553 = vunpack.c.l.b16 %v3797
    %v4554 = vunpack.c.h.b16 %v3797
    %v4555 = vunpack.c.l.b16 %v3798
    %v4556 = vunpack.c.h.b16 %v3798
    %v4557 = vunpack.c.l.b16 %v3799
    %v4558 = vunpack.c.h.b16 %v3799
    %v4559 = vunpack.c.l.b16 %v3800
    %v4560 = vunpack.c.h.b16 %v3800
    %v4561 = vunpack.c.l.b16 %v3801
    %v4562 = vunpack.c.h.b16 %v3801
    %v4563 = vunpack.c.l.b16 %v3802
    %v4564 = vunpack.c.h.b16 %v3802
    %v4565 = vunpack.c.l.b16 %v3803
    %v4566 = vunpack.c.h.b16 %v3803
    %v4567 = vunpack.c.l.b16 %v3804
    %v4568 = vunpack.c.h.b16 %v3804
    %v4569 = vunpack.c.l.b16 %v3805
    %v4570 = vunpack.c.h.b16 %v3805
    %v4571 = vunpack.c.l.b16 %v3806
    %v4572 = vunpack.c.h.b16 %v3806
    %v4573 = vunpack.c.l.b16 %v3807
    %v4574 = vunpack.c.h.b16 %v3807
    %v4575 = vunpack.c.l.b16 %v3808
    %v4576 = vunpack.c.h.b16 %v3808
    %v4577 = vunpack.c.l.b16 %v3809
    %v4578 = vunpack.c.h.b16 %v3809
    %v4579 = vunpack.c.l.b16 %v3810
    %v4580 = vunpack.c.h.b16 %v3810
    %v4581 = vunpack.c.l.b16 %v3811
    %v4582 = vunpack.c.h.b16 %v3811
    %v4583 = vunpack.c.l.b16 %v3812
    %v4584 = vunpack.c.h.b16 %v3812
    %v4585 = vunpack.c.l.b16 %v3813
    %v4586 = vunpack.c.h.b16 %v3813
    %v4587 = vunpack.c.l.b16 %v3814
    %v4588 = vunpack.c.h.b16 %v3814
    %v4589 = vunpack.c.l.b16 %v3815
    %v4590 = vunpack.c.h.b16 %v3815
    %v4591 = vunpack.c.l.b16 %v3816
    %v4592 = vunpack.c.h.b16 %v3816
    %v4593 = vunpack.c.l.b16 %v3817
    %v4594 = vunpack.c.h.b16 %v3817
    %v4595 = vunpack.c.l.b16 %v3818
    %v4596 = vunpack.c.h.b16 %v3818
    %v4597 = vunpack.c.l.b16 %v3819
    %v4598 = vunpack.c.h.b16 %v3819
    %v4599 = vunpack.c.l.b16 %v3820
    %v4600 = vunpack.c.h.b16 %v3820
    %v4601 = vunpack.c.l.b16 %v3821
    %v4602 = vunpack.c.h.b16 %v3821
    %v4603 = vunpack.c.l.b16 %v3822
    %v4604 = vunpack.c.h.b16 %v3822
    %v4605 = vunpack.c.l.b16 %v3823
    %v4606 = vunpack.c.h.b16 %v3823
    %v4607 = vunpack.c.l.b16 %v3824
    %v4608 = vunpack.c.h.b16 %v3824
    %v4609 = vunpack.c.l.b16 %v3825
    %v4610 = vunpack.c.h.b16 %v3825
    %v4611 = vunpack.c.l.b16 %v3826
    %v4612 = vunpack.c.h.b16 %v3826
    %v4613 = vunpack.c.l.b16 %v3827
    %v4614 = vunpack.c.h.b16 %v3827
    %v4615 = vunpack.c.l.b16 %v3828
    %v4616 = vunpack.c.h.b16 %v3828
    %v4617 = vunpack.c.l.b16 %v3829
    %v4618 = vunpack.c.h.b16 %v3829
    %v4619 = vunpack.c.l.b16 %v3830
    %v4620 = vunpack.c.h.b16 %v3830
    %v4621 = vunpack.c.l.b16 %v3831
    %v4622 = vunpack.c.h.b16 %v3831
    %v4623 = vunpack.c.l.b16 %v3832
    %v4624 = vunpack.c.h.b16 %v3832
    %v4625 = vunpack.c.l.b16 %v3833
    %v4626 = vunpack.c.h.b16 %v3833
    %v4627 = vunpack.c.l.b16 %v3834
    %v4628 = vunpack.c.h.b16 %v3834
    %v4629 = vunpack.c.l.b16 %v3835
    %v4630 = vunpack.c.h.b16 %v3835
    %v4631 = vunpack.c.l.b16 %v3836
    %v4632 = vunpack.c.h.b16 %v3836
    %v4633 = vunpack.c.l.b16 %v3837
    %v4634 = vunpack.c.h.b16 %v3837
    %v4635 = vunpack.c.l.b16 %v3838
    %v4636 = vunpack.c.h.b16 %v3838
    %v4637 = vunpack.c.l.b16 %v3839
    %v4638 = vunpack.c.h.b16 %v3839
    %v4639 = vunpack.c.l.b16 %v3840
    %v4640 = vunpack.c.h.b16 %v3840
    %v4641 = vunpack.c.l.b16 %v3841
    %v4642 = vunpack.c.h.b16 %v3841
    %v4643 = vunpack.c.l.b16 %v3842
    %v4644 = vunpack.c.h.b16 %v3842
    %v4645 = vunpack.c.l.b16 %v3843
    %v4646 = vunpack.c.h.b16 %v3843
    %v4647 = vunpack.c.l.b16 %v3844
    %v4648 = vunpack.c.h.b16 %v3844
    %v4649 = vunpack.c.l.b16 %v3845
    %v4650 = vunpack.c.h.b16 %v3845
    %v4651 = vunpack.c.l.b16 %v3846
    %v4652 = vunpack.c.h.b16 %v3846
    %v4653 = vunpack.c.l.b16 %v3847
    %v4654 = vunpack.c.h.b16 %v3847
    %v4655 = vunpack.c.l.b16 %v3848
    %v4656 = vunpack.c.h.b16 %v3848
    %v4657 = vunpack.c.l.b16 %v3849
    %v4658 = vunpack.c.h.b16 %v3849
    %v4659 = vunpack.c.l.b16 %v3850
    %v4660 = vunpack.c.h.b16 %v3850
    %v4661 = vunpack.c.l.b16 %v3851
    %v4662 = vunpack.c.h.b16 %v3851
    %v4663 = vunpack.c.l.b16 %v3852
    %v4664 = vunpack.c.h.b16 %v3852
    %v4665 = vunpack.c.l.b16 %v3853
    %v4666 = vunpack.c.h.b16 %v3853
    %v4667 = vunpack.c.l.b16 %v3854
    %v4668 = vunpack.c.h.b16 %v3854
    %v4669 = vunpack.c.l.b16 %v3855
    %v4670 = vunpack.c.h.b16 %v3855
    %v4671 = vunpack.c.l.b16 %v3856
    %v4672 = vunpack.c.h.b16 %v3856
    %v4673 = vunpack.c.l.b16 %v3857
    %v4674 = vunpack.c.h.b16 %v3857
    %v4675 = vunpack.c.l.b16 %v3858
    %v4676 = vunpack.c.h.b16 %v3858
    %v4677 = vunpack.c.l.b16 %v3859
    %v4678 = vunpack.c.h.b16 %v3859
    %v4679 = vunpack.c.l.b16 %v3860
    %v4680 = vunpack.c.h.b16 %v3860
    %v4681 = vunpack.c.l.b16 %v3861
    %v4682 = vunpack.c.h.b16 %v3861
    %v4683 = vunpack.c.l.b16 %v3862
    %v4684 = vunpack.c.h.b16 %v3862
    %v4685 = vunpack.c.l.b16 %v3863
    %v4686 = vunpack.c.h.b16 %v3863
    %v4687 = vunpack.c.l.b16 %v3864
    %v4688 = vunpack.c.h.b16 %v3864
    %v4689 = vunpack.c.l.b16 %v3865
    %v4690 = vunpack.c.h.b16 %v3865
    %v4691 = vunpack.c.l.b16 %v3866
    %v4692 = vunpack.c.h.b16 %v3866
    %v4693 = vunpack.c.l.b16 %v3867
    %v4694 = vunpack.c.h.b16 %v3867
    %v4695 = vunpack.c.l.b16 %v3868
    %v4696 = vunpack.c.h.b16 %v3868
    %v4697 = vunpack.c.l.b16 %v3869
    %v4698 = vunpack.c.h.b16 %v3869
    %v4699 = vunpack.c.l.b16 %v3870
    %v4700 = vunpack.c.h.b16 %v3870
    %v4701 = vunpack.c.l.b16 %v3871
    %v4702 = vunpack.c.h.b16 %v3871
    %v4703 = vunpack.c.l.b16 %v3872
    %v4704 = vunpack.c.h.b16 %v3872
    %v4705 = vunpack.c.l.b16 %v3873
    %v4706 = vunpack.c.h.b16 %v3873
    %v4707 = vunpack.c.l.b16 %v3874
    %v4708 = vunpack.c.h.b16 %v3874
    %v4709 = vunpack.c.l.b16 %v3875
    %v4710 = vunpack.c.h.b16 %v3875
    %v4711 = vunpack.c.l.b16 %v3876
    %v4712 = vunpack.c.h.b16 %v3876
    %v4713 = vunpack.c.l.b16 %v3877
    %v4714 = vunpack.c.h.b16 %v3877
    %v4715 = vunpack.c.l.b16 %v3878
    %v4716 = vunpack.c.h.b16 %v3878
    %v4717 = vunpack.c.l.b16 %v3879
    %v4718 = vunpack.c.h.b16 %v3879
    %v4719 = vunpack.c.l.b16 %v3880
    %v4720 = vunpack.c.h.b16 %v3880
    %v4721 = vunpack.c.l.b16 %v3881
    %v4722 = vunpack.c.h.b16 %v3881
    %v4723 = vunpack.c.l.b16 %v3882
    %v4724 = vunpack.c.h.b16 %v3882
    %v4725 = vunpack.c.l.b16 %v3883
    %v4726 = vunpack.c.h.b16 %v3883
    %v4727 = vunpack.c.l.b16 %v3884
    %v4728 = vunpack.c.h.b16 %v3884
    %v4729 = vunpack.c.l.b16 %v3885
    %v4730 = vunpack.c.h.b16 %v3885
    %v4731 = vunpack.c.l.b16 %v3886
    %v4732 = vunpack.c.h.b16 %v3886
    %v4733 = vunpack.c.l.b16 %v3887
    %v4734 = vunpack.c.h.b16 %v3887
    %v4735 = vunpack.c.l.b16 %v3888
    %v4736 = vunpack.c.h.b16 %v3888
    %v4737 = vunpack.c.l.b16 %v3889
    %v4738 = vunpack.c.h.b16 %v3889
    %v4739 = vunpack.c.l.b16 %v3890
    %v4740 = vunpack.c.h.b16 %v3890
    %v4741 = vunpack.c.l.b16 %v3891
    %v4742 = vunpack.c.h.b16 %v3891
    %v4743 = vunpack.c.l.b16 %v3892
    %v4744 = vunpack.c.h.b16 %v3892
    %v4745 = vpack.c.b16 %v4249, %v4233
    %v4746 = vpack.c.b16 %v4250, %v4234
    %v4747 = vpack.c.b16 %v4251, %v4235
    %v4748 = vpack.c.b16 %v4252, %v4236
    %v4749 = vpack.c.b16 %v4253, %v4237
    %v4750 = vpack.c.b16 %v4254, %v4238
    %v4751 = vpack.c.b16 %v4255, %v4239
    %v4752 = vpack.c.b16 %v4256, %v4240
    %v4753 = vpack.c.b16 %v4257, %v4241
    %v4754 = vpack.c.b16 %v4258, %v4242
    %v4755 = vpack.c.b16 %v4259, %v4243
    %v4756 = vpack.c.b16 %v4260, %v4244
    %v4757 = vpack.c.b16 %v4261, %v4245
    %v4758 = vpack.c.b16 %v4262, %v4246
    %v4759 = vpack.c.b16 %v4263, %v4247
    %v4760 = vpack.c.b16 %v4264, %v4248
    %v4761 = vpack.c.b16 %v4281, %v4265
    %v4762 = vpack.c.b16 %v4282, %v4266
    %v4763 = vpack.c.b16 %v4283, %v4267
    %v4764 = vpack.c.b16 %v4284, %v4268
    %v4765 = vpack.c.b16 %v4285, %v4269
    %v4766 = vpack.c.b16 %v4286, %v4270
    %v4767 = vpack.c.b16 %v4287, %v4271
    %v4768 = vpack.c.b16 %v4288, %v4272
    %v4769 = vpack.c.b16 %v4289, %v4273
    %v4770 = vpack.c.b16 %v4290, %v4274
    %v4771 = vpack.c.b16 %v4291, %v4275
    %v4772 = vpack.c.b16 %v4292, %v4276
    %v4773 = vpack.c.b16 %v4293, %v4277
    %v4774 = vpack.c.b16 %v4294, %v4278
    %v4775 = vpack.c.b16 %v4295, %v4279
    %v4776 = vpack.c.b16 %v4296, %v4280
    %v4777 = vpack.c.b16 %v4313, %v4297
    %v4778 = vpack.c.b16 %v4314, %v4298
    %v4779 = vpack.c.b16 %v4315, %v4299
    %v4780 = vpack.c.b16 %v4316, %v4300
    %v4781 = vpack.c.b16 %v4317, %v4301
    %v4782 = vpack.c.b16 %v4318, %v4302
    %v4783 = vpack.c.b16 %v4319, %v4303
    %v4784 = vpack.c.b16 %v4320, %v4304
    %v4785 = vpack.c.b16 %v4321, %v4305
    %v4786 = vpack.c.b16 %v4322, %v4306
    %v4787 = vpack.c.b16 %v4323, %v4307
    %v4788 = vpack.c.b16 %v4324, %v4308
    %v4789 = vpack.c.b16 %v4325, %v4309
    %v4790 = vpack.c.b16 %v4326, %v4310
    %v4791 = vpack.c.b16 %v4327, %v4311
    %v4792 = vpack.c.b16 %v4328, %v4312
    %v4793 = vpack.c.b16 %v4345, %v4329
    %v4794 = vpack.c.b16 %v4346, %v4330
    %v4795 = vpack.c.b16 %v4347, %v4331
    %v4796 = vpack.c.b16 %v4348, %v4332
    %v4797 = vpack.c.b16 %v4349, %v4333
    %v4798 = vpack.c.b16 %v4350, %v4334
    %v4799 = vpack.c.b16 %v4351, %v4335
    %v4800 = vpack.c.b16 %v4352, %v4336
    %v4801 = vpack.c.b16 %v4353, %v4337
    %v4802 = vpack.c.b16 %v4354, %v4338
    %v4803 = vpack.c.b16 %v4355, %v4339
    %v4804 = vpack.c.b16 %v4356, %v4340
    %v4805 = vpack.c.b16 %v4357, %v4341
    %v4806 = vpack.c.b16 %v4358, %v4342
    %v4807 = vpack.c.b16 %v4359, %v4343
    %v4808 = vpack.c.b16 %v4360, %v4344
    %v4809 = vpack.c.b16 %v4377, %v4361
    %v4810 = vpack.c.b16 %v4378, %v4362
    %v4811 = vpack.c.b16 %v4379, %v4363
    %v4812 = vpack.c.b16 %v4380, %v4364
    %v4813 = vpack.c.b16 %v4381, %v4365
    %v4814 = vpack.c.b16 %v4382, %v4366
    %v4815 = vpack.c.b16 %v4383, %v4367
    %v4816 = vpack.c.b16 %v4384, %v4368
    %v4817 = vpack.c.b16 %v4385, %v4369
    %v4818 = vpack.c.b16 %v4386, %v4370
    %v4819 = vpack.c.b16 %v4387, %v4371
    %v4820 = vpack.c.b16 %v4388, %v4372
    %v4821 = vpack.c.b16 %v4389, %v4373
    %v4822 = vpack.c.b16 %v4390, %v4374
    %v4823 = vpack.c.b16 %v4391, %v4375
    %v4824 = vpack.c.b16 %v4392, %v4376
    %v4825 = vpack.c.b16 %v4409, %v4393
    %v4826 = vpack.c.b16 %v4410, %v4394
    %v4827 = vpack.c.b16 %v4411, %v4395
    %v4828 = vpack.c.b16 %v4412, %v4396
    %v4829 = vpack.c.b16 %v4413, %v4397
    %v4830 = vpack.c.b16 %v4414, %v4398
    %v4831 = vpack.c.b16 %v4415, %v4399
    %v4832 = vpack.c.b16 %v4416, %v4400
    %v4833 = vpack.c.b16 %v4417, %v4401
    %v4834 = vpack.c.b16 %v4418, %v4402
    %v4835 = vpack.c.b16 %v4419, %v4403
    %v4836 = vpack.c.b16 %v4420, %v4404
    %v4837 = vpack.c.b16 %v4421, %v4405
    %v4838 = vpack.c.b16 %v4422, %v4406
    %v4839 = vpack.c.b16 %v4423, %v4407
    %v4840 = vpack.c.b16 %v4424, %v4408
    %v4841 = vpack.c.b16 %v4441, %v4425
    %v4842 = vpack.c.b16 %v4442, %v4426
    %v4843 = vpack.c.b16 %v4443, %v4427
    %v4844 = vpack.c.b16 %v4444, %v4428
    %v4845 = vpack.c.b16 %v4445, %v4429
    %v4846 = vpack.c.b16 %v4446, %v4430
    %v4847 = vpack.c.b16 %v4447, %v4431
    %v4848 = vpack.c.b16 %v4448, %v4432
    %v4849 = vpack.c.b16 %v4449, %v4433
    %v4850 = vpack.c.b16 %v4450, %v4434
    %v4851 = vpack.c.b16 %v4451, %v4435
    %v4852 = vpack.c.b16 %v4452, %v4436
    %v4853 = vpack.c.b16 %v4453, %v4437
    %v4854 = vpack.c.b16 %v4454, %v4438
    %v4855 = vpack.c.b16 %v4455, %v4439
    %v4856 = vpack.c.b16 %v4456, %v4440
    %v4857 = vpack.c.b16 %v4473, %v4457
    %v4858 = vpack.c.b16 %v4474, %v4458
    %v4859 = vpack.c.b16 %v4475, %v4459
    %v4860 = vpack.c.b16 %v4476, %v4460
    %v4861 = vpack.c.b16 %v4477, %v4461
    %v4862 = vpack.c.b16 %v4478, %v4462
    %v4863 = vpack.c.b16 %v4479, %v4463
    %v4864 = vpack.c.b16 %v4480, %v4464
    %v4865 = vpack.c.b16 %v4481, %v4465
    %v4866 = vpack.c.b16 %v4482, %v4466
    %v4867 = vpack.c.b16 %v4483, %v4467
    %v4868 = vpack.c.b16 %v4484, %v4468
    %v4869 = vpack.c.b16 %v4485, %v4469
    %v4870 = vpack.c.b16 %v4486, %v4470
    %v4871 = vpack.c.b16 %v4487, %v4471
    %v4872 = vpack.c.b16 %v4488, %v4472
    %v4873 = vpack.c.b16 %v4505, %v4489
    %v4874 = vpack.c.b16 %v4506, %v4490
    %v4875 = vpack.c.b16 %v4507, %v4491
    %v4876 = vpack.c.b16 %v4508, %v4492
    %v4877 = vpack.c.b16 %v4509, %v4493
    %v4878 = vpack.c.b16 %v4510, %v4494
    %v4879 = vpack.c.b16 %v4511, %v4495
    %v4880 = vpack.c.b16 %v4512, %v4496
    %v4881 = vpack.c.b16 %v4513, %v4497
    %v4882 = vpack.c.b16 %v4514, %v4498
    %v4883 = vpack.c.b16 %v4515, %v4499
    %v4884 = vpack.c.b16 %v4516, %v4500
    %v4885 = vpack.c.b16 %v4517, %v4501
    %v4886 = vpack.c.b16 %v4518, %v4502
    %v4887 = vpack.c.b16 %v4519, %v4503
    %v4888 = vpack.c.b16 %v4520, %v4504
    %v4889 = vpack.c.b16 %v4537, %v4521
    %v4890 = vpack.c.b16 %v4538, %v4522
    %v4891 = vpack.c.b16 %v4539, %v4523
    %v4892 = vpack.c.b16 %v4540, %v4524
    %v4893 = vpack.c.b16 %v4541, %v4525
    %v4894 = vpack.c.b16 %v4542, %v4526
    %v4895 = vpack.c.b16 %v4543, %v4527
    %v4896 = vpack.c.b16 %v4544, %v4528
    %v4897 = vpack.c.b16 %v4545, %v4529
    %v4898 = vpack.c.b16 %v4546, %v4530
    %v4899 = vpack.c.b16 %v4547, %v4531
    %v4900 = vpack.c.b16 %v4548, %v4532
    %v4901 = vpack.c.b16 %v4549, %v4533
    %v4902 = vpack.c.b16 %v4550, %v4534
    %v4903 = vpack.c.b16 %v4551, %v4535
    %v4904 = vpack.c.b16 %v4552, %v4536
    %v4905 = vpack.c.b16 %v4569, %v4553
    %v4906 = vpack.c.b16 %v4570, %v4554
    %v4907 = vpack.c.b16 %v4571, %v4555
    %v4908 = vpack.c.b16 %v4572, %v4556
    %v4909 = vpack.c.b16 %v4573, %v4557
    %v4910 = vpack.c.b16 %v4574, %v4558
    %v4911 = vpack.c.b16 %v4575, %v4559
    %v4912 = vpack.c.b16 %v4576, %v4560
    %v4913 = vpack.c.b16 %v4577, %v4561
    %v4914 = vpack.c.b16 %v4578, %v4562
    %v4915 = vpack.c.b16 %v4579, %v4563
    %v4916 = vpack.c.b16 %v4580, %v4564
    %v4917 = vpack.c.b16 %v4581, %v4565
    %v4918 = vpack.c.b16 %v4582, %v4566
    %v4919 = vpack.c.b16 %v4583, %v4567
    %v4920 = vpack.c.b16 %v4584, %v4568
    %v4921 = vpack.c.b16 %v4601, %v4585
    %v4922 = vpack.c.b16 %v4602, %v4586
    %v4923 = vpack.c.b16 %v4603, %v4587
    %v4924 = vpack.c.b16 %v4604, %v4588
    %v4925 = vpack.c.b16 %v4605, %v4589
    %v4926 = vpack.c.b16 %v4606, %v4590
    %v4927 = vpack.c.b16 %v4607, %v4591
    %v4928 = vpack.c.b16 %v4608, %v4592
    %v4929 = vpack.c.b16 %v4609, %v4593
    %v4930 = vpack.c.b16 %v4610, %v4594
    %v4931 = vpack.c.b16 %v4611, %v4595
    %v4932 = vpack.c.b16 %v4612, %v4596
    %v4933 = vpack.c.b16 %v4613, %v4597
    %v4934 = vpack.c.b16 %v4614, %v4598
    %v4935 = vpack.c.b16 %v4615, %v4599
    %v4936 = vpack.c.b16 %v4616, %v4600
    %v4937 = vpack.c.b16 %v4633, %v4617
    %v4938 = vpack.c.b16 %v4634, %v4618
    %v4939 = vpack.c.b16 %v4635, %v4619
    %v4940 = vpack.c.b16 %v4636, %v4620
    %v4941 = vpack.c.b16 %v4637, %v4621
    %v4942 = vpack.c.b16 %v4638, %v4622
    %v4943 = vpack.c.b16 %v4639, %v4623
    %v4944 = vpack.c.b16 %v4640, %v4624
    %v4945 = vpack.c.b16 %v4641, %v4625
    %v4946 = vpack.c.b16 %v4642, %v4626
    %v4947 = vpack.c.b16 %v4643, %v4627
    %v4948 = vpack.c.b16 %v4644, %v4628
    %v4949 = vpack.c.b16 %v4645, %v4629
    %v4950 = vpack.c.b16 %v4646, %v4630
    %v4951 = vpack.c.b16 %v4647, %v4631
    %v4952 = vpack.c.b16 %v4648, %v4632
    %v4953 = vpack.c.b16 %v4665, %v4649
    %v4954 = vpack.c.b16 %v4666, %v4650
    %v4955 = vpack.c.b16 %v4667, %v4651
    %v4956 = vpack.c.b16 %v4668, %v4652
    %v4957 = vpack.c.b16 %v4669, %v4653
    %v4958 = vpack.c.b16 %v4670, %v4654
    %v4959 = vpack.c.b16 %v4671, %v4655
    %v4960 = vpack.c.b16 %v4672, %v4656
    %v4961 = vpack.c.b16 %v4673, %v4657
    %v4962 = vpack.c.b16 %v4674, %v4658
    %v4963 = vpack.c.b16 %v4675, %v4659
    %v4964 = vpack.c.b16 %v4676, %v4660
    %v4965 = vpack.c.b16 %v4677, %v4661
    %v4966 = vpack.c.b16 %v4678, %v4662
    %v4967 = vpack.c.b16 %v4679, %v4663
    %v4968 = vpack.c.b16 %v4680, %v4664
    %v4969 = vpack.c.b16 %v4697, %v4681
    %v4970 = vpack.c.b16 %v4698, %v4682
    %v4971 = vpack.c.b16 %v4699, %v4683
    %v4972 = vpack.c.b16 %v4700, %v4684
    %v4973 = vpack.c.b16 %v4701, %v4685
    %v4974 = vpack.c.b16 %v4702, %v4686
    %v4975 = vpack.c.b16 %v4703, %v4687
    %v4976 = vpack.c.b16 %v4704, %v4688
    %v4977 = vpack.c.b16 %v4705, %v4689
    %v4978 = vpack.c.b16 %v4706, %v4690
    %v4979 = vpack.c.b16 %v4707, %v4691
    %v4980 = vpack.c.b16 %v4708, %v4692
    %v4981 = vpack.c.b16 %v4709, %v4693
    %v4982 = vpack.c.b16 %v4710, %v4694
    %v4983 = vpack.c.b16 %v4711, %v4695
    %v4984 = vpack.c.b16 %v4712, %v4696
    %v4985 = vpack.c.b16 %v4729, %v4713
    %v4986 = vpack.c.b16 %v4730, %v4714
    %v4987 = vpack.c.b16 %v4731, %v4715
    %v4988 = vpack.c.b16 %v4732, %v4716
    %v4989 = vpack.c.b16 %v4733, %v4717
    %v4990 = vpack.c.b16 %v4734, %v4718
    %v4991 = vpack.c.b16 %v4735, %v4719
    %v4992 = vpack.c.b16 %v4736, %v4720
    %v4993 = vpack.c.b16 %v4737, %v4721
    %v4994 = vpack.c.b16 %v4738, %v4722
    %v4995 = vpack.c.b16 %v4739, %v4723
    %v4996 = vpack.c.b16 %v4740, %v4724
    %v4997 = vpack.c.b16 %v4741, %v4725
    %v4998 = vpack.c.b16 %v4742, %v4726
    %v4999 = vpack.c.b16 %v4743, %v4727
    %v5000 = vpack.c.b16 %v4744, %v4728
    %5257 = vmatprep.subr.bf16.mxu0 %v4858
    %5258 = vmatpush1.bf16.msra.mxu0 %v4857
    %5259 = vmatprep.subr.bf16.mxu0 %v4842
    %5260 = vmatpush1.bf16.msra.mxu0 %v4841
    %5261 = vmatprep.subr.bf16.mxu0 %v4826
    %5262 = vmatpush1.bf16.msra.mxu0 %v4825
    %5263 = vmatprep.subr.bf16.mxu0 %v4810
    %5264 = vmatpush1.bf16.msra.mxu0 %v4809
    %5265 = vmatprep.subr.bf16.mxu0 %v4794
    %5266 = vmatpush1.bf16.msra.mxu0 %v4793
    %5267 = vmatprep.subr.bf16.mxu0 %v4778
    %5268 = vmatpush1.bf16.msra.mxu0 %v4777
    %5269 = vmatprep.subr.bf16.mxu0 %v4762
    %5270 = vmatpush1.bf16.msra.mxu0 %v4761
    %5271 = vmatprep.subr.bf16.mxu0 %v4746
    %5272 = vmatpush1.bf16.msra.mxu0 %v4745
    %5273 = vmatprep.subr.bf16.mxu0 %v4986
    %5274 = vmatpush2.bf16.msra.mxu0 %v4985
    %5275 = vmatprep.subr.bf16.mxu0 %v4970
    %5276 = vmatpush2.bf16.msra.mxu0 %v4969
    %5277 = vmatprep.subr.bf16.mxu0 %v4954
    %5278 = vmatpush2.bf16.msra.mxu0 %v4953
    %5279 = vmatprep.subr.bf16.mxu0 %v4938
    %5280 = vmatpush2.bf16.msra.mxu0 %v4937
    %5281 = vmatprep.subr.bf16.mxu0 %v4922
    %5282 = vmatpush2.bf16.msra.mxu0 %v4921
    %5283 = vmatprep.subr.bf16.mxu0 %v4906
    %5284 = vmatpush2.bf16.msra.mxu0 %v4905
    %5285 = vmatprep.subr.bf16.mxu0 %v4890
    %5286 = vmatpush2.bf16.msra.mxu0 %v4889
    %5287 = vmatprep.subr.bf16.mxu0 %v4874
    %5288 = vmatpush2.bf16.msra.mxu0 %v4873
    %5289 = vmatprep.mubr.bf16.mxu0 %v3636
    %5290 = vmatmul.mubr.bf16.gmra.mxu0 %v3635
    %v5291 = vpop.f32.mrf.mxu0
    %v5292 = vadd.f32 %v3900, %v5291
    %v5293 = vpop.f32.mrf.mxu0
    %v5294 = vadd.f32 %v3904, %v5293
    %v5295 = vpop.f32.mrf.mxu0
    %v5296 = vpop.f32.mrf.mxu0
    %5297 = vdwg.mxu0
    %5298 = vmatprep.subr.bf16.mxu0 %v4860
    %5299 = vmatpush1.bf16.msra.mxu0 %v4859
    %5300 = vmatprep.subr.bf16.mxu0 %v4844
    %5301 = vmatpush1.bf16.msra.mxu0 %v4843
    %5302 = vmatprep.subr.bf16.mxu0 %v4828
    %5303 = vmatpush1.bf16.msra.mxu0 %v4827
    %5304 = vmatprep.subr.bf16.mxu0 %v4812
    %5305 = vmatpush1.bf16.msra.mxu0 %v4811
    %5306 = vmatprep.subr.bf16.mxu0 %v4796
    %5307 = vmatpush1.bf16.msra.mxu0 %v4795
    %5308 = vmatprep.subr.bf16.mxu0 %v4780
    %5309 = vmatpush1.bf16.msra.mxu0 %v4779
    %5310 = vmatprep.subr.bf16.mxu0 %v4764
    %5311 = vmatpush1.bf16.msra.mxu0 %v4763
    %5312 = vmatprep.subr.bf16.mxu0 %v4748
    %5313 = vmatpush1.bf16.msra.mxu0 %v4747
    %5314 = vmatprep.subr.bf16.mxu0 %v4988
    %5315 = vmatpush2.bf16.msra.mxu0 %v4987
    %5316 = vmatprep.subr.bf16.mxu0 %v4972
    %5317 = vmatpush2.bf16.msra.mxu0 %v4971
    %5318 = vmatprep.subr.bf16.mxu0 %v4956
    %5319 = vmatpush2.bf16.msra.mxu0 %v4955
    %5320 = vmatprep.subr.bf16.mxu0 %v4940
    %5321 = vmatpush2.bf16.msra.mxu0 %v4939
    %5322 = vmatprep.subr.bf16.mxu0 %v4924
    %5323 = vmatpush2.bf16.msra.mxu0 %v4923
    %5324 = vmatprep.subr.bf16.mxu0 %v4908
    %5325 = vmatpush2.bf16.msra.mxu0 %v4907
    %5326 = vmatprep.subr.bf16.mxu0 %v4892
    %5327 = vmatpush2.bf16.msra.mxu0 %v4891
    %5328 = vmatprep.subr.bf16.mxu0 %v4876
    %5329 = vmatpush2.bf16.msra.mxu0 %v4875
    %5330 = vmatprep.mubr.bf16.mxu0 %v3636
    %5331 = vmatmul.mubr.bf16.gmra.mxu0 %v3635
    %v5332 = vpop.f32.mrf.mxu0
    %v5333 = vadd.f32 %v3908, %v5332
    %v5334 = vpop.f32.mrf.mxu0
    %v5335 = vadd.f32 %v3912, %v5334
    %v5336 = vpop.f32.mrf.mxu0
    %v5337 = vpop.f32.mrf.mxu0
    %5338 = vdwg.mxu0
    %5339 = vmatprep.subr.bf16.mxu0 %v4862
    %5340 = vmatpush1.bf16.msra.mxu0 %v4861
    %5341 = vmatprep.subr.bf16.mxu0 %v4846
    %5342 = vmatpush1.bf16.msra.mxu0 %v4845
    %5343 = vmatprep.subr.bf16.mxu0 %v4830
    %5344 = vmatpush1.bf16.msra.mxu0 %v4829
    %5345 = vmatprep.subr.bf16.mxu0 %v4814
    %5346 = vmatpush1.bf16.msra.mxu0 %v4813
    %5347 = vmatprep.subr.bf16.mxu0 %v4798
    %5348 = vmatpush1.bf16.msra.mxu0 %v4797
    %5349 = vmatprep.subr.bf16.mxu0 %v4782
    %5350 = vmatpush1.bf16.msra.mxu0 %v4781
    %5351 = vmatprep.subr.bf16.mxu0 %v4766
    %5352 = vmatpush1.bf16.msra.mxu0 %v4765
    %5353 = vmatprep.subr.bf16.mxu0 %v4750
    %5354 = vmatpush1.bf16.msra.mxu0 %v4749
    %5355 = vmatprep.subr.bf16.mxu0 %v4990
    %5356 = vmatpush2.bf16.msra.mxu0 %v4989
    %5357 = vmatprep.subr.bf16.mxu0 %v4974
    %5358 = vmatpush2.bf16.msra.mxu0 %v4973
    %5359 = vmatprep.subr.bf16.mxu0 %v4958
    %5360 = vmatpush2.bf16.msra.mxu0 %v4957
    %5361 = vmatprep.subr.bf16.mxu0 %v4942
    %5362 = vmatpush2.bf16.msra.mxu0 %v4941
    %5363 = vmatprep.subr.bf16.mxu0 %v4926
    %5364 = vmatpush2.bf16.msra.mxu0 %v4925
    %5365 = vmatprep.subr.bf16.mxu0 %v4910
    %5366 = vmatpush2.bf16.msra.mxu0 %v4909
    %5367 = vmatprep.subr.bf16.mxu0 %v4894
    %5368 = vmatpush2.bf16.msra.mxu0 %v4893
    %5369 = vmatprep.subr.bf16.mxu0 %v4878
    %5370 = vmatpush2.bf16.msra.mxu0 %v4877
    %5371 = vmatprep.mubr.bf16.mxu0 %v3636
    %5372 = vmatmul.mubr.bf16.gmra.mxu0 %v3635
    %v5373 = vpop.f32.mrf.mxu0
    %v5374 = vadd.f32 %v3916, %v5373
    %v5375 = vpop.f32.mrf.mxu0
    %v5376 = vadd.f32 %v3920, %v5375
    %v5377 = vpop.f32.mrf.mxu0
    %v5378 = vpop.f32.mrf.mxu0
    %5379 = vdwg.mxu0
    %5380 = vmatprep.subr.bf16.mxu0 %v4864
    %5381 = vmatpush1.bf16.msra.mxu0 %v4863
    %5382 = vmatprep.subr.bf16.mxu0 %v4848
    %5383 = vmatpush1.bf16.msra.mxu0 %v4847
    %5384 = vmatprep.subr.bf16.mxu0 %v4832
    %5385 = vmatpush1.bf16.msra.mxu0 %v4831
    %5386 = vmatprep.subr.bf16.mxu0 %v4816
    %5387 = vmatpush1.bf16.msra.mxu0 %v4815
    %5388 = vmatprep.subr.bf16.mxu0 %v4800
    %5389 = vmatpush1.bf16.msra.mxu0 %v4799
    %5390 = vmatprep.subr.bf16.mxu0 %v4784
    %5391 = vmatpush1.bf16.msra.mxu0 %v4783
    %5392 = vmatprep.subr.bf16.mxu0 %v4768
    %5393 = vmatpush1.bf16.msra.mxu0 %v4767
    %5394 = vmatprep.subr.bf16.mxu0 %v4752
    %5395 = vmatpush1.bf16.msra.mxu0 %v4751
    %5396 = vmatprep.subr.bf16.mxu0 %v4992
    %5397 = vmatpush2.bf16.msra.mxu0 %v4991
    %5398 = vmatprep.subr.bf16.mxu0 %v4976
    %5399 = vmatpush2.bf16.msra.mxu0 %v4975
    %5400 = vmatprep.subr.bf16.mxu0 %v4960
    %5401 = vmatpush2.bf16.msra.mxu0 %v4959
    %5402 = vmatprep.subr.bf16.mxu0 %v4944
    %5403 = vmatpush2.bf16.msra.mxu0 %v4943
    %5404 = vmatprep.subr.bf16.mxu0 %v4928
    %5405 = vmatpush2.bf16.msra.mxu0 %v4927
    %5406 = vmatprep.subr.bf16.mxu0 %v4912
    %5407 = vmatpush2.bf16.msra.mxu0 %v4911
    %5408 = vmatprep.subr.bf16.mxu0 %v4896
    %5409 = vmatpush2.bf16.msra.mxu0 %v4895
    %5410 = vmatprep.subr.bf16.mxu0 %v4880
    %5411 = vmatpush2.bf16.msra.mxu0 %v4879
    %5412 = vmatprep.mubr.bf16.mxu0 %v3636
    %5413 = vmatmul.mubr.bf16.gmra.mxu0 %v3635
    %v5414 = vpop.f32.mrf.mxu0
    %v5415 = vadd.f32 %v3924, %v5414
    %v5416 = vpop.f32.mrf.mxu0
    %v5417 = vadd.f32 %v3928, %v5416
    %v5418 = vpop.f32.mrf.mxu0
    %v5419 = vpop.f32.mrf.mxu0
    %5420 = vdwg.mxu0
    %5421 = vmatprep.subr.bf16.mxu0 %v4866
    %5422 = vmatpush1.bf16.msra.mxu0 %v4865
    %5423 = vmatprep.subr.bf16.mxu0 %v4850
    %5424 = vmatpush1.bf16.msra.mxu0 %v4849
    %5425 = vmatprep.subr.bf16.mxu0 %v4834
    %5426 = vmatpush1.bf16.msra.mxu0 %v4833
    %5427 = vmatprep.subr.bf16.mxu0 %v4818
    %5428 = vmatpush1.bf16.msra.mxu0 %v4817
    %5429 = vmatprep.subr.bf16.mxu0 %v4802
    %5430 = vmatpush1.bf16.msra.mxu0 %v4801
    %5431 = vmatprep.subr.bf16.mxu0 %v4786
    %5432 = vmatpush1.bf16.msra.mxu0 %v4785
    %5433 = vmatprep.subr.bf16.mxu0 %v4770
    %5434 = vmatpush1.bf16.msra.mxu0 %v4769
    %5435 = vmatprep.subr.bf16.mxu0 %v4754
    %5436 = vmatpush1.bf16.msra.mxu0 %v4753
    %5437 = vmatprep.subr.bf16.mxu0 %v4994
    %5438 = vmatpush2.bf16.msra.mxu0 %v4993
    %5439 = vmatprep.subr.bf16.mxu0 %v4978
    %5440 = vmatpush2.bf16.msra.mxu0 %v4977
    %5441 = vmatprep.subr.bf16.mxu0 %v4962
    %5442 = vmatpush2.bf16.msra.mxu0 %v4961
    %5443 = vmatprep.subr.bf16.mxu0 %v4946
    %5444 = vmatpush2.bf16.msra.mxu0 %v4945
    %5445 = vmatprep.subr.bf16.mxu0 %v4930
    %5446 = vmatpush2.bf16.msra.mxu0 %v4929
    %5447 = vmatprep.subr.bf16.mxu0 %v4914
    %5448 = vmatpush2.bf16.msra.mxu0 %v4913
    %5449 = vmatprep.subr.bf16.mxu0 %v4898
    %5450 = vmatpush2.bf16.msra.mxu0 %v4897
    %5451 = vmatprep.subr.bf16.mxu0 %v4882
    %5452 = vmatpush2.bf16.msra.mxu0 %v4881
    %5453 = vmatprep.mubr.bf16.mxu0 %v3636
    %5454 = vmatmul.mubr.bf16.gmra.mxu0 %v3635
    %v5455 = vpop.f32.mrf.mxu0
    %v5456 = vadd.f32 %v3932, %v5455
    %v5457 = vpop.f32.mrf.mxu0
    %v5458 = vadd.f32 %v3936, %v5457
    %v5459 = vpop.f32.mrf.mxu0
    %v5460 = vpop.f32.mrf.mxu0
    %5461 = vdwg.mxu0
    %5462 = vmatprep.subr.bf16.mxu0 %v4868
    %5463 = vmatpush1.bf16.msra.mxu0 %v4867
    %5464 = vmatprep.subr.bf16.mxu0 %v4852
    %5465 = vmatpush1.bf16.msra.mxu0 %v4851
    %5466 = vmatprep.subr.bf16.mxu0 %v4836
    %5467 = vmatpush1.bf16.msra.mxu0 %v4835
    %5468 = vmatprep.subr.bf16.mxu0 %v4820
    %5469 = vmatpush1.bf16.msra.mxu0 %v4819
    %5470 = vmatprep.subr.bf16.mxu0 %v4804
    %5471 = vmatpush1.bf16.msra.mxu0 %v4803
    %5472 = vmatprep.subr.bf16.mxu0 %v4788
    %5473 = vmatpush1.bf16.msra.mxu0 %v4787
    %5474 = vmatprep.subr.bf16.mxu0 %v4772
    %5475 = vmatpush1.bf16.msra.mxu0 %v4771
    %5476 = vmatprep.subr.bf16.mxu0 %v4756
    %5477 = vmatpush1.bf16.msra.mxu0 %v4755
    %5478 = vmatprep.subr.bf16.mxu0 %v4996
    %5479 = vmatpush2.bf16.msra.mxu0 %v4995
    %5480 = vmatprep.subr.bf16.mxu0 %v4980
    %5481 = vmatpush2.bf16.msra.mxu0 %v4979
    %5482 = vmatprep.subr.bf16.mxu0 %v4964
    %5483 = vmatpush2.bf16.msra.mxu0 %v4963
    %5484 = vmatprep.subr.bf16.mxu0 %v4948
    %5485 = vmatpush2.bf16.msra.mxu0 %v4947
    %5486 = vmatprep.subr.bf16.mxu0 %v4932
    %5487 = vmatpush2.bf16.msra.mxu0 %v4931
    %5488 = vmatprep.subr.bf16.mxu0 %v4916
    %5489 = vmatpush2.bf16.msra.mxu0 %v4915
    %5490 = vmatprep.subr.bf16.mxu0 %v4900
    %5491 = vmatpush2.bf16.msra.mxu0 %v4899
    %5492 = vmatprep.subr.bf16.mxu0 %v4884
    %5493 = vmatpush2.bf16.msra.mxu0 %v4883
    %5494 = vmatprep.mubr.bf16.mxu0 %v3636
    %5495 = vmatmul.mubr.bf16.gmra.mxu0 %v3635
    %v5496 = vpop.f32.mrf.mxu0
    %v5497 = vadd.f32 %v3940, %v5496
    %v5498 = vpop.f32.mrf.mxu0
    %v5499 = vadd.f32 %v3944, %v5498
    %v5500 = vpop.f32.mrf.mxu0
    %v5501 = vpop.f32.mrf.mxu0
    %5502 = vdwg.mxu0
    %5503 = vmatprep.subr.bf16.mxu0 %v4870
    %5504 = vmatpush1.bf16.msra.mxu0 %v4869
    %5505 = vmatprep.subr.bf16.mxu0 %v4854
    %5506 = vmatpush1.bf16.msra.mxu0 %v4853
    %5507 = vmatprep.subr.bf16.mxu0 %v4838
    %5508 = vmatpush1.bf16.msra.mxu0 %v4837
    %5509 = vmatprep.subr.bf16.mxu0 %v4822
    %5510 = vmatpush1.bf16.msra.mxu0 %v4821
    %5511 = vmatprep.subr.bf16.mxu0 %v4806
    %5512 = vmatpush1.bf16.msra.mxu0 %v4805
    %5513 = vmatprep.subr.bf16.mxu0 %v4790
    %5514 = vmatpush1.bf16.msra.mxu0 %v4789
    %5515 = vmatprep.subr.bf16.mxu0 %v4774
    %5516 = vmatpush1.bf16.msra.mxu0 %v4773
    %5517 = vmatprep.subr.bf16.mxu0 %v4758
    %5518 = vmatpush1.bf16.msra.mxu0 %v4757
    %5519 = vmatprep.subr.bf16.mxu0 %v4998
    %5520 = vmatpush2.bf16.msra.mxu0 %v4997
    %5521 = vmatprep.subr.bf16.mxu0 %v4982
    %5522 = vmatpush2.bf16.msra.mxu0 %v4981
    %5523 = vmatprep.subr.bf16.mxu0 %v4966
    %5524 = vmatpush2.bf16.msra.mxu0 %v4965
    %5525 = vmatprep.subr.bf16.mxu0 %v4950
    %5526 = vmatpush2.bf16.msra.mxu0 %v4949
    %5527 = vmatprep.subr.bf16.mxu0 %v4934
    %5528 = vmatpush2.bf16.msra.mxu0 %v4933
    %5529 = vmatprep.subr.bf16.mxu0 %v4918
    %5530 = vmatpush2.bf16.msra.mxu0 %v4917
    %5531 = vmatprep.subr.bf16.mxu0 %v4902
    %5532 = vmatpush2.bf16.msra.mxu0 %v4901
    %5533 = vmatprep.subr.bf16.mxu0 %v4886
    %5534 = vmatpush2.bf16.msra.mxu0 %v4885
    %5535 = vmatprep.mubr.bf16.mxu0 %v3636
    %5536 = vmatmul.mubr.bf16.gmra.mxu0 %v3635
    %v5537 = vpop.f32.mrf.mxu0
    %v5538 = vadd.f32 %v3948, %v5537
    %v5539 = vpop.f32.mrf.mxu0
    %v5540 = vadd.f32 %v3952, %v5539
    %v5541 = vpop.f32.mrf.mxu0
    %v5542 = vpop.f32.mrf.mxu0
    %5543 = vdwg.mxu0
    %5544 = vmatprep.subr.bf16.mxu0 %v4872
    %5545 = vmatpush1.bf16.msra.mxu0 %v4871
    %5546 = vmatprep.subr.bf16.mxu0 %v4856
    %5547 = vmatpush1.bf16.msra.mxu0 %v4855
    %5548 = vmatprep.subr.bf16.mxu0 %v4840
    %5549 = vmatpush1.bf16.msra.mxu0 %v4839
    %5550 = vmatprep.subr.bf16.mxu0 %v4824
    %5551 = vmatpush1.bf16.msra.mxu0 %v4823
    %5552 = vmatprep.subr.bf16.mxu0 %v4808
    %5553 = vmatpush1.bf16.msra.mxu0 %v4807
    %5554 = vmatprep.subr.bf16.mxu0 %v4792
    %5555 = vmatpush1.bf16.msra.mxu0 %v4791
    %5556 = vmatprep.subr.bf16.mxu0 %v4776
    %5557 = vmatpush1.bf16.msra.mxu0 %v4775
    %5558 = vmatprep.subr.bf16.mxu0 %v4760
    %5559 = vmatpush1.bf16.msra.mxu0 %v4759
    %5560 = vmatprep.subr.bf16.mxu0 %v5000
    %5561 = vmatpush2.bf16.msra.mxu0 %v4999
    %5562 = vmatprep.subr.bf16.mxu0 %v4984
    %5563 = vmatpush2.bf16.msra.mxu0 %v4983
    %5564 = vmatprep.subr.bf16.mxu0 %v4968
    %5565 = vmatpush2.bf16.msra.mxu0 %v4967
    %5566 = vmatprep.subr.bf16.mxu0 %v4952
    %5567 = vmatpush2.bf16.msra.mxu0 %v4951
    %5568 = vmatprep.subr.bf16.mxu0 %v4936
    %5569 = vmatpush2.bf16.msra.mxu0 %v4935
    %5570 = vmatprep.subr.bf16.mxu0 %v4920
    %5571 = vmatpush2.bf16.msra.mxu0 %v4919
    %5572 = vmatprep.subr.bf16.mxu0 %v4904
    %5573 = vmatpush2.bf16.msra.mxu0 %v4903
    %5574 = vmatprep.subr.bf16.mxu0 %v4888
    %5575 = vmatpush2.bf16.msra.mxu0 %v4887
    %5576 = vmatprep.mubr.bf16.mxu0 %v3636
    %5577 = vmatmul.mubr.bf16.gmra.mxu0 %v3635
    %v5578 = vpop.f32.mrf.mxu0
    %v5579 = vadd.f32 %v3956, %v5578
    %v5580 = vpop.f32.mrf.mxu0
    %v5581 = vadd.f32 %v3960, %v5580
    %v5582 = vpop.f32.mrf.mxu0
    %v5583 = vpop.f32.mrf.mxu0
    %5584 = vdwg.mxu0
    %v5585 = vmax.f32 %v5292, 0.0
    %v5586 = vmax.f32 %v5294, 0.0
    %v5587 = vmax.f32 %v5333, 0.0
    %v5588 = vmax.f32 %v5335, 0.0
    %v5589 = vmax.f32 %v5374, 0.0
    %v5590 = vmax.f32 %v5376, 0.0
    %v5591 = vmax.f32 %v5415, 0.0
    %v5592 = vmax.f32 %v5417, 0.0
    %v5593 = vmax.f32 %v5456, 0.0
    %v5594 = vmax.f32 %v5458, 0.0
    %v5595 = vmax.f32 %v5497, 0.0
    %v5596 = vmax.f32 %v5499, 0.0
    %v5597 = vmax.f32 %v5538, 0.0
    %v5598 = vmax.f32 %v5540, 0.0
    %v5599 = vmax.f32 %v5579, 0.0
    %v5600 = vmax.f32 %v5581, 0.0
    %s5601 = sld [smem:[#allocation16]]
    %v5602 = vstv %s5601
    %v5603 = vmul.f32 %v5585, %v5602
    %v5604 = vmul.f32 %v5586, %v5602
    %s5605 = sld [smem:[#allocation16 + $0x80]]
    %v5606 = vstv %s5605
    %v5607 = vmul.f32 %v5587, %v5606
    %v5608 = vmul.f32 %v5588, %v5606
    %v5609 = vadd.f32 %v5603, %v5607
    %v5610 = vadd.f32 %v5604, %v5608
    %s5611 = sld [smem:[#allocation16 + $0x100]]
    %v5612 = vstv %s5611
    %v5613 = vmul.f32 %v5589, %v5612
    %v5614 = vmul.f32 %v5590, %v5612
    %v5615 = vadd.f32 %v5609, %v5613
    %v5616 = vadd.f32 %v5610, %v5614
    %s5617 = sld [smem:[#allocation16 + $0x180]]
    %v5618 = vstv %s5617
    %v5619 = vmul.f32 %v5591, %v5618
    %v5620 = vmul.f32 %v5592, %v5618
    %v5621 = vadd.f32 %v5615, %v5619
    %v5622 = vadd.f32 %v5616, %v5620
    %s5623 = sld [smem:[#allocation16 + $0x200]]
    %v5624 = vstv %s5623
    %v5625 = vmul.f32 %v5593, %v5624
    %v5626 = vmul.f32 %v5594, %v5624
    %v5627 = vadd.f32 %v5621, %v5625
    %v5628 = vadd.f32 %v5622, %v5626
    %s5629 = sld [smem:[#allocation16 + $0x280]]
    %v5630 = vstv %s5629
    %v5631 = vmul.f32 %v5595, %v5630
    %v5632 = vmul.f32 %v5596, %v5630
    %v5633 = vadd.f32 %v5627, %v5631
    %v5634 = vadd.f32 %v5628, %v5632
    %s5635 = sld [smem:[#allocation16 + $0x300]]
    %v5636 = vstv %s5635
    %v5637 = vmul.f32 %v5597, %v5636
    %v5638 = vmul.f32 %v5598, %v5636
    %v5639 = vadd.f32 %v5633, %v5637
    %v5640 = vadd.f32 %v5634, %v5638
    %s5641 = sld [smem:[#allocation16 + $0x380]]
    %v5642 = vstv %s5641
    %v5643 = vmul.f32 %v5599, %v5642
    %v5644 = vmul.f32 %v5600, %v5642
    %v5645 = vadd.f32 %v5639, %v5643
    %v5646 = vadd.f32 %v5640, %v5644
    %s5647 = sld [smem:[#allocation17]]
    %v5648 = vstv %s5647
    %v5649 = vadd.f32 %v5645, %v5648
    %v5650 = vadd.f32 %v5646, %v5648
    %v5651 = vtanh.pop %v5649
    %v5652 = vtanh.pop %v5650
    %5653 = vst [vmem:[%s11] sm:$0xff] %v5651
    %5654 = vst [vmem:[%s11 + $0x8] sm:$0xff] %v5652
    %s5655 = sld [smem:[#allocation16 + $0x1]]
    %v5656 = vstv %s5655
    %v5657 = vmul.f32 %v5585, %v5656
    %v5658 = vmul.f32 %v5586, %v5656
    %s5659 = sld [smem:[#allocation16 + $0x81]]
    %v5660 = vstv %s5659
    %v5661 = vmul.f32 %v5587, %v5660
    %v5662 = vmul.f32 %v5588, %v5660
    %v5663 = vadd.f32 %v5657, %v5661
    %v5664 = vadd.f32 %v5658, %v5662
    %s5665 = sld [smem:[#allocation16 + $0x101]]
    %v5666 = vstv %s5665
    %v5667 = vmul.f32 %v5589, %v5666
    %v5668 = vmul.f32 %v5590, %v5666
    %v5669 = vadd.f32 %v5663, %v5667
    %v5670 = vadd.f32 %v5664, %v5668
    %s5671 = sld [smem:[#allocation16 + $0x181]]
    %v5672 = vstv %s5671
    %v5673 = vmul.f32 %v5591, %v5672
    %v5674 = vmul.f32 %v5592, %v5672
    %v5675 = vadd.f32 %v5669, %v5673
    %v5676 = vadd.f32 %v5670, %v5674
    %s5677 = sld [smem:[#allocation16 + $0x201]]
    %v5678 = vstv %s5677
    %v5679 = vmul.f32 %v5593, %v5678
    %v5680 = vmul.f32 %v5594, %v5678
    %v5681 = vadd.f32 %v5675, %v5679
    %v5682 = vadd.f32 %v5676, %v5680
    %s5683 = sld [smem:[#allocation16 + $0x281]]
    %v5684 = vstv %s5683
    %v5685 = vmul.f32 %v5595, %v5684
    %v5686 = vmul.f32 %v5596, %v5684
    %v5687 = vadd.f32 %v5681, %v5685
    %v5688 = vadd.f32 %v5682, %v5686
    %s5689 = sld [smem:[#allocation16 + $0x301]]
    %v5690 = vstv %s5689
    %v5691 = vmul.f32 %v5597, %v5690
    %v5692 = vmul.f32 %v5598, %v5690
    %v5693 = vadd.f32 %v5687, %v5691
    %v5694 = vadd.f32 %v5688, %v5692
    %s5695 = sld [smem:[#allocation16 + $0x381]]
    %v5696 = vstv %s5695
    %v5697 = vmul.f32 %v5599, %v5696
    %v5698 = vmul.f32 %v5600, %v5696
    %v5699 = vadd.f32 %v5693, %v5697
    %v5700 = vadd.f32 %v5694, %v5698
    %s5701 = sld [smem:[#allocation17 + $0x1]]
    %v5702 = vstv %s5701
    %v5703 = vadd.f32 %v5699, %v5702
    %v5704 = vadd.f32 %v5700, %v5702
    %v5705 = vtanh.pop %v5703
    %v5706 = vtanh.pop %v5704
    %s5707 = scalar_lea.vmem %s11, 16
    %5708 = vst [vmem:[%s5707] sm:$0xff] %v5705
    %5709 = vst [vmem:[%s5707 + $0x8] sm:$0xff] %v5706
    %s5710 = sld [smem:[#allocation16 + $0x2]]
    %v5711 = vstv %s5710
    %v5712 = vmul.f32 %v5585, %v5711
    %v5713 = vmul.f32 %v5586, %v5711
    %s5714 = sld [smem:[#allocation16 + $0x82]]
    %v5715 = vstv %s5714
    %v5716 = vmul.f32 %v5587, %v5715
    %v5717 = vmul.f32 %v5588, %v5715
    %v5718 = vadd.f32 %v5712, %v5716
    %v5719 = vadd.f32 %v5713, %v5717
    %s5720 = sld [smem:[#allocation16 + $0x102]]
    %v5721 = vstv %s5720
    %v5722 = vmul.f32 %v5589, %v5721
    %v5723 = vmul.f32 %v5590, %v5721
    %v5724 = vadd.f32 %v5718, %v5722
    %v5725 = vadd.f32 %v5719, %v5723
    %s5726 = sld [smem:[#allocation16 + $0x182]]
    %v5727 = vstv %s5726
    %v5728 = vmul.f32 %v5591, %v5727
    %v5729 = vmul.f32 %v5592, %v5727
    %v5730 = vadd.f32 %v5724, %v5728
    %v5731 = vadd.f32 %v5725, %v5729
    %s5732 = sld [smem:[#allocation16 + $0x202]]
    %v5733 = vstv %s5732
    %v5734 = vmul.f32 %v5593, %v5733
    %v5735 = vmul.f32 %v5594, %v5733
    %v5736 = vadd.f32 %v5730, %v5734
    %v5737 = vadd.f32 %v5731, %v5735
    %s5738 = sld [smem:[#allocation16 + $0x282]]
    %v5739 = vstv %s5738
    %v5740 = vmul.f32 %v5595, %v5739
    %v5741 = vmul.f32 %v5596, %v5739
    %v5742 = vadd.f32 %v5736, %v5740
    %v5743 = vadd.f32 %v5737, %v5741
    %s5744 = sld [smem:[#allocation16 + $0x302]]
    %v5745 = vstv %s5744
    %v5746 = vmul.f32 %v5597, %v5745
    %v5747 = vmul.f32 %v5598, %v5745
    %v5748 = vadd.f32 %v5742, %v5746
    %v5749 = vadd.f32 %v5743, %v5747
    %s5750 = sld [smem:[#allocation16 + $0x382]]
    %v5751 = vstv %s5750
    %v5752 = vmul.f32 %v5599, %v5751
    %v5753 = vmul.f32 %v5600, %v5751
    %v5754 = vadd.f32 %v5748, %v5752
    %v5755 = vadd.f32 %v5749, %v5753
    %s5756 = sld [smem:[#allocation17 + $0x2]]
    %v5757 = vstv %s5756
    %v5758 = vadd.f32 %v5754, %v5757
    %v5759 = vadd.f32 %v5755, %v5757
    %v5760 = vtanh.pop %v5758
    %v5761 = vtanh.pop %v5759
    %s5762 = scalar_lea.vmem %s11, 32
    %5763 = vst [vmem:[%s5762] sm:$0xff] %v5760
    %5764 = vst [vmem:[%s5762 + $0x8] sm:$0xff] %v5761
    %s5765 = sld [smem:[#allocation16 + $0x3]]
    %v5766 = vstv %s5765
    %v5767 = vmul.f32 %v5585, %v5766
    %v5768 = vmul.f32 %v5586, %v5766
    %s5769 = sld [smem:[#allocation16 + $0x83]]
    %v5770 = vstv %s5769
    %v5771 = vmul.f32 %v5587, %v5770
    %v5772 = vmul.f32 %v5588, %v5770
    %v5773 = vadd.f32 %v5767, %v5771
    %v5774 = vadd.f32 %v5768, %v5772
    %s5775 = sld [smem:[#allocation16 + $0x103]]
    %v5776 = vstv %s5775
    %v5777 = vmul.f32 %v5589, %v5776
    %v5778 = vmul.f32 %v5590, %v5776
    %v5779 = vadd.f32 %v5773, %v5777
    %v5780 = vadd.f32 %v5774, %v5778
    %s5781 = sld [smem:[#allocation16 + $0x183]]
    %v5782 = vstv %s5781
    %v5783 = vmul.f32 %v5591, %v5782
    %v5784 = vmul.f32 %v5592, %v5782
    %v5785 = vadd.f32 %v5779, %v5783
    %v5786 = vadd.f32 %v5780, %v5784
    %s5787 = sld [smem:[#allocation16 + $0x203]]
    %v5788 = vstv %s5787
    %v5789 = vmul.f32 %v5593, %v5788
    %v5790 = vmul.f32 %v5594, %v5788
    %v5791 = vadd.f32 %v5785, %v5789
    %v5792 = vadd.f32 %v5786, %v5790
    %s5793 = sld [smem:[#allocation16 + $0x283]]
    %v5794 = vstv %s5793
    %v5795 = vmul.f32 %v5595, %v5794
    %v5796 = vmul.f32 %v5596, %v5794
    %v5797 = vadd.f32 %v5791, %v5795
    %v5798 = vadd.f32 %v5792, %v5796
    %s5799 = sld [smem:[#allocation16 + $0x303]]
    %v5800 = vstv %s5799
    %v5801 = vmul.f32 %v5597, %v5800
    %v5802 = vmul.f32 %v5598, %v5800
    %v5803 = vadd.f32 %v5797, %v5801
    %v5804 = vadd.f32 %v5798, %v5802
    %s5805 = sld [smem:[#allocation16 + $0x383]]
    %v5806 = vstv %s5805
    %v5807 = vmul.f32 %v5599, %v5806
    %v5808 = vmul.f32 %v5600, %v5806
    %v5809 = vadd.f32 %v5803, %v5807
    %v5810 = vadd.f32 %v5804, %v5808
    %s5811 = sld [smem:[#allocation17 + $0x3]]
    %v5812 = vstv %s5811
    %v5813 = vadd.f32 %v5809, %v5812
    %v5814 = vadd.f32 %v5810, %v5812
    %v5815 = vtanh.pop %v5813
    %v5816 = vtanh.pop %v5814
    %s5817 = scalar_lea.vmem %s11, 48
    %5818 = vst [vmem:[%s5817] sm:$0xff] %v5815
    %5819 = vst [vmem:[%s5817 + $0x8] sm:$0xff] %v5816
    %s5820 = sld [smem:[#allocation16 + $0x4]]
    %v5821 = vstv %s5820
    %v5822 = vmul.f32 %v5585, %v5821
    %v5823 = vmul.f32 %v5586, %v5821
    %s5824 = sld [smem:[#allocation16 + $0x84]]
    %v5825 = vstv %s5824
    %v5826 = vmul.f32 %v5587, %v5825
    %v5827 = vmul.f32 %v5588, %v5825
    %v5828 = vadd.f32 %v5822, %v5826
    %v5829 = vadd.f32 %v5823, %v5827
    %s5830 = sld [smem:[#allocation16 + $0x104]]
    %v5831 = vstv %s5830
    %v5832 = vmul.f32 %v5589, %v5831
    %v5833 = vmul.f32 %v5590, %v5831
    %v5834 = vadd.f32 %v5828, %v5832
    %v5835 = vadd.f32 %v5829, %v5833
    %s5836 = sld [smem:[#allocation16 + $0x184]]
    %v5837 = vstv %s5836
    %v5838 = vmul.f32 %v5591, %v5837
    %v5839 = vmul.f32 %v5592, %v5837
    %v5840 = vadd.f32 %v5834, %v5838
    %v5841 = vadd.f32 %v5835, %v5839
    %s5842 = sld [smem:[#allocation16 + $0x204]]
    %v5843 = vstv %s5842
    %v5844 = vmul.f32 %v5593, %v5843
    %v5845 = vmul.f32 %v5594, %v5843
    %v5846 = vadd.f32 %v5840, %v5844
    %v5847 = vadd.f32 %v5841, %v5845
    %s5848 = sld [smem:[#allocation16 + $0x284]]
    %v5849 = vstv %s5848
    %v5850 = vmul.f32 %v5595, %v5849
    %v5851 = vmul.f32 %v5596, %v5849
    %v5852 = vadd.f32 %v5846, %v5850
    %v5853 = vadd.f32 %v5847, %v5851
    %s5854 = sld [smem:[#allocation16 + $0x304]]
    %v5855 = vstv %s5854
    %v5856 = vmul.f32 %v5597, %v5855
    %v5857 = vmul.f32 %v5598, %v5855
    %v5858 = vadd.f32 %v5852, %v5856
    %v5859 = vadd.f32 %v5853, %v5857
    %s5860 = sld [smem:[#allocation16 + $0x384]]
    %v5861 = vstv %s5860
    %v5862 = vmul.f32 %v5599, %v5861
    %v5863 = vmul.f32 %v5600, %v5861
    %v5864 = vadd.f32 %v5858, %v5862
    %v5865 = vadd.f32 %v5859, %v5863
    %s5866 = sld [smem:[#allocation17 + $0x4]]
    %v5867 = vstv %s5866
    %v5868 = vadd.f32 %v5864, %v5867
    %v5869 = vadd.f32 %v5865, %v5867
    %v5870 = vtanh.pop %v5868
    %v5871 = vtanh.pop %v5869
    %s5872 = scalar_lea.vmem %s11, 64
    %5873 = vst [vmem:[%s5872] sm:$0xff] %v5870
    %5874 = vst [vmem:[%s5872 + $0x8] sm:$0xff] %v5871
    %s5875 = sld [smem:[#allocation16 + $0x5]]
    %v5876 = vstv %s5875
    %v5877 = vmul.f32 %v5585, %v5876
    %v5878 = vmul.f32 %v5586, %v5876
    %s5879 = sld [smem:[#allocation16 + $0x85]]
    %v5880 = vstv %s5879
    %v5881 = vmul.f32 %v5587, %v5880
    %v5882 = vmul.f32 %v5588, %v5880
    %v5883 = vadd.f32 %v5877, %v5881
    %v5884 = vadd.f32 %v5878, %v5882
    %s5885 = sld [smem:[#allocation16 + $0x105]]
    %v5886 = vstv %s5885
    %v5887 = vmul.f32 %v5589, %v5886
    %v5888 = vmul.f32 %v5590, %v5886
    %v5889 = vadd.f32 %v5883, %v5887
    %v5890 = vadd.f32 %v5884, %v5888
    %s5891 = sld [smem:[#allocation16 + $0x185]]
    %v5892 = vstv %s5891
    %v5893 = vmul.f32 %v5591, %v5892
    %v5894 = vmul.f32 %v5592, %v5892
    %v5895 = vadd.f32 %v5889, %v5893
    %v5896 = vadd.f32 %v5890, %v5894
    %s5897 = sld [smem:[#allocation16 + $0x205]]
    %v5898 = vstv %s5897
    %v5899 = vmul.f32 %v5593, %v5898
    %v5900 = vmul.f32 %v5594, %v5898
    %v5901 = vadd.f32 %v5895, %v5899
    %v5902 = vadd.f32 %v5896, %v5900
    %s5903 = sld [smem:[#allocation16 + $0x285]]
    %v5904 = vstv %s5903
    %v5905 = vmul.f32 %v5595, %v5904
    %v5906 = vmul.f32 %v5596, %v5904
    %v5907 = vadd.f32 %v5901, %v5905
    %v5908 = vadd.f32 %v5902, %v5906
    %s5909 = sld [smem:[#allocation16 + $0x305]]
    %v5910 = vstv %s5909
    %v5911 = vmul.f32 %v5597, %v5910
    %v5912 = vmul.f32 %v5598, %v5910
    %v5913 = vadd.f32 %v5907, %v5911
    %v5914 = vadd.f32 %v5908, %v5912
    %s5915 = sld [smem:[#allocation16 + $0x385]]
    %v5916 = vstv %s5915
    %v5917 = vmul.f32 %v5599, %v5916
    %v5918 = vmul.f32 %v5600, %v5916
    %v5919 = vadd.f32 %v5913, %v5917
    %v5920 = vadd.f32 %v5914, %v5918
    %s5921 = sld [smem:[#allocation17 + $0x5]]
    %v5922 = vstv %s5921
    %v5923 = vadd.f32 %v5919, %v5922
    %v5924 = vadd.f32 %v5920, %v5922
    %v5925 = vtanh.pop %v5923
    %v5926 = vtanh.pop %v5924
    %s5927 = scalar_lea.vmem %s11, 80
    %5928 = vst [vmem:[%s5927] sm:$0xff] %v5925
    %5929 = vst [vmem:[%s5927 + $0x8] sm:$0xff] %v5926
    %s5930 = sld [smem:[#allocation16 + $0x6]]
    %v5931 = vstv %s5930
    %v5932 = vmul.f32 %v5585, %v5931
    %v5933 = vmul.f32 %v5586, %v5931
    %s5934 = sld [smem:[#allocation16 + $0x86]]
    %v5935 = vstv %s5934
    %v5936 = vmul.f32 %v5587, %v5935
    %v5937 = vmul.f32 %v5588, %v5935
    %v5938 = vadd.f32 %v5932, %v5936
    %v5939 = vadd.f32 %v5933, %v5937
    %s5940 = sld [smem:[#allocation16 + $0x106]]
    %v5941 = vstv %s5940
    %v5942 = vmul.f32 %v5589, %v5941
    %v5943 = vmul.f32 %v5590, %v5941
    %v5944 = vadd.f32 %v5938, %v5942
    %v5945 = vadd.f32 %v5939, %v5943
    %s5946 = sld [smem:[#allocation16 + $0x186]]
    %v5947 = vstv %s5946
    %v5948 = vmul.f32 %v5591, %v5947
    %v5949 = vmul.f32 %v5592, %v5947
    %v5950 = vadd.f32 %v5944, %v5948
    %v5951 = vadd.f32 %v5945, %v5949
    %s5952 = sld [smem:[#allocation16 + $0x206]]
    %v5953 = vstv %s5952
    %v5954 = vmul.f32 %v5593, %v5953
    %v5955 = vmul.f32 %v5594, %v5953
    %v5956 = vadd.f32 %v5950, %v5954
    %v5957 = vadd.f32 %v5951, %v5955
    %s5958 = sld [smem:[#allocation16 + $0x286]]
    %v5959 = vstv %s5958
    %v5960 = vmul.f32 %v5595, %v5959
    %v5961 = vmul.f32 %v5596, %v5959
    %v5962 = vadd.f32 %v5956, %v5960
    %v5963 = vadd.f32 %v5957, %v5961
    %s5964 = sld [smem:[#allocation16 + $0x306]]
    %v5965 = vstv %s5964
    %v5966 = vmul.f32 %v5597, %v5965
    %v5967 = vmul.f32 %v5598, %v5965
    %v5968 = vadd.f32 %v5962, %v5966
    %v5969 = vadd.f32 %v5963, %v5967
    %s5970 = sld [smem:[#allocation16 + $0x386]]
    %v5971 = vstv %s5970
    %v5972 = vmul.f32 %v5599, %v5971
    %v5973 = vmul.f32 %v5600, %v5971
    %v5974 = vadd.f32 %v5968, %v5972
    %v5975 = vadd.f32 %v5969, %v5973
    %s5976 = sld [smem:[#allocation17 + $0x6]]
    %v5977 = vstv %s5976
    %v5978 = vadd.f32 %v5974, %v5977
    %v5979 = vadd.f32 %v5975, %v5977
    %v5980 = vtanh.pop %v5978
    %v5981 = vtanh.pop %v5979
    %s5982 = scalar_lea.vmem %s11, 96
    %5983 = vst [vmem:[%s5982] sm:$0xff] %v5980
    %5984 = vst [vmem:[%s5982 + $0x8] sm:$0xff] %v5981
    %s5985 = sld [smem:[#allocation16 + $0x7]]
    %v5986 = vstv %s5985
    %v5987 = vmul.f32 %v5585, %v5986
    %v5988 = vmul.f32 %v5586, %v5986
    %s5989 = sld [smem:[#allocation16 + $0x87]]
    %v5990 = vstv %s5989
    %v5991 = vmul.f32 %v5587, %v5990
    %v5992 = vmul.f32 %v5588, %v5990
    %v5993 = vadd.f32 %v5987, %v5991
    %v5994 = vadd.f32 %v5988, %v5992
    %s5995 = sld [smem:[#allocation16 + $0x107]]
    %v5996 = vstv %s5995
    %v5997 = vmul.f32 %v5589, %v5996
    %v5998 = vmul.f32 %v5590, %v5996
    %v5999 = vadd.f32 %v5993, %v5997
    %v6000 = vadd.f32 %v5994, %v5998
    %s6001 = sld [smem:[#allocation16 + $0x187]]
    %v6002 = vstv %s6001
    %v6003 = vmul.f32 %v5591, %v6002
    %v6004 = vmul.f32 %v5592, %v6002
    %v6005 = vadd.f32 %v5999, %v6003
    %v6006 = vadd.f32 %v6000, %v6004
    %s6007 = sld [smem:[#allocation16 + $0x207]]
    %v6008 = vstv %s6007
    %v6009 = vmul.f32 %v5593, %v6008
    %v6010 = vmul.f32 %v5594, %v6008
    %v6011 = vadd.f32 %v6005, %v6009
    %v6012 = vadd.f32 %v6006, %v6010
    %s6013 = sld [smem:[#allocation16 + $0x287]]
    %v6014 = vstv %s6013
    %v6015 = vmul.f32 %v5595, %v6014
    %v6016 = vmul.f32 %v5596, %v6014
    %v6017 = vadd.f32 %v6011, %v6015
    %v6018 = vadd.f32 %v6012, %v6016
    %s6019 = sld [smem:[#allocation16 + $0x307]]
    %v6020 = vstv %s6019
    %v6021 = vmul.f32 %v5597, %v6020
    %v6022 = vmul.f32 %v5598, %v6020
    %v6023 = vadd.f32 %v6017, %v6021
    %v6024 = vadd.f32 %v6018, %v6022
    %s6025 = sld [smem:[#allocation16 + $0x387]]
    %v6026 = vstv %s6025
    %v6027 = vmul.f32 %v5599, %v6026
    %v6028 = vmul.f32 %v5600, %v6026
    %v6029 = vadd.f32 %v6023, %v6027
    %v6030 = vadd.f32 %v6024, %v6028
    %s6031 = sld [smem:[#allocation17 + $0x7]]
    %v6032 = vstv %s6031
    %v6033 = vadd.f32 %v6029, %v6032
    %v6034 = vadd.f32 %v6030, %v6032
    %v6035 = vtanh.pop %v6033
    %v6036 = vtanh.pop %v6034
    %s6037 = scalar_lea.vmem %s11, 112
    %6038 = vst [vmem:[%s6037] sm:$0xff] %v6035
    %6039 = vst [vmem:[%s6037 + $0x8] sm:$0xff] %v6036
    %s6040 = sld [smem:[#allocation16 + $0x8]]
    %v6041 = vstv %s6040
    %v6042 = vmul.f32 %v5585, %v6041
    %v6043 = vmul.f32 %v5586, %v6041
    %s6044 = sld [smem:[#allocation16 + $0x88]]
    %v6045 = vstv %s6044
    %v6046 = vmul.f32 %v5587, %v6045
    %v6047 = vmul.f32 %v5588, %v6045
    %v6048 = vadd.f32 %v6042, %v6046
    %v6049 = vadd.f32 %v6043, %v6047
    %s6050 = sld [smem:[#allocation16 + $0x108]]
    %v6051 = vstv %s6050
    %v6052 = vmul.f32 %v5589, %v6051
    %v6053 = vmul.f32 %v5590, %v6051
    %v6054 = vadd.f32 %v6048, %v6052
    %v6055 = vadd.f32 %v6049, %v6053
    %s6056 = sld [smem:[#allocation16 + $0x188]]
    %v6057 = vstv %s6056
    %v6058 = vmul.f32 %v5591, %v6057
    %v6059 = vmul.f32 %v5592, %v6057
    %v6060 = vadd.f32 %v6054, %v6058
    %v6061 = vadd.f32 %v6055, %v6059
    %s6062 = sld [smem:[#allocation16 + $0x208]]
    %v6063 = vstv %s6062
    %v6064 = vmul.f32 %v5593, %v6063
    %v6065 = vmul.f32 %v5594, %v6063
    %v6066 = vadd.f32 %v6060, %v6064
    %v6067 = vadd.f32 %v6061, %v6065
    %s6068 = sld [smem:[#allocation16 + $0x288]]
    %v6069 = vstv %s6068
    %v6070 = vmul.f32 %v5595, %v6069
    %v6071 = vmul.f32 %v5596, %v6069
    %v6072 = vadd.f32 %v6066, %v6070
    %v6073 = vadd.f32 %v6067, %v6071
    %s6074 = sld [smem:[#allocation16 + $0x308]]
    %v6075 = vstv %s6074
    %v6076 = vmul.f32 %v5597, %v6075
    %v6077 = vmul.f32 %v5598, %v6075
    %v6078 = vadd.f32 %v6072, %v6076
    %v6079 = vadd.f32 %v6073, %v6077
    %s6080 = sld [smem:[#allocation16 + $0x388]]
    %v6081 = vstv %s6080
    %v6082 = vmul.f32 %v5599, %v6081
    %v6083 = vmul.f32 %v5600, %v6081
    %v6084 = vadd.f32 %v6078, %v6082
    %v6085 = vadd.f32 %v6079, %v6083
    %s6086 = sld [smem:[#allocation17 + $0x8]]
    %v6087 = vstv %s6086
    %v6088 = vadd.f32 %v6084, %v6087
    %v6089 = vadd.f32 %v6085, %v6087
    %v6090 = vtanh.pop %v6088
    %v6091 = vtanh.pop %v6089
    %s6092 = scalar_lea.vmem %s11, 128
    %6093 = vst [vmem:[%s6092] sm:$0xff] %v6090
    %6094 = vst [vmem:[%s6092 + $0x8] sm:$0xff] %v6091
    %s6095 = sld [smem:[#allocation16 + $0x9]]
    %v6096 = vstv %s6095
    %v6097 = vmul.f32 %v5585, %v6096
    %v6098 = vmul.f32 %v5586, %v6096
    %s6099 = sld [smem:[#allocation16 + $0x89]]
    %v6100 = vstv %s6099
    %v6101 = vmul.f32 %v5587, %v6100
    %v6102 = vmul.f32 %v5588, %v6100
    %v6103 = vadd.f32 %v6097, %v6101
    %v6104 = vadd.f32 %v6098, %v6102
    %s6105 = sld [smem:[#allocation16 + $0x109]]
    %v6106 = vstv %s6105
    %v6107 = vmul.f32 %v5589, %v6106
    %v6108 = vmul.f32 %v5590, %v6106
    %v6109 = vadd.f32 %v6103, %v6107
    %v6110 = vadd.f32 %v6104, %v6108
    %s6111 = sld [smem:[#allocation16 + $0x189]]
    %v6112 = vstv %s6111
    %v6113 = vmul.f32 %v5591, %v6112
    %v6114 = vmul.f32 %v5592, %v6112
    %v6115 = vadd.f32 %v6109, %v6113
    %v6116 = vadd.f32 %v6110, %v6114
    %s6117 = sld [smem:[#allocation16 + $0x209]]
    %v6118 = vstv %s6117
    %v6119 = vmul.f32 %v5593, %v6118
    %v6120 = vmul.f32 %v5594, %v6118
    %v6121 = vadd.f32 %v6115, %v6119
    %v6122 = vadd.f32 %v6116, %v6120
    %s6123 = sld [smem:[#allocation16 + $0x289]]
    %v6124 = vstv %s6123
    %v6125 = vmul.f32 %v5595, %v6124
    %v6126 = vmul.f32 %v5596, %v6124
    %v6127 = vadd.f32 %v6121, %v6125
    %v6128 = vadd.f32 %v6122, %v6126
    %s6129 = sld [smem:[#allocation16 + $0x309]]
    %v6130 = vstv %s6129
    %v6131 = vmul.f32 %v5597, %v6130
    %v6132 = vmul.f32 %v5598, %v6130
    %v6133 = vadd.f32 %v6127, %v6131
    %v6134 = vadd.f32 %v6128, %v6132
    %s6135 = sld [smem:[#allocation16 + $0x389]]
    %v6136 = vstv %s6135
    %v6137 = vmul.f32 %v5599, %v6136
    %v6138 = vmul.f32 %v5600, %v6136
    %v6139 = vadd.f32 %v6133, %v6137
    %v6140 = vadd.f32 %v6134, %v6138
    %s6141 = sld [smem:[#allocation17 + $0x9]]
    %v6142 = vstv %s6141
    %v6143 = vadd.f32 %v6139, %v6142
    %v6144 = vadd.f32 %v6140, %v6142
    %v6145 = vtanh.pop %v6143
    %v6146 = vtanh.pop %v6144
    %s6147 = scalar_lea.vmem %s11, 144
    %6148 = vst [vmem:[%s6147] sm:$0xff] %v6145
    %6149 = vst [vmem:[%s6147 + $0x8] sm:$0xff] %v6146
    %s6150 = sld [smem:[#allocation16 + $0xa]]
    %v6151 = vstv %s6150
    %v6152 = vmul.f32 %v5585, %v6151
    %v6153 = vmul.f32 %v5586, %v6151
    %s6154 = sld [smem:[#allocation16 + $0x8a]]
    %v6155 = vstv %s6154
    %v6156 = vmul.f32 %v5587, %v6155
    %v6157 = vmul.f32 %v5588, %v6155
    %v6158 = vadd.f32 %v6152, %v6156
    %v6159 = vadd.f32 %v6153, %v6157
    %s6160 = sld [smem:[#allocation16 + $0x10a]]
    %v6161 = vstv %s6160
    %v6162 = vmul.f32 %v5589, %v6161
    %v6163 = vmul.f32 %v5590, %v6161
    %v6164 = vadd.f32 %v6158, %v6162
    %v6165 = vadd.f32 %v6159, %v6163
    %s6166 = sld [smem:[#allocation16 + $0x18a]]
    %v6167 = vstv %s6166
    %v6168 = vmul.f32 %v5591, %v6167
    %v6169 = vmul.f32 %v5592, %v6167
    %v6170 = vadd.f32 %v6164, %v6168
    %v6171 = vadd.f32 %v6165, %v6169
    %s6172 = sld [smem:[#allocation16 + $0x20a]]
    %v6173 = vstv %s6172
    %v6174 = vmul.f32 %v5593, %v6173
    %v6175 = vmul.f32 %v5594, %v6173
    %v6176 = vadd.f32 %v6170, %v6174
    %v6177 = vadd.f32 %v6171, %v6175
    %s6178 = sld [smem:[#allocation16 + $0x28a]]
    %v6179 = vstv %s6178
    %v6180 = vmul.f32 %v5595, %v6179
    %v6181 = vmul.f32 %v5596, %v6179
    %v6182 = vadd.f32 %v6176, %v6180
    %v6183 = vadd.f32 %v6177, %v6181
    %s6184 = sld [smem:[#allocation16 + $0x30a]]
    %v6185 = vstv %s6184
    %v6186 = vmul.f32 %v5597, %v6185
    %v6187 = vmul.f32 %v5598, %v6185
    %v6188 = vadd.f32 %v6182, %v6186
    %v6189 = vadd.f32 %v6183, %v6187
    %s6190 = sld [smem:[#allocation16 + $0x38a]]
    %v6191 = vstv %s6190
    %v6192 = vmul.f32 %v5599, %v6191
    %v6193 = vmul.f32 %v5600, %v6191
    %v6194 = vadd.f32 %v6188, %v6192
    %v6195 = vadd.f32 %v6189, %v6193
    %s6196 = sld [smem:[#allocation17 + $0xa]]
    %v6197 = vstv %s6196
    %v6198 = vadd.f32 %v6194, %v6197
    %v6199 = vadd.f32 %v6195, %v6197
    %v6200 = vtanh.pop %v6198
    %v6201 = vtanh.pop %v6199
    %s6202 = scalar_lea.vmem %s11, 160
    %6203 = vst [vmem:[%s6202] sm:$0xff] %v6200
    %6204 = vst [vmem:[%s6202 + $0x8] sm:$0xff] %v6201
    %s6205 = sld [smem:[#allocation16 + $0xb]]
    %v6206 = vstv %s6205
    %v6207 = vmul.f32 %v5585, %v6206
    %v6208 = vmul.f32 %v5586, %v6206
    %s6209 = sld [smem:[#allocation16 + $0x8b]]
    %v6210 = vstv %s6209
    %v6211 = vmul.f32 %v5587, %v6210
    %v6212 = vmul.f32 %v5588, %v6210
    %v6213 = vadd.f32 %v6207, %v6211
    %v6214 = vadd.f32 %v6208, %v6212
    %s6215 = sld [smem:[#allocation16 + $0x10b]]
    %v6216 = vstv %s6215
    %v6217 = vmul.f32 %v5589, %v6216
    %v6218 = vmul.f32 %v5590, %v6216
    %v6219 = vadd.f32 %v6213, %v6217
    %v6220 = vadd.f32 %v6214, %v6218
    %s6221 = sld [smem:[#allocation16 + $0x18b]]
    %v6222 = vstv %s6221
    %v6223 = vmul.f32 %v5591, %v6222
    %v6224 = vmul.f32 %v5592, %v6222
    %v6225 = vadd.f32 %v6219, %v6223
    %v6226 = vadd.f32 %v6220, %v6224
    %s6227 = sld [smem:[#allocation16 + $0x20b]]
    %v6228 = vstv %s6227
    %v6229 = vmul.f32 %v5593, %v6228
    %v6230 = vmul.f32 %v5594, %v6228
    %v6231 = vadd.f32 %v6225, %v6229
    %v6232 = vadd.f32 %v6226, %v6230
    %s6233 = sld [smem:[#allocation16 + $0x28b]]
    %v6234 = vstv %s6233
    %v6235 = vmul.f32 %v5595, %v6234
    %v6236 = vmul.f32 %v5596, %v6234
    %v6237 = vadd.f32 %v6231, %v6235
    %v6238 = vadd.f32 %v6232, %v6236
    %s6239 = sld [smem:[#allocation16 + $0x30b]]
    %v6240 = vstv %s6239
    %v6241 = vmul.f32 %v5597, %v6240
    %v6242 = vmul.f32 %v5598, %v6240
    %v6243 = vadd.f32 %v6237, %v6241
    %v6244 = vadd.f32 %v6238, %v6242
    %s6245 = sld [smem:[#allocation16 + $0x38b]]
    %v6246 = vstv %s6245
    %v6247 = vmul.f32 %v5599, %v6246
    %v6248 = vmul.f32 %v5600, %v6246
    %v6249 = vadd.f32 %v6243, %v6247
    %v6250 = vadd.f32 %v6244, %v6248
    %s6251 = sld [smem:[#allocation17 + $0xb]]
    %v6252 = vstv %s6251
    %v6253 = vadd.f32 %v6249, %v6252
    %v6254 = vadd.f32 %v6250, %v6252
    %v6255 = vtanh.pop %v6253
    %v6256 = vtanh.pop %v6254
    %s6257 = scalar_lea.vmem %s11, 176
    %6258 = vst [vmem:[%s6257] sm:$0xff] %v6255
    %6259 = vst [vmem:[%s6257 + $0x8] sm:$0xff] %v6256
    // Predicated region
    $region86: #{autoencoder_forward.1} parent=1 // pred_check
      _
    $region87: #{autoencoder_forward.1} parent=1 // pred_check_branch
      %6261 = sbr.rel (0) target = $region89
    $region88: #{autoencoder_forward.1} parent=1 // pred_region
      _
    $region89: #{autoencoder_forward.1} parent=1 // pred_fallthru
      _
    // Predicated region
    $region90: #{autoencoder_forward.1} parent=1 // pred_check
      _
    $region91: #{autoencoder_forward.1} parent=1 // pred_check_branch
      %6263 = sbr.rel (0) target = $region93
    $region92: #{autoencoder_forward.1} parent=1 // pred_region
      _
    $region93: #{autoencoder_forward.1} parent=1 // pred_fallthru
      _
    %6264 = vsyncpa [#allocation3], 1
    %6265 = vsyncpa [#allocation6], 1
    %6266 = vsyncpa [#allocation9], 1
    %6267 = vsyncpa [#allocation12], 1
    %6268 = vsyncpa [#allocation15], 1
    %6269 = vsyncpa [#allocation4], 1
    %6270 = vsyncpa [#allocation18], 1

</llo_original>
